<compile_context>
chip_gen: v6e
topology: v6e:2x2x1
jax: 0.10.0
libtpu: 0.0.40
codegen_flags: <defaults>
</compile_context>

<pallas_src>
import functools

import jax
import jax.numpy as jnp
from jax.experimental import pallas as pl
from jax.experimental.pallas import tpu as pltpu


def _round_up(n, m):
    return ((n + m - 1) // m) * m


# ---------------------------------------------------------------------------
# KAN hyper-parameters (efficient-KAN defaults; knots are compile-time constants)
# ---------------------------------------------------------------------------
GRID_SIZE = 5
SPLINE_ORDER = 3
GRID_RANGE = (-1.0, 1.0)
NUM_BASES = GRID_SIZE + SPLINE_ORDER          # 8 B-spline bases


def _make_knots():
    h = (GRID_RANGE[1] - GRID_RANGE[0]) / GRID_SIZE
    return tuple(GRID_RANGE[0] + (i - SPLINE_ORDER) * h
                 for i in range(GRID_SIZE + 2 * SPLINE_ORDER + 1))


KNOTS = _make_knots()                         # 12 knots
KPAD = 8                                      # lanes reserved for the running top-k scratch


# ---------------------------------------------------------------------------
# Per-generation tiling (v7x: 64 MiB VMEM per TC; v5e/v6e: 128 MiB)
# ---------------------------------------------------------------------------
def _vmem_capacity_bytes():
    try:
        return int(pltpu.get_tpu_info().vmem_capacity_bytes)
    except Exception:
        return 64 * 1024 * 1024               # conservative fallback (v7x-sized)


def _gen_tiling():
    cap = _vmem_capacity_bytes()
    if cap <= 80 * 1024 * 1024:               # v7x-class
        return dict(tile_nd=256, tile_ns=1024, vmem_limit=48 * 1024 * 1024)
    return dict(tile_nd=512, tile_ns=2048, vmem_limit=100 * 1024 * 1024)


# ---------------------------------------------------------------------------
# Fused kernel: knn_interpolate + skip-concat + KAN stack + residual
# grid = (i: destination tiles [parallel], p: pass 0/1, s: source chunks)
# ---------------------------------------------------------------------------
def _fp_fused_kernel(*refs, k, num_layers, knots, spline_order, residual, has_skip):
    pst_ref, bsrc_ref, xsrc_ref, pd_ref, bdst_ref = refs[:5]
    idx = 5
    xskip_ref = None
    if has_skip:
        xskip_ref = refs[idx]
        idx += 1
    w_refs = refs[idx:idx + num_layers]
    idx += num_layers
    o_ref = refs[idx]
    idx += 1
    topk_ref, num_ref, den_ref = refs[idx:idx + 3]

    TND = pd_ref.shape[0]
    TS = pst_ref.shape[1]
    kpad = topk_ref.shape[1]
    BIG = jnp.float32(1e30)

    p = pl.program_id(1)
    s = pl.program_id(2)
    n_s = pl.num_programs(2)

    def squared_dists():
        # Direct (pd - ps)^2 on the VPU (no |p|^2 cancellation); wrong-batch -> BIG.
        pd = pd_ref[...]                                         # [TND, 3]
        d2 = jnp.zeros((TND, TS), jnp.float32)
        for c in range(3):
            diff = pd[:, c:c + 1] - pst_ref[c:c + 1, :]          # [TND,1] - [1,TS]
            d2 = d2 + diff * diff
        same = bdst_ref[...] == bsrc_ref[...]                    # [TND,1] == [1,TS]
        return jnp.where(same, d2, BIG)

    # ---------------- pass 0: running k smallest squared distances ----------------
    @pl.when(p == 0)
    def _pass0():
        @pl.when(s == 0)
        def _():
            topk_ref[...] = jnp.full((TND, kpad), BIG, jnp.float32)

        d2 = squared_dists()
        pool = jnp.concatenate([topk_ref[...], d2], axis=1)      # [TND, kpad+TS]
        width = kpad + TS
        col = jax.lax.broadcasted_iota(jnp.int32, (TND, width), 1)
        picks = []
        for _ in range(k):
            m = jnp.min(pool, axis=1, keepdims=True)
            # min + index-min per extraction: keeps duplicate distances with multiplicity
            # (exact-k semantics), at the cost of 2 XLU reductions per neighbour.
            cand = jnp.where(pool <= m, col, jnp.int32(width))
            amin = jnp.min(cand, axis=1, keepdims=True)
            pool = jnp.where(col == amin, BIG, pool)
            picks.append(m)
        if kpad > k:
            picks.append(jnp.full((TND, kpad - k), BIG, jnp.float32))
        topk_ref[...] = jnp.concatenate(picks, axis=1)           # sorted ascending

    # ------- pass 1: accumulate 1/d^2-weighted features, then fused KAN + store -----
    @pl.when(p == 1)
    def _pass1():
        @pl.when(s == 0)
        def _():
            num_ref[...] = jnp.zeros_like(num_ref)
            den_ref[...] = jnp.zeros_like(den_ref)

        d2 = squared_dists()
        tau = topk_ref[:, k - 1:k]                               # k-th smallest d^2 [TND,1]
        w = jnp.where(d2 <= tau,
                      pl.reciprocal(jnp.maximum(d2, jnp.float32(1e-16)), approx=True),
                      0.0)
        den_ref[...] += jnp.sum(w, axis=1, keepdims=True)
        # bf16 x bf16 MXU gather matmul, f32 accumulation.
        num_ref[...] += jnp.dot(w.astype(jnp.bfloat16), xsrc_ref[...],
                                preferred_element_type=jnp.float32)

        @pl.when(s == n_s - 1)
        def _finalize():
            interp = num_ref[...] * pl.reciprocal(den_ref[...], approx=True)
            if has_skip:
                h = jnp.concatenate([interp, xskip_ref[...].astype(jnp.float32)], axis=1)
            else:
                h = interp
            identity = h

            for layer in range(num_layers):
                # base branch: SiLU (exp + reciprocal on the EUP slot)
                sig = pl.reciprocal(1.0 + jnp.exp(-h), approx=True)
                parts = [h * sig]
                # spline branch: Cox-de Boor with python-constant knots
                bases = [jnp.where((h >= knots[j]) & (h < knots[j + 1]), 1.0, 0.0)
                         for j in range(len(knots) - 1)]
                for order in range(1, spline_order + 1):
                    nxt = []
                    for j in range(len(bases) - 1):
                        inv_a = 1.0 / (knots[j + order] - knots[j])
                        inv_b = 1.0 / (knots[j + order + 1] - knots[j + 1])
                        nxt.append((h - knots[j]) * inv_a * bases[j]
                                   + (knots[j + order + 1] - h) * inv_b * bases[j + 1])
                    bases = nxt
                parts += bases
                # register-level phi (no VMEM slab / masked sub-lane-width stores)
                phi = jnp.concatenate(parts, axis=1).astype(jnp.bfloat16)
                h = jnp.dot(phi, w_refs[layer][...], preferred_element_type=jnp.float32)

            if residual:                                         # NN[0] == NN[-1]
                h = h + identity
            o_ref[...] = h


# ---------------------------------------------------------------------------
# Wrapper: padding, BlockSpecs, grid
# ---------------------------------------------------------------------------
def fp_module_forward(fused_w, residual, k, x, pos, batch, x_skip, pos_skip, batch_skip,
                      *, tile_nd=None, tile_ns=None, use_core_parallel=False):
    Ns, C = x.shape
    Nd = pos_skip.shape[0]
    has_skip = x_skip is not None
    Cs = x_skip.shape[1] if has_skip else 0
    num_layers = len(fused_w)
    Cout = fused_w[-1].shape[1]
    assert k <= KPAD, f"k={k} must be <= {KPAD}"

    cfg = _gen_tiling()
    tile_nd = tile_nd or cfg["tile_nd"]
    tile_ns = tile_ns or cfg["tile_ns"]

    TND = min(tile_nd, _round_up(Nd, 8))
    TS = min(tile_ns, _round_up(Ns, 128))
    Nd_pad = _round_up(Nd, TND)
    Ns_pad = _round_up(Ns, TS)

    # Source-side arrays, streamed in TS-wide chunks.
    pst = jnp.pad(pos.T.astype(jnp.float32), ((0, 5), (0, Ns_pad - Ns)))        # [8, Ns_pad]
    bsrc = jnp.pad(batch.astype(jnp.int32)[None, :], ((0, 0), (0, Ns_pad - Ns)),
                   constant_values=-2)                                           # [1, Ns_pad]
    xsrc = jnp.pad(x.astype(jnp.bfloat16), ((0, Ns_pad - Ns), (0, 0)))           # [Ns_pad, C]

    # Destination-side arrays, tiled over TND rows.
    pd = jnp.pad(pos_skip.astype(jnp.float32), ((0, Nd_pad - Nd), (0, 0)))       # [Nd_pad, 3]
    bdst = jnp.pad(batch_skip.astype(jnp.int32)[:, None], ((0, Nd_pad - Nd), (0, 0)),
                   constant_values=-1)                                           # [Nd_pad, 1]
    xsk = None
    if has_skip:
        xsk = jnp.pad(x_skip.astype(jnp.float32), ((0, Nd_pad - Nd), (0, 0)))    # [Nd_pad, Cs]

    n_i, n_s = Nd_pad // TND, Ns_pad // TS

    in_specs = [
        pl.BlockSpec((8, TS), lambda i, p, s: (0, s)),        # source positions (rows x/y/z)
        pl.BlockSpec((1, TS), lambda i, p, s: (0, s)),        # source batch ids
        pl.BlockSpec((TS, C), lambda i, p, s: (p * s, 0)),    # source features (pass 1 only)
        pl.BlockSpec((TND, 3), lambda i, p, s: (i, 0)),       # dest positions
        pl.BlockSpec((TND, 1), lambda i, p, s: (i, 0)),       # dest batch ids
    ]
    args = [pst, bsrc, xsrc, pd, bdst]
    if has_skip:
        in_specs.append(pl.BlockSpec((TND, Cs), lambda i, p, s: (i, 0)))
        args.append(xsk)
    for w in fused_w:                                          # tiny, grid-invariant weights
        kin, kout = w.shape
        in_specs.append(pl.BlockSpec((kin, kout), lambda i, p, s: (0, 0)))
        args.append(w.astype(jnp.bfloat16))

    kernel = functools.partial(
        _fp_fused_kernel, k=k, num_layers=num_layers, knots=KNOTS,
        spline_order=SPLINE_ORDER, residual=residual, has_skip=has_skip)

    # v7x: pltpu.CORE_PARALLEL actually shards the destination-tile axis across both TCs.
    sem0 = pltpu.CORE_PARALLEL if use_core_parallel else "parallel"

    out = pl.pallas_call(
        kernel,
        out_shape=jax.ShapeDtypeStruct((Nd_pad, Cout), jnp.float32),
        grid=(n_i, 2, n_s),
        in_specs=in_specs,
        out_specs=pl.BlockSpec((TND, Cout), lambda i, p, s: (i, 0)),
        scratch_shapes=[pltpu.VMEM((TND, KPAD), jnp.float32),  # running top-k d^2
                        pltpu.VMEM((TND, C), jnp.float32),     # numerator accumulator
                        pltpu.VMEM((TND, 1), jnp.float32)],    # denominator accumulator
        compiler_params=pltpu.CompilerParams(
            dimension_semantics=(sem0, "arbitrary", "arbitrary"),
            vmem_limit_bytes=cfg["vmem_limit"]),
    )(*args)

    out = out[:Nd] if Nd_pad != Nd else out
    return out, pos_skip, batch_skip


# ---------------------------------------------------------------------------
# Parameters (efficient-KAN init, fused into one [(1+nb)*Cin, Cout] bf16 weight per layer)
# ---------------------------------------------------------------------------
def init_kan_params(key, channels):
    fused = []
    for cin, cout in zip(channels[:-1], channels[1:]):
        key, k1, k2, k3 = jax.random.split(key, 4)
        base_w = jax.random.normal(k1, (cout, cin), jnp.float32) / jnp.sqrt(cin)
        spline_w = jax.random.normal(k2, (cout, cin, NUM_BASES), jnp.float32) * 0.1
        spline_scaler = 1.0 + 0.1 * jax.random.normal(k3, (cout, cin), jnp.float32)
        scaled = spline_w * spline_scaler[:, :, None]
        base_t = base_w.T                                                  # [Cin, Cout]
        spline_t = jnp.transpose(scaled, (2, 1, 0)).reshape(NUM_BASES * cin, cout)
        w_fused = jnp.concatenate([base_t, spline_t], axis=0)              # [(1+nb)*Cin, Cout]
        fused.append(w_fused.astype(jnp.bfloat16))
    residual = channels[0] == channels[-1]
    return fused, residual


# ---------------------------------------------------------------------------
# Pure-JAX reference (for a loose-tolerance self-check)
# ---------------------------------------------------------------------------
def _reference_forward(fused_w, residual, k, x, pos, batch, x_skip, pos_skip, batch_skip):
    d2 = jnp.sum((pos_skip[:, None, :] - pos[None, :, :]) ** 2, axis=-1)
    d2 = jnp.where(batch_skip[:, None] == batch[None, :], d2, jnp.inf)
    idx = jnp.argsort(d2, axis=1)[:, :k]
    dk = jnp.take_along_axis(d2, idx, axis=1)
    w = 1.0 / jnp.clip(dk, 1e-16, None)
    feats = x[idx]
    interp = jnp.sum(feats * w[..., None], axis=1) / jnp.sum(w, axis=1, keepdims=True)
    h = jnp.concatenate([interp, x_skip], axis=1) if x_skip is not None else interp
    identity = h
    for wf in fused_w:
        sig = 1.0 / (1.0 + jnp.exp(-h))
        parts = [h * sig]
        bases = [jnp.where((h >= KNOTS[j]) & (h < KNOTS[j + 1]), 1.0, 0.0)
                 for j in range(len(KNOTS) - 1)]
        for order in range(1, SPLINE_ORDER + 1):
            nxt = []
            for j in range(len(bases) - 1):
                nxt.append((h - KNOTS[j]) / (KNOTS[j + order] - KNOTS[j]) * bases[j]
                           + (KNOTS[j + order + 1] - h)
                           / (KNOTS[j + order + 1] - KNOTS[j + 1]) * bases[j + 1])
            bases = nxt
        parts += bases
        phi = jnp.concatenate(parts, axis=1)
        h = phi @ wf.astype(jnp.float32)
    if residual:
        h = h + identity
    return h


# ---------------------------------------------------------------------------
if __name__ == "__main__":
    key = jax.random.PRNGKey(0)
    k_knn = 3
    N_src, N_dst = 16, 32                         # coarse / fine point counts
    C_in, C_skip = 8, 8
    NN = [C_in + C_skip, 32, C_in + C_skip]       # KAN channels; in == out -> residual

    keys = jax.random.split(key, 8)
    x = jax.random.normal(keys[0], (N_src, C_in), jnp.float32)
    pos = jax.random.uniform(keys[1], (N_src, 3), jnp.float32, -1.0, 1.0)
    x_skip = jax.random.normal(keys[2], (N_dst, C_skip), jnp.float32)
    pos_skip = jax.random.uniform(keys[3], (N_dst, 3), jnp.float32, -1.0, 1.0)
    batch = jnp.concatenate([jnp.zeros(N_src // 2, jnp.int32),
                             jnp.ones(N_src // 2, jnp.int32)])
    batch_skip = jnp.concatenate([jnp.zeros(N_dst // 2, jnp.int32),
                                  jnp.ones(N_dst // 2, jnp.int32)])

    fused_w, residual = init_kan_params(keys[4], NN)

    out, pos_out, batch_out = fp_module_forward(
        fused_w, residual, k_knn, x, pos, batch, x_skip, pos_skip, batch_skip)
    jax.block_until_ready(out)

    assert out.shape == (N_dst, NN[-1]) and out.dtype == jnp.float32
    assert pos_out.shape == (N_dst, 3) and batch_out.shape == (N_dst,)
    assert bool(jnp.all(jnp.isfinite(out)))

    # Loose-tolerance check vs. a pure-JAX f32 reference (bf16 matmuls + approx reciprocals
    # in the kernel give ~1e-3..1e-2 relative deviation).
    ref = _reference_forward(fused_w, residual, k_knn, x, pos, batch,
                             x_skip, pos_skip, batch_skip)
    max_err = float(jnp.max(jnp.abs(out - ref)))
    scale = float(jnp.max(jnp.abs(ref))) + 1e-6
    assert max_err <= 0.1 * scale + 0.05, f"max abs err {max_err} vs scale {scale}"

    print("KERNEL_OK")
</pallas_src>

<mosaic_0001>
module attributes {stable_mosaic.version = 11 : i64} {
  func.func @_fp_fused_kernel(%arg0: i32, %arg1: i32, %arg2: i32, %arg3: memref<8x128xf32, #tpu.memory_space<vmem>>, %arg4: memref<1x128xi32, #tpu.memory_space<vmem>>, %arg5: memref<128x8xbf16, #tpu.memory_space<vmem>>, %arg6: memref<32x3xf32, #tpu.memory_space<vmem>>, %arg7: memref<32x1xi32, #tpu.memory_space<vmem>>, %arg8: memref<32x8xf32, #tpu.memory_space<vmem>>, %arg9: memref<144x32xbf16, #tpu.memory_space<vmem>>, %arg10: memref<288x16xbf16, #tpu.memory_space<vmem>>, %arg11: memref<32x16xf32, #tpu.memory_space<vmem>>, %arg12: memref<32x8xf32, #tpu.memory_space<vmem>>, %arg13: memref<32x8xf32, #tpu.memory_space<vmem>>, %arg14: memref<32x1xf32, #tpu.memory_space<vmem>>) attributes {dimension_semantics = [#tpu.dimension_semantics<parallel>, #tpu.dimension_semantics<arbitrary>, #tpu.dimension_semantics<arbitrary>], iteration_bounds = array<i64: 1, 2, 1>, scalar_prefetch = 0 : i64, scratch_operands = 3 : i64, tpu.core_type = #tpu.core_type<tc>, window_params = [{transform_indices = @transform_0, window_bounds = array<i64: 8, 128>}, {transform_indices = @transform_1, window_bounds = array<i64: 1, 128>}, {transform_indices = @transform_2, window_bounds = array<i64: 128, 8>}, {transform_indices = @transform_3, window_bounds = array<i64: 32, 3>}, {transform_indices = @transform_4, window_bounds = array<i64: 32, 1>}, {transform_indices = @transform_5, window_bounds = array<i64: 32, 8>}, {pipeline_mode = #tpu.pipeline_mode<synchronous>, transform_indices = @transform_6, window_bounds = array<i64: 144, 32>}, {pipeline_mode = #tpu.pipeline_mode<synchronous>, transform_indices = @transform_7, window_bounds = array<i64: 288, 16>}, {transform_indices = @transform_8, window_bounds = array<i64: 32, 16>}]} {
    %c0_i32 = arith.constant 0 : i32
    %0 = arith.cmpi eq, %arg1, %c0_i32 : i32
    %1 = arith.extui %0 : i1 to i32
    %cst = arith.constant 1.000000e+30 : f32
    %c0_i32_0 = arith.constant 0 : i32
    %2 = arith.cmpi ne, %1, %c0_i32_0 : i32
    scf.if %2 {
      %c0_i32_3 = arith.constant 0 : i32
      %6 = arith.cmpi eq, %arg2, %c0_i32_3 : i32
      %7 = arith.extui %6 : i1 to i32
      %c0_i32_4 = arith.constant 0 : i32
      %8 = arith.cmpi ne, %7, %c0_i32_4 : i32
      scf.if %8 {
        %71 = vector.broadcast %cst : f32 to vector<32x8xf32>
        %c0_25 = arith.constant 0 : index
        %c0_26 = arith.constant 0 : index
        %72 = vector.load %arg12[%c0_25, %c0_26] : memref<32x8xf32, #tpu.memory_space<vmem>>, vector<32x8xf32>
        tpu.vector_store %arg12[%c0_25, %c0_26], %71 {strides = array<i32>} : memref<32x8xf32, #tpu.memory_space<vmem>>, vector<32x8xf32>,
      } else {
      }
      %c0 = arith.constant 0 : index
      %c0_5 = arith.constant 0 : index
      %9 = vector.load %arg6[%c0, %c0_5] : memref<32x3xf32, #tpu.memory_space<vmem>>, vector<32x3xf32>
      %cst_6 = arith.constant 0.000000e+00 : f32
      %10 = vector.broadcast %cst_6 : f32 to vector<32x128xf32>
      %11 = vector.extract_strided_slice %9 {offsets = [0, 0], sizes = [32, 1], strides = [1, 1]} : vector<32x3xf32> to vector<32x1xf32>
      %c0_7 = arith.constant 0 : index
      %c0_8 = arith.constant 0 : index
      %12 = vector.load %arg3[%c0_7, %c0_8] : memref<8x128xf32, #tpu.memory_space<vmem>>, vector<1x128xf32>
      %13 = vector.broadcast %11 : vector<32x1xf32> to vector<32x128xf32>
      %14 = vector.broadcast %12 : vector<1x128xf32> to vector<32x128xf32>
      %15 = arith.subf %13, %14 : vector<32x128xf32>
      %16 = arith.mulf %15, %15 : vector<32x128xf32>
      %17 = arith.addf %10, %16 : vector<32x128xf32>
      %18 = vector.extract_strided_slice %9 {offsets = [0, 1], sizes = [32, 1], strides = [1, 1]} : vector<32x3xf32> to vector<32x1xf32>
      %c1 = arith.constant 1 : index
      %c0_9 = arith.constant 0 : index
      %19 = vector.load %arg3[%c1, %c0_9] : memref<8x128xf32, #tpu.memory_space<vmem>>, vector<1x128xf32>
      %20 = vector.broadcast %18 : vector<32x1xf32> to vector<32x128xf32>
      %21 = vector.broadcast %19 : vector<1x128xf32> to vector<32x128xf32>
      %22 = arith.subf %20, %21 : vector<32x128xf32>
      %23 = arith.mulf %22, %22 : vector<32x128xf32>
      %24 = arith.addf %17, %23 : vector<32x128xf32>
      %25 = vector.extract_strided_slice %9 {offsets = [0, 2], sizes = [32, 1], strides = [1, 1]} : vector<32x3xf32> to vector<32x1xf32>
      %c2 = arith.constant 2 : index
      %c0_10 = arith.constant 0 : index
      %26 = vector.load %arg3[%c2, %c0_10] : memref<8x128xf32, #tpu.memory_space<vmem>>, vector<1x128xf32>
      %27 = vector.broadcast %25 : vector<32x1xf32> to vector<32x128xf32>
      %28 = vector.broadcast %26 : vector<1x128xf32> to vector<32x128xf32>
      %29 = arith.subf %27, %28 : vector<32x128xf32>
      %30 = arith.mulf %29, %29 : vector<32x128xf32>
      %31 = arith.addf %24, %30 : vector<32x128xf32>
      %c0_11 = arith.constant 0 : index
      %c0_12 = arith.constant 0 : index
      %32 = vector.load %arg7[%c0_11, %c0_12] : memref<32x1xi32, #tpu.memory_space<vmem>>, vector<32x1xi32>
      %c0_13 = arith.constant 0 : index
      %c0_14 = arith.constant 0 : index
      %33 = vector.load %arg4[%c0_13, %c0_14] : memref<1x128xi32, #tpu.memory_space<vmem>>, vector<1x128xi32>
      %34 = vector.broadcast %32 : vector<32x1xi32> to vector<32x128xi32>
      %35 = vector.broadcast %33 : vector<1x128xi32> to vector<32x128xi32>
      %36 = arith.cmpi eq, %34, %35 : vector<32x128xi32>
      %37 = vector.broadcast %cst : f32 to vector<32x128xf32>
      %38 = arith.select %36, %31, %37 : vector<32x128xi1>, vector<32x128xf32>
      %c0_15 = arith.constant 0 : index
      %c0_16 = arith.constant 0 : index
      %39 = vector.load %arg12[%c0_15, %c0_16] : memref<32x8xf32, #tpu.memory_space<vmem>>, vector<32x8xf32>
      %40 = tpu.concatenate %39, %38 in 1 : vector<32x8xf32>, vector<32x128xf32> -> vector<32x136xf32>
      %41 = tpu.iota {dimensions = array<i32: 1>} : vector<32x136xi32>
      %cst_17 = arith.constant dense<0x7F800000> : vector<32xf32>
      %42 = vector.multi_reduction <minimumf>, %40, %cst_17 [1] : vector<32x136xf32> to vector<32xf32>
      %43 = vector.shape_cast %42 : vector<32xf32> to vector<32x1xf32>
      %44 = vector.broadcast %43 : vector<32x1xf32> to vector<32x136xf32>
      %45 = arith.cmpf ole, %40, %44 : vector<32x136xf32>
      %c136_i32 = arith.constant 136 : i32
      %46 = vector.broadcast %c136_i32 : i32 to vector<32x136xi32>
      %47 = arith.select %45, %41, %46 : vector<32x136xi1>, vector<32x136xi32>
      %cst_18 = arith.constant dense<2147483647> : vector<32xi32>
      %48 = vector.multi_reduction <minsi>, %47, %cst_18 [1] : vector<32x136xi32> to vector<32xi32>
      %49 = vector.shape_cast %48 : vector<32xi32> to vector<32x1xi32>
      %50 = vector.broadcast %49 : vector<32x1xi32> to vector<32x136xi32>
      %51 = arith.cmpi eq, %41, %50 : vector<32x136xi32>
      %52 = vector.broadcast %cst : f32 to vector<32x136xf32>
      %53 = arith.select %51, %52, %40 : vector<32x136xi1>, vector<32x136xf32>
      %cst_19 = arith.constant dense<0x7F800000> : vector<32xf32>
      %54 = vector.multi_reduction <minimumf>, %53, %cst_19 [1] : vector<32x136xf32> to vector<32xf32>
      %55 = vector.shape_cast %54 : vector<32xf32> to vector<32x1xf32>
      %56 = vector.broadcast %55 : vector<32x1xf32> to vector<32x136xf32>
      %57 = arith.cmpf ole, %53, %56 : vector<32x136xf32>
      %c136_i32_20 = arith.constant 136 : i32
      %58 = vector.broadcast %c136_i32_20 : i32 to vector<32x136xi32>
      %59 = arith.select %57, %41, %58 : vector<32x136xi1>, vector<32x136xi32>
      %cst_21 = arith.constant dense<2147483647> : vector<32xi32>
      %60 = vector.multi_reduction <minsi>, %59, %cst_21 [1] : vector<32x136xi32> to vector<32xi32>
      %61 = vector.shape_cast %60 : vector<32xi32> to vector<32x1xi32>
      %62 = vector.broadcast %61 : vector<32x1xi32> to vector<32x136xi32>
      %63 = arith.cmpi eq, %41, %62 : vector<32x136xi32>
      %64 = vector.broadcast %cst : f32 to vector<32x136xf32>
      %65 = arith.select %63, %64, %53 : vector<32x136xi1>, vector<32x136xf32>
      %cst_22 = arith.constant dense<0x7F800000> : vector<32xf32>
      %66 = vector.multi_reduction <minimumf>, %65, %cst_22 [1] : vector<32x136xf32> to vector<32xf32>
      %67 = vector.shape_cast %66 : vector<32xf32> to vector<32x1xf32>
      %68 = vector.broadcast %cst : f32 to vector<32x5xf32>
      %69 = tpu.concatenate %43, %55, %67, %68 in 1 : vector<32x1xf32>, vector<32x1xf32>, vector<32x1xf32>, vector<32x5xf32> -> vector<32x8xf32>
      %c0_23 = arith.constant 0 : index
      %c0_24 = arith.constant 0 : index
      %70 = vector.load %arg12[%c0_23, %c0_24] : memref<32x8xf32, #tpu.memory_space<vmem>>, vector<32x8xf32>
      tpu.vector_store %arg12[%c0_23, %c0_24], %69 {strides = array<i32>} : memref<32x8xf32, #tpu.memory_space<vmem>>, vector<32x8xf32>,
    } else {
    }
    %c1_i32 = arith.constant 1 : i32
    %3 = arith.cmpi eq, %arg1, %c1_i32 : i32
    %4 = arith.extui %3 : i1 to i32
    %cst_1 = arith.constant 1.000000e+30 : f32
    %c0_i32_2 = arith.constant 0 : i32
    %5 = arith.cmpi ne, %4, %c0_i32_2 : i32
    scf.if %5 {
      %c0_i32_3 = arith.constant 0 : i32
      %6 = arith.cmpi eq, %arg2, %c0_i32_3 : i32
      %7 = arith.extui %6 : i1 to i32
      %c0_i32_4 = arith.constant 0 : i32
      %8 = arith.cmpi ne, %7, %c0_i32_4 : i32
      scf.if %8 {
        %cst_33 = arith.constant 0.000000e+00 : f32
        %61 = vector.broadcast %cst_33 : f32 to vector<32x8xf32>
        %c0_34 = arith.constant 0 : index
        %c0_35 = arith.constant 0 : index
        %62 = vector.load %arg13[%c0_34, %c0_35] : memref<32x8xf32, #tpu.memory_space<vmem>>, vector<32x8xf32>
        tpu.vector_store %arg13[%c0_34, %c0_35], %61 {strides = array<i32>} : memref<32x8xf32, #tpu.memory_space<vmem>>, vector<32x8xf32>,
        %cst_36 = arith.constant 0.000000e+00 : f32
        %63 = vector.broadcast %cst_36 : f32 to vector<32x1xf32>
        %c0_37 = arith.constant 0 : index
        %c0_38 = arith.constant 0 : index
        %64 = vector.load %arg14[%c0_37, %c0_38] : memref<32x1xf32, #tpu.memory_space<vmem>>, vector<32x1xf32>
        tpu.vector_store %arg14[%c0_37, %c0_38], %63 {strides = array<i32>} : memref<32x1xf32, #tpu.memory_space<vmem>>, vector<32x1xf32>,
      } else {
      }
      %c0 = arith.constant 0 : index
      %c0_5 = arith.constant 0 : index
      %9 = vector.load %arg6[%c0, %c0_5] : memref<32x3xf32, #tpu.memory_space<vmem>>, vector<32x3xf32>
      %cst_6 = arith.constant 0.000000e+00 : f32
      %10 = vector.broadcast %cst_6 : f32 to vector<32x128xf32>
      %11 = vector.extract_strided_slice %9 {offsets = [0, 0], sizes = [32, 1], strides = [1, 1]} : vector<32x3xf32> to vector<32x1xf32>
      %c0_7 = arith.constant 0 : index
      %c0_8 = arith.constant 0 : index
      %12 = vector.load %arg3[%c0_7, %c0_8] : memref<8x128xf32, #tpu.memory_space<vmem>>, vector<1x128xf32>
      %13 = vector.broadcast %11 : vector<32x1xf32> to vector<32x128xf32>
      %14 = vector.broadcast %12 : vector<1x128xf32> to vector<32x128xf32>
      %15 = arith.subf %13, %14 : vector<32x128xf32>
      %16 = arith.mulf %15, %15 : vector<32x128xf32>
      %17 = arith.addf %10, %16 : vector<32x128xf32>
      %18 = vector.extract_strided_slice %9 {offsets = [0, 1], sizes = [32, 1], strides = [1, 1]} : vector<32x3xf32> to vector<32x1xf32>
      %c1 = arith.constant 1 : index
      %c0_9 = arith.constant 0 : index
      %19 = vector.load %arg3[%c1, %c0_9] : memref<8x128xf32, #tpu.memory_space<vmem>>, vector<1x128xf32>
      %20 = vector.broadcast %18 : vector<32x1xf32> to vector<32x128xf32>
      %21 = vector.broadcast %19 : vector<1x128xf32> to vector<32x128xf32>
      %22 = arith.subf %20, %21 : vector<32x128xf32>
      %23 = arith.mulf %22, %22 : vector<32x128xf32>
      %24 = arith.addf %17, %23 : vector<32x128xf32>
      %25 = vector.extract_strided_slice %9 {offsets = [0, 2], sizes = [32, 1], strides = [1, 1]} : vector<32x3xf32> to vector<32x1xf32>
      %c2 = arith.constant 2 : index
      %c0_10 = arith.constant 0 : index
      %26 = vector.load %arg3[%c2, %c0_10] : memref<8x128xf32, #tpu.memory_space<vmem>>, vector<1x128xf32>
      %27 = vector.broadcast %25 : vector<32x1xf32> to vector<32x128xf32>
      %28 = vector.broadcast %26 : vector<1x128xf32> to vector<32x128xf32>
      %29 = arith.subf %27, %28 : vector<32x128xf32>
      %30 = arith.mulf %29, %29 : vector<32x128xf32>
      %31 = arith.addf %24, %30 : vector<32x128xf32>
      %c0_11 = arith.constant 0 : index
      %c0_12 = arith.constant 0 : index
      %32 = vector.load %arg7[%c0_11, %c0_12] : memref<32x1xi32, #tpu.memory_space<vmem>>, vector<32x1xi32>
      %c0_13 = arith.constant 0 : index
      %c0_14 = arith.constant 0 : index
      %33 = vector.load %arg4[%c0_13, %c0_14] : memref<1x128xi32, #tpu.memory_space<vmem>>, vector<1x128xi32>
      %34 = vector.broadcast %32 : vector<32x1xi32> to vector<32x128xi32>
      %35 = vector.broadcast %33 : vector<1x128xi32> to vector<32x128xi32>
      %36 = arith.cmpi eq, %34, %35 : vector<32x128xi32>
      %37 = vector.broadcast %cst_1 : f32 to vector<32x128xf32>
      %38 = arith.select %36, %31, %37 : vector<32x128xi1>, vector<32x128xf32>
      %c0_15 = arith.constant 0 : index
      %c2_16 = arith.constant 2 : index
      %39 = vector.load %arg12[%c0_15, %c2_16] : memref<32x8xf32, #tpu.memory_space<vmem>>, vector<32x1xf32>
      %40 = vector.broadcast %39 : vector<32x1xf32> to vector<32x128xf32>
      %41 = arith.cmpf ole, %38, %40 : vector<32x128xf32>
      %cst_17 = arith.constant 1.000000e-16 : f32
      %42 = vector.broadcast %cst_17 : f32 to vector<32x128xf32>
      %43 = arith.maximumf %38, %42 : vector<32x128xf32>
      %44 = tpu.reciprocal %43 {approx = true} : vector<32x128xf32> -> vector<32x128xf32>
      %cst_18 = arith.constant 0.000000e+00 : f32
      %45 = vector.broadcast %cst_18 : f32 to vector<32x128xf32>
      %46 = arith.select %41, %44, %45 : vector<32x128xi1>, vector<32x128xf32>
      %c0_19 = arith.constant 0 : index
      %c0_20 = arith.constant 0 : index
      %47 = vector.load %arg14[%c0_19, %c0_20] : memref<32x1xf32, #tpu.memory_space<vmem>>, vector<32x1xf32>
      %cst_21 = arith.constant dense<0.000000e+00> : vector<32xf32>
      %48 = vector.multi_reduction <add>, %46, %cst_21 [1] : vector<32x128xf32> to vector<32xf32>
      %49 = vector.shape_cast %48 : vector<32xf32> to vector<32x1xf32>
      %50 = arith.addf %47, %49 : vector<32x1xf32>
      %c0_22 = arith.constant 0 : index
      %c0_23 = arith.constant 0 : index
      %51 = vector.load %arg14[%c0_22, %c0_23] : memref<32x1xf32, #tpu.memory_space<vmem>>, vector<32x1xf32>
      tpu.vector_store %arg14[%c0_22, %c0_23], %50 {strides = array<i32>} : memref<32x1xf32, #tpu.memory_space<vmem>>, vector<32x1xf32>,
      %c0_24 = arith.constant 0 : index
      %c0_25 = arith.constant 0 : index
      %52 = vector.load %arg13[%c0_24, %c0_25] : memref<32x8xf32, #tpu.memory_space<vmem>>, vector<32x8xf32>
      %53 = arith.truncf %46 : vector<32x128xf32> to vector<32x128xbf16>
      %c0_26 = arith.constant 0 : index
      %c0_27 = arith.constant 0 : index
      %54 = vector.load %arg5[%c0_26, %c0_27] : memref<128x8xbf16, #tpu.memory_space<vmem>>, vector<128x8xbf16>
      %cst_28 = arith.constant dense<0.000000e+00> : vector<32x8xf32>
      %55 = tpu.matmul %53, %54, %cst_28 {dimension_numbers = #tpu.dot_dimension_numbers<[1], [0], [0], [1], [0, 0, 1, 1], [], []>} : vector<32x128xbf16>, vector<128x8xbf16>, vector<32x8xf32> -> vector<32x8xf32>
      %56 = arith.addf %52, %55 : vector<32x8xf32>
      %c0_29 = arith.constant 0 : index
      %c0_30 = arith.constant 0 : index
      %57 = vector.load %arg13[%c0_29, %c0_30] : memref<32x8xf32, #tpu.memory_space<vmem>>, vector<32x8xf32>
      tpu.vector_store %arg13[%c0_29, %c0_30], %56 {strides = array<i32>} : memref<32x8xf32, #tpu.memory_space<vmem>>, vector<32x8xf32>,
      %c0_i32_31 = arith.constant 0 : i32
      %58 = arith.cmpi eq, %arg2, %c0_i32_31 : i32
      %59 = arith.extui %58 : i1 to i32
      %c0_i32_32 = arith.constant 0 : i32
      %60 = arith.cmpi ne, %59, %c0_i32_32 : i32
      scf.if %60 {
        %c0_33 = arith.constant 0 : index
        %c0_34 = arith.constant 0 : index
        %61 = vector.load %arg13[%c0_33, %c0_34] : memref<32x8xf32, #tpu.memory_space<vmem>>, vector<32x8xf32>
        %c0_35 = arith.constant 0 : index
        %c0_36 = arith.constant 0 : index
        %62 = vector.load %arg14[%c0_35, %c0_36] : memref<32x1xf32, #tpu.memory_space<vmem>>, vector<32x1xf32>
        %63 = tpu.reciprocal %62 {approx = true} : vector<32x1xf32> -> vector<32x1xf32>
        %64 = vector.broadcast %63 : vector<32x1xf32> to vector<32x8xf32>
        %65 = arith.mulf %61, %64 : vector<32x8xf32>
        %c0_37 = arith.constant 0 : index
        %c0_38 = arith.constant 0 : index
        %66 = vector.load %arg8[%c0_37, %c0_38] : memref<32x8xf32, #tpu.memory_space<vmem>>, vector<32x8xf32>
        %67 = tpu.concatenate %65, %66 in 1 : vector<32x8xf32>, vector<32x8xf32> -> vector<32x16xf32>
        %cst_39 = arith.constant 0.000000e+00 : f32
        %68 = vector.broadcast %cst_39 : f32 to vector<32x16xf32>
        %69 = arith.subf %68, %67 : vector<32x16xf32>
        %70 = math.exp %69 : vector<32x16xf32>
        %cst_40 = arith.constant 1.000000e+00 : f32
        %71 = vector.broadcast %cst_40 : f32 to vector<32x16xf32>
        %72 = arith.addf %71, %70 : vector<32x16xf32>
        %73 = tpu.reciprocal %72 {approx = true} : vector<32x16xf32> -> vector<32x16xf32>
        %74 = arith.mulf %67, %73 : vector<32x16xf32>
        %cst_41 = arith.constant -2.200000e+00 : f32
        %75 = vector.broadcast %cst_41 : f32 to vector<32x16xf32>
        %76 = arith.cmpf oge, %67, %75 : vector<32x16xf32>
        %cst_42 = arith.constant -1.800000e+00 : f32
        %77 = vector.broadcast %cst_42 : f32 to vector<32x16xf32>
        %78 = arith.cmpf olt, %67, %77 : vector<32x16xf32>
        %79 = arith.andi %76, %78 : vector<32x16xi1>
        %cst_43 = arith.constant 1.000000e+00 : f32
        %cst_44 = arith.constant 0.000000e+00 : f32
        %80 = vector.broadcast %cst_43 : f32 to vector<32x16xf32>
        %81 = vector.broadcast %cst_44 : f32 to vector<32x16xf32>
        %82 = arith.select %79, %80, %81 : vector<32x16xi1>, vector<32x16xf32>
        %cst_45 = arith.constant -1.800000e+00 : f32
        %83 = vector.broadcast %cst_45 : f32 to vector<32x16xf32>
        %84 = arith.cmpf oge, %67, %83 : vector<32x16xf32>
        %cst_46 = arith.constant -1.400000e+00 : f32
        %85 = vector.broadcast %cst_46 : f32 to vector<32x16xf32>
        %86 = arith.cmpf olt, %67, %85 : vector<32x16xf32>
        %87 = arith.andi %84, %86 : vector<32x16xi1>
        %cst_47 = arith.constant 1.000000e+00 : f32
        %cst_48 = arith.constant 0.000000e+00 : f32
        %88 = vector.broadcast %cst_47 : f32 to vector<32x16xf32>
        %89 = vector.broadcast %cst_48 : f32 to vector<32x16xf32>
        %90 = arith.select %87, %88, %89 : vector<32x16xi1>, vector<32x16xf32>
        %cst_49 = arith.constant -1.400000e+00 : f32
        %91 = vector.broadcast %cst_49 : f32 to vector<32x16xf32>
        %92 = arith.cmpf oge, %67, %91 : vector<32x16xf32>
        %cst_50 = arith.constant -1.000000e+00 : f32
        %93 = vector.broadcast %cst_50 : f32 to vector<32x16xf32>
        %94 = arith.cmpf olt, %67, %93 : vector<32x16xf32>
        %95 = arith.andi %92, %94 : vector<32x16xi1>
        %cst_51 = arith.constant 1.000000e+00 : f32
        %cst_52 = arith.constant 0.000000e+00 : f32
        %96 = vector.broadcast %cst_51 : f32 to vector<32x16xf32>
        %97 = vector.broadcast %cst_52 : f32 to vector<32x16xf32>
        %98 = arith.select %95, %96, %97 : vector<32x16xi1>, vector<32x16xf32>
        %cst_53 = arith.constant -1.000000e+00 : f32
        %99 = vector.broadcast %cst_53 : f32 to vector<32x16xf32>
        %100 = arith.cmpf oge, %67, %99 : vector<32x16xf32>
        %cst_54 = arith.constant -6.000000e-01 : f32
        %101 = vector.broadcast %cst_54 : f32 to vector<32x16xf32>
        %102 = arith.cmpf olt, %67, %101 : vector<32x16xf32>
        %103 = arith.andi %100, %102 : vector<32x16xi1>
        %cst_55 = arith.constant 1.000000e+00 : f32
        %cst_56 = arith.constant 0.000000e+00 : f32
        %104 = vector.broadcast %cst_55 : f32 to vector<32x16xf32>
        %105 = vector.broadcast %cst_56 : f32 to vector<32x16xf32>
        %106 = arith.select %103, %104, %105 : vector<32x16xi1>, vector<32x16xf32>
        %cst_57 = arith.constant -6.000000e-01 : f32
        %107 = vector.broadcast %cst_57 : f32 to vector<32x16xf32>
        %108 = arith.cmpf oge, %67, %107 : vector<32x16xf32>
        %cst_58 = arith.constant -2.000000e-01 : f32
        %109 = vector.broadcast %cst_58 : f32 to vector<32x16xf32>
        %110 = arith.cmpf olt, %67, %109 : vector<32x16xf32>
        %111 = arith.andi %108, %110 : vector<32x16xi1>
        %cst_59 = arith.constant 1.000000e+00 : f32
        %cst_60 = arith.constant 0.000000e+00 : f32
        %112 = vector.broadcast %cst_59 : f32 to vector<32x16xf32>
        %113 = vector.broadcast %cst_60 : f32 to vector<32x16xf32>
        %114 = arith.select %111, %112, %113 : vector<32x16xi1>, vector<32x16xf32>
        %cst_61 = arith.constant -2.000000e-01 : f32
        %115 = vector.broadcast %cst_61 : f32 to vector<32x16xf32>
        %116 = arith.cmpf oge, %67, %115 : vector<32x16xf32>
        %cst_62 = arith.constant 2.000000e-01 : f32
        %117 = vector.broadcast %cst_62 : f32 to vector<32x16xf32>
        %118 = arith.cmpf olt, %67, %117 : vector<32x16xf32>
        %119 = arith.andi %116, %118 : vector<32x16xi1>
        %cst_63 = arith.constant 1.000000e+00 : f32
        %cst_64 = arith.constant 0.000000e+00 : f32
        %120 = vector.broadcast %cst_63 : f32 to vector<32x16xf32>
        %121 = vector.broadcast %cst_64 : f32 to vector<32x16xf32>
        %122 = arith.select %119, %120, %121 : vector<32x16xi1>, vector<32x16xf32>
        %cst_65 = arith.constant 2.000000e-01 : f32
        %123 = vector.broadcast %cst_65 : f32 to vector<32x16xf32>
        %124 = arith.cmpf oge, %67, %123 : vector<32x16xf32>
        %cst_66 = arith.constant 6.000000e-01 : f32
        %125 = vector.broadcast %cst_66 : f32 to vector<32x16xf32>
        %126 = arith.cmpf olt, %67, %125 : vector<32x16xf32>
        %127 = arith.andi %124, %126 : vector<32x16xi1>
        %cst_67 = arith.constant 1.000000e+00 : f32
        %cst_68 = arith.constant 0.000000e+00 : f32
        %128 = vector.broadcast %cst_67 : f32 to vector<32x16xf32>
        %129 = vector.broadcast %cst_68 : f32 to vector<32x16xf32>
        %130 = arith.select %127, %128, %129 : vector<32x16xi1>, vector<32x16xf32>
        %cst_69 = arith.constant 6.000000e-01 : f32
        %131 = vector.broadcast %cst_69 : f32 to vector<32x16xf32>
        %132 = arith.cmpf oge, %67, %131 : vector<32x16xf32>
        %cst_70 = arith.constant 1.000000e+00 : f32
        %133 = vector.broadcast %cst_70 : f32 to vector<32x16xf32>
        %134 = arith.cmpf olt, %67, %133 : vector<32x16xf32>
        %135 = arith.andi %132, %134 : vector<32x16xi1>
        %cst_71 = arith.constant 1.000000e+00 : f32
        %cst_72 = arith.constant 0.000000e+00 : f32
        %136 = vector.broadcast %cst_71 : f32 to vector<32x16xf32>
        %137 = vector.broadcast %cst_72 : f32 to vector<32x16xf32>
        %138 = arith.select %135, %136, %137 : vector<32x16xi1>, vector<32x16xf32>
        %cst_73 = arith.constant 1.000000e+00 : f32
        %139 = vector.broadcast %cst_73 : f32 to vector<32x16xf32>
        %140 = arith.cmpf oge, %67, %139 : vector<32x16xf32>
        %cst_74 = arith.constant 1.400000e+00 : f32
        %141 = vector.broadcast %cst_74 : f32 to vector<32x16xf32>
        %142 = arith.cmpf olt, %67, %141 : vector<32x16xf32>
        %143 = arith.andi %140, %142 : vector<32x16xi1>
        %cst_75 = arith.constant 1.000000e+00 : f32
        %cst_76 = arith.constant 0.000000e+00 : f32
        %144 = vector.broadcast %cst_75 : f32 to vector<32x16xf32>
        %145 = vector.broadcast %cst_76 : f32 to vector<32x16xf32>
        %146 = arith.select %143, %144, %145 : vector<32x16xi1>, vector<32x16xf32>
        %cst_77 = arith.constant 1.400000e+00 : f32
        %147 = vector.broadcast %cst_77 : f32 to vector<32x16xf32>
        %148 = arith.cmpf oge, %67, %147 : vector<32x16xf32>
        %cst_78 = arith.constant 1.800000e+00 : f32
        %149 = vector.broadcast %cst_78 : f32 to vector<32x16xf32>
        %150 = arith.cmpf olt, %67, %149 : vector<32x16xf32>
        %151 = arith.andi %148, %150 : vector<32x16xi1>
        %cst_79 = arith.constant 1.000000e+00 : f32
        %cst_80 = arith.constant 0.000000e+00 : f32
        %152 = vector.broadcast %cst_79 : f32 to vector<32x16xf32>
        %153 = vector.broadcast %cst_80 : f32 to vector<32x16xf32>
        %154 = arith.select %151, %152, %153 : vector<32x16xi1>, vector<32x16xf32>
        %cst_81 = arith.constant 1.800000e+00 : f32
        %155 = vector.broadcast %cst_81 : f32 to vector<32x16xf32>
        %156 = arith.cmpf oge, %67, %155 : vector<32x16xf32>
        %cst_82 = arith.constant 2.200000e+00 : f32
        %157 = vector.broadcast %cst_82 : f32 to vector<32x16xf32>
        %158 = arith.cmpf olt, %67, %157 : vector<32x16xf32>
        %159 = arith.andi %156, %158 : vector<32x16xi1>
        %cst_83 = arith.constant 1.000000e+00 : f32
        %cst_84 = arith.constant 0.000000e+00 : f32
        %160 = vector.broadcast %cst_83 : f32 to vector<32x16xf32>
        %161 = vector.broadcast %cst_84 : f32 to vector<32x16xf32>
        %162 = arith.select %159, %160, %161 : vector<32x16xi1>, vector<32x16xf32>
        %cst_85 = arith.constant -2.200000e+00 : f32
        %163 = vector.broadcast %cst_85 : f32 to vector<32x16xf32>
        %164 = arith.subf %67, %163 : vector<32x16xf32>
        %cst_86 = arith.constant 2.500000e+00 : f32
        %165 = vector.broadcast %cst_86 : f32 to vector<32x16xf32>
        %166 = arith.mulf %164, %165 : vector<32x16xf32>
        %167 = arith.mulf %166, %82 : vector<32x16xf32>
        %cst_87 = arith.constant -1.400000e+00 : f32
        %168 = vector.broadcast %cst_87 : f32 to vector<32x16xf32>
        %169 = arith.subf %168, %67 : vector<32x16xf32>
        %cst_88 = arith.constant 2.500000e+00 : f32
        %170 = vector.broadcast %cst_88 : f32 to vector<32x16xf32>
        %171 = arith.mulf %169, %170 : vector<32x16xf32>
        %172 = arith.mulf %171, %90 : vector<32x16xf32>
        %173 = arith.addf %167, %172 : vector<32x16xf32>
        %cst_89 = arith.constant -1.800000e+00 : f32
        %174 = vector.broadcast %cst_89 : f32 to vector<32x16xf32>
        %175 = arith.subf %67, %174 : vector<32x16xf32>
        %cst_90 = arith.constant 2.500000e+00 : f32
        %176 = vector.broadcast %cst_90 : f32 to vector<32x16xf32>
        %177 = arith.mulf %175, %176 : vector<32x16xf32>
        %178 = arith.mulf %177, %90 : vector<32x16xf32>
        %cst_91 = arith.constant -1.000000e+00 : f32
        %179 = vector.broadcast %cst_91 : f32 to vector<32x16xf32>
        %180 = arith.subf %179, %67 : vector<32x16xf32>
        %cst_92 = arith.constant 2.500000e+00 : f32
        %181 = vector.broadcast %cst_92 : f32 to vector<32x16xf32>
        %182 = arith.mulf %180, %181 : vector<32x16xf32>
        %183 = arith.mulf %182, %98 : vector<32x16xf32>
        %184 = arith.addf %178, %183 : vector<32x16xf32>
        %cst_93 = arith.constant -1.400000e+00 : f32
        %185 = vector.broadcast %cst_93 : f32 to vector<32x16xf32>
        %186 = arith.subf %67, %185 : vector<32x16xf32>
        %cst_94 = arith.constant 2.500000e+00 : f32
        %187 = vector.broadcast %cst_94 : f32 to vector<32x16xf32>
        %188 = arith.mulf %186, %187 : vector<32x16xf32>
        %189 = arith.mulf %188, %98 : vector<32x16xf32>
        %cst_95 = arith.constant -6.000000e-01 : f32
        %190 = vector.broadcast %cst_95 : f32 to vector<32x16xf32>
        %191 = arith.subf %190, %67 : vector<32x16xf32>
        %cst_96 = arith.constant 2.500000e+00 : f32
        %192 = vector.broadcast %cst_96 : f32 to vector<32x16xf32>
        %193 = arith.mulf %191, %192 : vector<32x16xf32>
        %194 = arith.mulf %193, %106 : vector<32x16xf32>
        %195 = arith.addf %189, %194 : vector<32x16xf32>
        %cst_97 = arith.constant -1.000000e+00 : f32
        %196 = vector.broadcast %cst_97 : f32 to vector<32x16xf32>
        %197 = arith.subf %67, %196 : vector<32x16xf32>
        %cst_98 = arith.constant 2.500000e+00 : f32
        %198 = vector.broadcast %cst_98 : f32 to vector<32x16xf32>
        %199 = arith.mulf %197, %198 : vector<32x16xf32>
        %200 = arith.mulf %199, %106 : vector<32x16xf32>
        %cst_99 = arith.constant -2.000000e-01 : f32
        %201 = vector.broadcast %cst_99 : f32 to vector<32x16xf32>
        %202 = arith.subf %201, %67 : vector<32x16xf32>
        %cst_100 = arith.constant 2.500000e+00 : f32
        %203 = vector.broadcast %cst_100 : f32 to vector<32x16xf32>
        %204 = arith.mulf %202, %203 : vector<32x16xf32>
        %205 = arith.mulf %204, %114 : vector<32x16xf32>
        %206 = arith.addf %200, %205 : vector<32x16xf32>
        %cst_101 = arith.constant -6.000000e-01 : f32
        %207 = vector.broadcast %cst_101 : f32 to vector<32x16xf32>
        %208 = arith.subf %67, %207 : vector<32x16xf32>
        %cst_102 = arith.constant 2.500000e+00 : f32
        %209 = vector.broadcast %cst_102 : f32 to vector<32x16xf32>
        %210 = arith.mulf %208, %209 : vector<32x16xf32>
        %211 = arith.mulf %210, %114 : vector<32x16xf32>
        %cst_103 = arith.constant 2.000000e-01 : f32
        %212 = vector.broadcast %cst_103 : f32 to vector<32x16xf32>
        %213 = arith.subf %212, %67 : vector<32x16xf32>
        %cst_104 = arith.constant 2.500000e+00 : f32
        %214 = vector.broadcast %cst_104 : f32 to vector<32x16xf32>
        %215 = arith.mulf %213, %214 : vector<32x16xf32>
        %216 = arith.mulf %215, %122 : vector<32x16xf32>
        %217 = arith.addf %211, %216 : vector<32x16xf32>
        %cst_105 = arith.constant -2.000000e-01 : f32
        %218 = vector.broadcast %cst_105 : f32 to vector<32x16xf32>
        %219 = arith.subf %67, %218 : vector<32x16xf32>
        %cst_106 = arith.constant 2.500000e+00 : f32
        %220 = vector.broadcast %cst_106 : f32 to vector<32x16xf32>
        %221 = arith.mulf %219, %220 : vector<32x16xf32>
        %222 = arith.mulf %221, %122 : vector<32x16xf32>
        %cst_107 = arith.constant 6.000000e-01 : f32
        %223 = vector.broadcast %cst_107 : f32 to vector<32x16xf32>
        %224 = arith.subf %223, %67 : vector<32x16xf32>
        %cst_108 = arith.constant 2.500000e+00 : f32
        %225 = vector.broadcast %cst_108 : f32 to vector<32x16xf32>
        %226 = arith.mulf %224, %225 : vector<32x16xf32>
        %227 = arith.mulf %226, %130 : vector<32x16xf32>
        %228 = arith.addf %222, %227 : vector<32x16xf32>
        %cst_109 = arith.constant 2.000000e-01 : f32
        %229 = vector.broadcast %cst_109 : f32 to vector<32x16xf32>
        %230 = arith.subf %67, %229 : vector<32x16xf32>
        %cst_110 = arith.constant 2.500000e+00 : f32
        %231 = vector.broadcast %cst_110 : f32 to vector<32x16xf32>
        %232 = arith.mulf %230, %231 : vector<32x16xf32>
        %233 = arith.mulf %232, %130 : vector<32x16xf32>
        %cst_111 = arith.constant 1.000000e+00 : f32
        %234 = vector.broadcast %cst_111 : f32 to vector<32x16xf32>
        %235 = arith.subf %234, %67 : vector<32x16xf32>
        %cst_112 = arith.constant 2.500000e+00 : f32
        %236 = vector.broadcast %cst_112 : f32 to vector<32x16xf32>
        %237 = arith.mulf %235, %236 : vector<32x16xf32>
        %238 = arith.mulf %237, %138 : vector<32x16xf32>
        %239 = arith.addf %233, %238 : vector<32x16xf32>
        %cst_113 = arith.constant 6.000000e-01 : f32
        %240 = vector.broadcast %cst_113 : f32 to vector<32x16xf32>
        %241 = arith.subf %67, %240 : vector<32x16xf32>
        %cst_114 = arith.constant 2.500000e+00 : f32
        %242 = vector.broadcast %cst_114 : f32 to vector<32x16xf32>
        %243 = arith.mulf %241, %242 : vector<32x16xf32>
        %244 = arith.mulf %243, %138 : vector<32x16xf32>
        %cst_115 = arith.constant 1.400000e+00 : f32
        %245 = vector.broadcast %cst_115 : f32 to vector<32x16xf32>
        %246 = arith.subf %245, %67 : vector<32x16xf32>
        %cst_116 = arith.constant 2.500000e+00 : f32
        %247 = vector.broadcast %cst_116 : f32 to vector<32x16xf32>
        %248 = arith.mulf %246, %247 : vector<32x16xf32>
        %249 = arith.mulf %248, %146 : vector<32x16xf32>
        %250 = arith.addf %244, %249 : vector<32x16xf32>
        %cst_117 = arith.constant 1.000000e+00 : f32
        %251 = vector.broadcast %cst_117 : f32 to vector<32x16xf32>
        %252 = arith.subf %67, %251 : vector<32x16xf32>
        %cst_118 = arith.constant 2.500000e+00 : f32
        %253 = vector.broadcast %cst_118 : f32 to vector<32x16xf32>
        %254 = arith.mulf %252, %253 : vector<32x16xf32>
        %255 = arith.mulf %254, %146 : vector<32x16xf32>
        %cst_119 = arith.constant 1.800000e+00 : f32
        %256 = vector.broadcast %cst_119 : f32 to vector<32x16xf32>
        %257 = arith.subf %256, %67 : vector<32x16xf32>
        %cst_120 = arith.constant 2.500000e+00 : f32
        %258 = vector.broadcast %cst_120 : f32 to vector<32x16xf32>
        %259 = arith.mulf %257, %258 : vector<32x16xf32>
        %260 = arith.mulf %259, %154 : vector<32x16xf32>
        %261 = arith.addf %255, %260 : vector<32x16xf32>
        %cst_121 = arith.constant 1.400000e+00 : f32
        %262 = vector.broadcast %cst_121 : f32 to vector<32x16xf32>
        %263 = arith.subf %67, %262 : vector<32x16xf32>
        %cst_122 = arith.constant 2.500000e+00 : f32
        %264 = vector.broadcast %cst_122 : f32 to vector<32x16xf32>
        %265 = arith.mulf %263, %264 : vector<32x16xf32>
        %266 = arith.mulf %265, %154 : vector<32x16xf32>
        %cst_123 = arith.constant 2.200000e+00 : f32
        %267 = vector.broadcast %cst_123 : f32 to vector<32x16xf32>
        %268 = arith.subf %267, %67 : vector<32x16xf32>
        %cst_124 = arith.constant 2.500000e+00 : f32
        %269 = vector.broadcast %cst_124 : f32 to vector<32x16xf32>
        %270 = arith.mulf %268, %269 : vector<32x16xf32>
        %271 = arith.mulf %270, %162 : vector<32x16xf32>
        %272 = arith.addf %266, %271 : vector<32x16xf32>
        %cst_125 = arith.constant -2.200000e+00 : f32
        %273 = vector.broadcast %cst_125 : f32 to vector<32x16xf32>
        %274 = arith.subf %67, %273 : vector<32x16xf32>
        %cst_126 = arith.constant 1.250000e+00 : f32
        %275 = vector.broadcast %cst_126 : f32 to vector<32x16xf32>
        %276 = arith.mulf %274, %275 : vector<32x16xf32>
        %277 = arith.mulf %276, %173 : vector<32x16xf32>
        %cst_127 = arith.constant -1.000000e+00 : f32
        %278 = vector.broadcast %cst_127 : f32 to vector<32x16xf32>
        %279 = arith.subf %278, %67 : vector<32x16xf32>
        %cst_128 = arith.constant 1.250000e+00 : f32
        %280 = vector.broadcast %cst_128 : f32 to vector<32x16xf32>
        %281 = arith.mulf %279, %280 : vector<32x16xf32>
        %282 = arith.mulf %281, %184 : vector<32x16xf32>
        %283 = arith.addf %277, %282 : vector<32x16xf32>
        %cst_129 = arith.constant -1.800000e+00 : f32
        %284 = vector.broadcast %cst_129 : f32 to vector<32x16xf32>
        %285 = arith.subf %67, %284 : vector<32x16xf32>
        %cst_130 = arith.constant 1.250000e+00 : f32
        %286 = vector.broadcast %cst_130 : f32 to vector<32x16xf32>
        %287 = arith.mulf %285, %286 : vector<32x16xf32>
        %288 = arith.mulf %287, %184 : vector<32x16xf32>
        %cst_131 = arith.constant -6.000000e-01 : f32
        %289 = vector.broadcast %cst_131 : f32 to vector<32x16xf32>
        %290 = arith.subf %289, %67 : vector<32x16xf32>
        %cst_132 = arith.constant 1.250000e+00 : f32
        %291 = vector.broadcast %cst_132 : f32 to vector<32x16xf32>
        %292 = arith.mulf %290, %291 : vector<32x16xf32>
        %293 = arith.mulf %292, %195 : vector<32x16xf32>
        %294 = arith.addf %288, %293 : vector<32x16xf32>
        %cst_133 = arith.constant -1.400000e+00 : f32
        %295 = vector.broadcast %cst_133 : f32 to vector<32x16xf32>
        %296 = arith.subf %67, %295 : vector<32x16xf32>
        %cst_134 = arith.constant 1.250000e+00 : f32
        %297 = vector.broadcast %cst_134 : f32 to vector<32x16xf32>
        %298 = arith.mulf %296, %297 : vector<32x16xf32>
        %299 = arith.mulf %298, %195 : vector<32x16xf32>
        %cst_135 = arith.constant -2.000000e-01 : f32
        %300 = vector.broadcast %cst_135 : f32 to vector<32x16xf32>
        %301 = arith.subf %300, %67 : vector<32x16xf32>
        %cst_136 = arith.constant 1.250000e+00 : f32
        %302 = vector.broadcast %cst_136 : f32 to vector<32x16xf32>
        %303 = arith.mulf %301, %302 : vector<32x16xf32>
        %304 = arith.mulf %303, %206 : vector<32x16xf32>
        %305 = arith.addf %299, %304 : vector<32x16xf32>
        %cst_137 = arith.constant -1.000000e+00 : f32
        %306 = vector.broadcast %cst_137 : f32 to vector<32x16xf32>
        %307 = arith.subf %67, %306 : vector<32x16xf32>
        %cst_138 = arith.constant 1.250000e+00 : f32
        %308 = vector.broadcast %cst_138 : f32 to vector<32x16xf32>
        %309 = arith.mulf %307, %308 : vector<32x16xf32>
        %310 = arith.mulf %309, %206 : vector<32x16xf32>
        %cst_139 = arith.constant 2.000000e-01 : f32
        %311 = vector.broadcast %cst_139 : f32 to vector<32x16xf32>
        %312 = arith.subf %311, %67 : vector<32x16xf32>
        %cst_140 = arith.constant 1.250000e+00 : f32
        %313 = vector.broadcast %cst_140 : f32 to vector<32x16xf32>
        %314 = arith.mulf %312, %313 : vector<32x16xf32>
        %315 = arith.mulf %314, %217 : vector<32x16xf32>
        %316 = arith.addf %310, %315 : vector<32x16xf32>
        %cst_141 = arith.constant -6.000000e-01 : f32
        %317 = vector.broadcast %cst_141 : f32 to vector<32x16xf32>
        %318 = arith.subf %67, %317 : vector<32x16xf32>
        %cst_142 = arith.constant 1.250000e+00 : f32
        %319 = vector.broadcast %cst_142 : f32 to vector<32x16xf32>
        %320 = arith.mulf %318, %319 : vector<32x16xf32>
        %321 = arith.mulf %320, %217 : vector<32x16xf32>
        %cst_143 = arith.constant 6.000000e-01 : f32
        %322 = vector.broadcast %cst_143 : f32 to vector<32x16xf32>
        %323 = arith.subf %322, %67 : vector<32x16xf32>
        %cst_144 = arith.constant 1.250000e+00 : f32
        %324 = vector.broadcast %cst_144 : f32 to vector<32x16xf32>
        %325 = arith.mulf %323, %324 : vector<32x16xf32>
        %326 = arith.mulf %325, %228 : vector<32x16xf32>
        %327 = arith.addf %321, %326 : vector<32x16xf32>
        %cst_145 = arith.constant -2.000000e-01 : f32
        %328 = vector.broadcast %cst_145 : f32 to vector<32x16xf32>
        %329 = arith.subf %67, %328 : vector<32x16xf32>
        %cst_146 = arith.constant 1.250000e+00 : f32
        %330 = vector.broadcast %cst_146 : f32 to vector<32x16xf32>
        %331 = arith.mulf %329, %330 : vector<32x16xf32>
        %332 = arith.mulf %331, %228 : vector<32x16xf32>
        %cst_147 = arith.constant 1.000000e+00 : f32
        %333 = vector.broadcast %cst_147 : f32 to vector<32x16xf32>
        %334 = arith.subf %333, %67 : vector<32x16xf32>
        %cst_148 = arith.constant 1.250000e+00 : f32
        %335 = vector.broadcast %cst_148 : f32 to vector<32x16xf32>
        %336 = arith.mulf %334, %335 : vector<32x16xf32>
        %337 = arith.mulf %336, %239 : vector<32x16xf32>
        %338 = arith.addf %332, %337 : vector<32x16xf32>
        %cst_149 = arith.constant 2.000000e-01 : f32
        %339 = vector.broadcast %cst_149 : f32 to vector<32x16xf32>
        %340 = arith.subf %67, %339 : vector<32x16xf32>
        %cst_150 = arith.constant 1.250000e+00 : f32
        %341 = vector.broadcast %cst_150 : f32 to vector<32x16xf32>
        %342 = arith.mulf %340, %341 : vector<32x16xf32>
        %343 = arith.mulf %342, %239 : vector<32x16xf32>
        %cst_151 = arith.constant 1.400000e+00 : f32
        %344 = vector.broadcast %cst_151 : f32 to vector<32x16xf32>
        %345 = arith.subf %344, %67 : vector<32x16xf32>
        %cst_152 = arith.constant 1.250000e+00 : f32
        %346 = vector.broadcast %cst_152 : f32 to vector<32x16xf32>
        %347 = arith.mulf %345, %346 : vector<32x16xf32>
        %348 = arith.mulf %347, %250 : vector<32x16xf32>
        %349 = arith.addf %343, %348 : vector<32x16xf32>
        %cst_153 = arith.constant 6.000000e-01 : f32
        %350 = vector.broadcast %cst_153 : f32 to vector<32x16xf32>
        %351 = arith.subf %67, %350 : vector<32x16xf32>
        %cst_154 = arith.constant 1.250000e+00 : f32
        %352 = vector.broadcast %cst_154 : f32 to vector<32x16xf32>
        %353 = arith.mulf %351, %352 : vector<32x16xf32>
        %354 = arith.mulf %353, %250 : vector<32x16xf32>
        %cst_155 = arith.constant 1.800000e+00 : f32
        %355 = vector.broadcast %cst_155 : f32 to vector<32x16xf32>
        %356 = arith.subf %355, %67 : vector<32x16xf32>
        %cst_156 = arith.constant 1.250000e+00 : f32
        %357 = vector.broadcast %cst_156 : f32 to vector<32x16xf32>
        %358 = arith.mulf %356, %357 : vector<32x16xf32>
        %359 = arith.mulf %358, %261 : vector<32x16xf32>
        %360 = arith.addf %354, %359 : vector<32x16xf32>
        %cst_157 = arith.constant 1.000000e+00 : f32
        %361 = vector.broadcast %cst_157 : f32 to vector<32x16xf32>
        %362 = arith.subf %67, %361 : vector<32x16xf32>
        %cst_158 = arith.constant 1.250000e+00 : f32
        %363 = vector.broadcast %cst_158 : f32 to vector<32x16xf32>
        %364 = arith.mulf %362, %363 : vector<32x16xf32>
        %365 = arith.mulf %364, %261 : vector<32x16xf32>
        %cst_159 = arith.constant 2.200000e+00 : f32
        %366 = vector.broadcast %cst_159 : f32 to vector<32x16xf32>
        %367 = arith.subf %366, %67 : vector<32x16xf32>
        %cst_160 = arith.constant 1.250000e+00 : f32
        %368 = vector.broadcast %cst_160 : f32 to vector<32x16xf32>
        %369 = arith.mulf %367, %368 : vector<32x16xf32>
        %370 = arith.mulf %369, %272 : vector<32x16xf32>
        %371 = arith.addf %365, %370 : vector<32x16xf32>
        %cst_161 = arith.constant -2.200000e+00 : f32
        %372 = vector.broadcast %cst_161 : f32 to vector<32x16xf32>
        %373 = arith.subf %67, %372 : vector<32x16xf32>
        %cst_162 = arith.constant 0.833333313 : f32
        %374 = vector.broadcast %cst_162 : f32 to vector<32x16xf32>
        %375 = arith.mulf %373, %374 : vector<32x16xf32>
        %376 = arith.mulf %375, %283 : vector<32x16xf32>
        %cst_163 = arith.constant -6.000000e-01 : f32
        %377 = vector.broadcast %cst_163 : f32 to vector<32x16xf32>
        %378 = arith.subf %377, %67 : vector<32x16xf32>
        %cst_164 = arith.constant 0.833333313 : f32
        %379 = vector.broadcast %cst_164 : f32 to vector<32x16xf32>
        %380 = arith.mulf %378, %379 : vector<32x16xf32>
        %381 = arith.mulf %380, %294 : vector<32x16xf32>
        %382 = arith.addf %376, %381 : vector<32x16xf32>
        %cst_165 = arith.constant -1.800000e+00 : f32
        %383 = vector.broadcast %cst_165 : f32 to vector<32x16xf32>
        %384 = arith.subf %67, %383 : vector<32x16xf32>
        %cst_166 = arith.constant 0.833333313 : f32
        %385 = vector.broadcast %cst_166 : f32 to vector<32x16xf32>
        %386 = arith.mulf %384, %385 : vector<32x16xf32>
        %387 = arith.mulf %386, %294 : vector<32x16xf32>
        %cst_167 = arith.constant -2.000000e-01 : f32
        %388 = vector.broadcast %cst_167 : f32 to vector<32x16xf32>
        %389 = arith.subf %388, %67 : vector<32x16xf32>
        %cst_168 = arith.constant 0.833333313 : f32
        %390 = vector.broadcast %cst_168 : f32 to vector<32x16xf32>
        %391 = arith.mulf %389, %390 : vector<32x16xf32>
        %392 = arith.mulf %391, %305 : vector<32x16xf32>
        %393 = arith.addf %387, %392 : vector<32x16xf32>
        %cst_169 = arith.constant -1.400000e+00 : f32
        %394 = vector.broadcast %cst_169 : f32 to vector<32x16xf32>
        %395 = arith.subf %67, %394 : vector<32x16xf32>
        %cst_170 = arith.constant 0.833333313 : f32
        %396 = vector.broadcast %cst_170 : f32 to vector<32x16xf32>
        %397 = arith.mulf %395, %396 : vector<32x16xf32>
        %398 = arith.mulf %397, %305 : vector<32x16xf32>
        %cst_171 = arith.constant 2.000000e-01 : f32
        %399 = vector.broadcast %cst_171 : f32 to vector<32x16xf32>
        %400 = arith.subf %399, %67 : vector<32x16xf32>
        %cst_172 = arith.constant 0.833333313 : f32
        %401 = vector.broadcast %cst_172 : f32 to vector<32x16xf32>
        %402 = arith.mulf %400, %401 : vector<32x16xf32>
        %403 = arith.mulf %402, %316 : vector<32x16xf32>
        %404 = arith.addf %398, %403 : vector<32x16xf32>
        %cst_173 = arith.constant -1.000000e+00 : f32
        %405 = vector.broadcast %cst_173 : f32 to vector<32x16xf32>
        %406 = arith.subf %67, %405 : vector<32x16xf32>
        %cst_174 = arith.constant 0.833333313 : f32
        %407 = vector.broadcast %cst_174 : f32 to vector<32x16xf32>
        %408 = arith.mulf %406, %407 : vector<32x16xf32>
        %409 = arith.mulf %408, %316 : vector<32x16xf32>
        %cst_175 = arith.constant 6.000000e-01 : f32
        %410 = vector.broadcast %cst_175 : f32 to vector<32x16xf32>
        %411 = arith.subf %410, %67 : vector<32x16xf32>
        %cst_176 = arith.constant 0.833333313 : f32
        %412 = vector.broadcast %cst_176 : f32 to vector<32x16xf32>
        %413 = arith.mulf %411, %412 : vector<32x16xf32>
        %414 = arith.mulf %413, %327 : vector<32x16xf32>
        %415 = arith.addf %409, %414 : vector<32x16xf32>
        %cst_177 = arith.constant -6.000000e-01 : f32
        %416 = vector.broadcast %cst_177 : f32 to vector<32x16xf32>
        %417 = arith.subf %67, %416 : vector<32x16xf32>
        %cst_178 = arith.constant 0.833333313 : f32
        %418 = vector.broadcast %cst_178 : f32 to vector<32x16xf32>
        %419 = arith.mulf %417, %418 : vector<32x16xf32>
        %420 = arith.mulf %419, %327 : vector<32x16xf32>
        %cst_179 = arith.constant 1.000000e+00 : f32
        %421 = vector.broadcast %cst_179 : f32 to vector<32x16xf32>
        %422 = arith.subf %421, %67 : vector<32x16xf32>
        %cst_180 = arith.constant 0.833333313 : f32
        %423 = vector.broadcast %cst_180 : f32 to vector<32x16xf32>
        %424 = arith.mulf %422, %423 : vector<32x16xf32>
        %425 = arith.mulf %424, %338 : vector<32x16xf32>
        %426 = arith.addf %420, %425 : vector<32x16xf32>
        %cst_181 = arith.constant -2.000000e-01 : f32
        %427 = vector.broadcast %cst_181 : f32 to vector<32x16xf32>
        %428 = arith.subf %67, %427 : vector<32x16xf32>
        %cst_182 = arith.constant 0.833333313 : f32
        %429 = vector.broadcast %cst_182 : f32 to vector<32x16xf32>
        %430 = arith.mulf %428, %429 : vector<32x16xf32>
        %431 = arith.mulf %430, %338 : vector<32x16xf32>
        %cst_183 = arith.constant 1.400000e+00 : f32
        %432 = vector.broadcast %cst_183 : f32 to vector<32x16xf32>
        %433 = arith.subf %432, %67 : vector<32x16xf32>
        %cst_184 = arith.constant 0.833333313 : f32
        %434 = vector.broadcast %cst_184 : f32 to vector<32x16xf32>
        %435 = arith.mulf %433, %434 : vector<32x16xf32>
        %436 = arith.mulf %435, %349 : vector<32x16xf32>
        %437 = arith.addf %431, %436 : vector<32x16xf32>
        %cst_185 = arith.constant 2.000000e-01 : f32
        %438 = vector.broadcast %cst_185 : f32 to vector<32x16xf32>
        %439 = arith.subf %67, %438 : vector<32x16xf32>
        %cst_186 = arith.constant 0.833333313 : f32
        %440 = vector.broadcast %cst_186 : f32 to vector<32x16xf32>
        %441 = arith.mulf %439, %440 : vector<32x16xf32>
        %442 = arith.mulf %441, %349 : vector<32x16xf32>
        %cst_187 = arith.constant 1.800000e+00 : f32
        %443 = vector.broadcast %cst_187 : f32 to vector<32x16xf32>
        %444 = arith.subf %443, %67 : vector<32x16xf32>
        %cst_188 = arith.constant 0.833333313 : f32
        %445 = vector.broadcast %cst_188 : f32 to vector<32x16xf32>
        %446 = arith.mulf %444, %445 : vector<32x16xf32>
        %447 = arith.mulf %446, %360 : vector<32x16xf32>
        %448 = arith.addf %442, %447 : vector<32x16xf32>
        %cst_189 = arith.constant 6.000000e-01 : f32
        %449 = vector.broadcast %cst_189 : f32 to vector<32x16xf32>
        %450 = arith.subf %67, %449 : vector<32x16xf32>
        %cst_190 = arith.constant 0.833333313 : f32
        %451 = vector.broadcast %cst_190 : f32 to vector<32x16xf32>
        %452 = arith.mulf %450, %451 : vector<32x16xf32>
        %453 = arith.mulf %452, %360 : vector<32x16xf32>
        %cst_191 = arith.constant 2.200000e+00 : f32
        %454 = vector.broadcast %cst_191 : f32 to vector<32x16xf32>
        %455 = arith.subf %454, %67 : vector<32x16xf32>
        %cst_192 = arith.constant 0.833333313 : f32
        %456 = vector.broadcast %cst_192 : f32 to vector<32x16xf32>
        %457 = arith.mulf %455, %456 : vector<32x16xf32>
        %458 = arith.mulf %457, %371 : vector<32x16xf32>
        %459 = arith.addf %453, %458 : vector<32x16xf32>
        %460 = tpu.concatenate %74, %382, %393, %404, %415, %426, %437, %448, %459 in 1 : vector<32x16xf32>, vector<32x16xf32>, vector<32x16xf32>, vector<32x16xf32>, vector<32x16xf32>, vector<32x16xf32>, vector<32x16xf32>, vector<32x16xf32>, vector<32x16xf32> -> vector<32x144xf32>
        %461 = arith.truncf %460 : vector<32x144xf32> to vector<32x144xbf16>
        %c0_193 = arith.constant 0 : index
        %c0_194 = arith.constant 0 : index
        %462 = vector.load %arg9[%c0_193, %c0_194] : memref<144x32xbf16, #tpu.memory_space<vmem>>, vector<144x32xbf16>
        %cst_195 = arith.constant dense<0.000000e+00> : vector<32x32xf32>
        %463 = tpu.matmul %461, %462, %cst_195 {dimension_numbers = #tpu.dot_dimension_numbers<[1], [0], [0], [1], [0, 0, 1, 1], [], []>} : vector<32x144xbf16>, vector<144x32xbf16>, vector<32x32xf32> -> vector<32x32xf32>
        %cst_196 = arith.constant 0.000000e+00 : f32
        %464 = vector.broadcast %cst_196 : f32 to vector<32x32xf32>
        %465 = arith.subf %464, %463 : vector<32x32xf32>
        %466 = math.exp %465 : vector<32x32xf32>
        %cst_197 = arith.constant 1.000000e+00 : f32
        %467 = vector.broadcast %cst_197 : f32 to vector<32x32xf32>
        %468 = arith.addf %467, %466 : vector<32x32xf32>
        %469 = tpu.reciprocal %468 {approx = true} : vector<32x32xf32> -> vector<32x32xf32>
        %470 = arith.mulf %463, %469 : vector<32x32xf32>
        %cst_198 = arith.constant -2.200000e+00 : f32
        %471 = vector.broadcast %cst_198 : f32 to vector<32x32xf32>
        %472 = arith.cmpf oge, %463, %471 : vector<32x32xf32>
        %cst_199 = arith.constant -1.800000e+00 : f32
        %473 = vector.broadcast %cst_199 : f32 to vector<32x32xf32>
        %474 = arith.cmpf olt, %463, %473 : vector<32x32xf32>
        %475 = arith.andi %472, %474 : vector<32x32xi1>
        %cst_200 = arith.constant 1.000000e+00 : f32
        %cst_201 = arith.constant 0.000000e+00 : f32
        %476 = vector.broadcast %cst_200 : f32 to vector<32x32xf32>
        %477 = vector.broadcast %cst_201 : f32 to vector<32x32xf32>
        %478 = arith.select %475, %476, %477 : vector<32x32xi1>, vector<32x32xf32>
        %cst_202 = arith.constant -1.800000e+00 : f32
        %479 = vector.broadcast %cst_202 : f32 to vector<32x32xf32>
        %480 = arith.cmpf oge, %463, %479 : vector<32x32xf32>
        %cst_203 = arith.constant -1.400000e+00 : f32
        %481 = vector.broadcast %cst_203 : f32 to vector<32x32xf32>
        %482 = arith.cmpf olt, %463, %481 : vector<32x32xf32>
        %483 = arith.andi %480, %482 : vector<32x32xi1>
        %cst_204 = arith.constant 1.000000e+00 : f32
        %cst_205 = arith.constant 0.000000e+00 : f32
        %484 = vector.broadcast %cst_204 : f32 to vector<32x32xf32>
        %485 = vector.broadcast %cst_205 : f32 to vector<32x32xf32>
        %486 = arith.select %483, %484, %485 : vector<32x32xi1>, vector<32x32xf32>
        %cst_206 = arith.constant -1.400000e+00 : f32
        %487 = vector.broadcast %cst_206 : f32 to vector<32x32xf32>
        %488 = arith.cmpf oge, %463, %487 : vector<32x32xf32>
        %cst_207 = arith.constant -1.000000e+00 : f32
        %489 = vector.broadcast %cst_207 : f32 to vector<32x32xf32>
        %490 = arith.cmpf olt, %463, %489 : vector<32x32xf32>
        %491 = arith.andi %488, %490 : vector<32x32xi1>
        %cst_208 = arith.constant 1.000000e+00 : f32
        %cst_209 = arith.constant 0.000000e+00 : f32
        %492 = vector.broadcast %cst_208 : f32 to vector<32x32xf32>
        %493 = vector.broadcast %cst_209 : f32 to vector<32x32xf32>
        %494 = arith.select %491, %492, %493 : vector<32x32xi1>, vector<32x32xf32>
        %cst_210 = arith.constant -1.000000e+00 : f32
        %495 = vector.broadcast %cst_210 : f32 to vector<32x32xf32>
        %496 = arith.cmpf oge, %463, %495 : vector<32x32xf32>
        %cst_211 = arith.constant -6.000000e-01 : f32
        %497 = vector.broadcast %cst_211 : f32 to vector<32x32xf32>
        %498 = arith.cmpf olt, %463, %497 : vector<32x32xf32>
        %499 = arith.andi %496, %498 : vector<32x32xi1>
        %cst_212 = arith.constant 1.000000e+00 : f32
        %cst_213 = arith.constant 0.000000e+00 : f32
        %500 = vector.broadcast %cst_212 : f32 to vector<32x32xf32>
        %501 = vector.broadcast %cst_213 : f32 to vector<32x32xf32>
        %502 = arith.select %499, %500, %501 : vector<32x32xi1>, vector<32x32xf32>
        %cst_214 = arith.constant -6.000000e-01 : f32
        %503 = vector.broadcast %cst_214 : f32 to vector<32x32xf32>
        %504 = arith.cmpf oge, %463, %503 : vector<32x32xf32>
        %cst_215 = arith.constant -2.000000e-01 : f32
        %505 = vector.broadcast %cst_215 : f32 to vector<32x32xf32>
        %506 = arith.cmpf olt, %463, %505 : vector<32x32xf32>
        %507 = arith.andi %504, %506 : vector<32x32xi1>
        %cst_216 = arith.constant 1.000000e+00 : f32
        %cst_217 = arith.constant 0.000000e+00 : f32
        %508 = vector.broadcast %cst_216 : f32 to vector<32x32xf32>
        %509 = vector.broadcast %cst_217 : f32 to vector<32x32xf32>
        %510 = arith.select %507, %508, %509 : vector<32x32xi1>, vector<32x32xf32>
        %cst_218 = arith.constant -2.000000e-01 : f32
        %511 = vector.broadcast %cst_218 : f32 to vector<32x32xf32>
        %512 = arith.cmpf oge, %463, %511 : vector<32x32xf32>
        %cst_219 = arith.constant 2.000000e-01 : f32
        %513 = vector.broadcast %cst_219 : f32 to vector<32x32xf32>
        %514 = arith.cmpf olt, %463, %513 : vector<32x32xf32>
        %515 = arith.andi %512, %514 : vector<32x32xi1>
        %cst_220 = arith.constant 1.000000e+00 : f32
        %cst_221 = arith.constant 0.000000e+00 : f32
        %516 = vector.broadcast %cst_220 : f32 to vector<32x32xf32>
        %517 = vector.broadcast %cst_221 : f32 to vector<32x32xf32>
        %518 = arith.select %515, %516, %517 : vector<32x32xi1>, vector<32x32xf32>
        %cst_222 = arith.constant 2.000000e-01 : f32
        %519 = vector.broadcast %cst_222 : f32 to vector<32x32xf32>
        %520 = arith.cmpf oge, %463, %519 : vector<32x32xf32>
        %cst_223 = arith.constant 6.000000e-01 : f32
        %521 = vector.broadcast %cst_223 : f32 to vector<32x32xf32>
        %522 = arith.cmpf olt, %463, %521 : vector<32x32xf32>
        %523 = arith.andi %520, %522 : vector<32x32xi1>
        %cst_224 = arith.constant 1.000000e+00 : f32
        %cst_225 = arith.constant 0.000000e+00 : f32
        %524 = vector.broadcast %cst_224 : f32 to vector<32x32xf32>
        %525 = vector.broadcast %cst_225 : f32 to vector<32x32xf32>
        %526 = arith.select %523, %524, %525 : vector<32x32xi1>, vector<32x32xf32>
        %cst_226 = arith.constant 6.000000e-01 : f32
        %527 = vector.broadcast %cst_226 : f32 to vector<32x32xf32>
        %528 = arith.cmpf oge, %463, %527 : vector<32x32xf32>
        %cst_227 = arith.constant 1.000000e+00 : f32
        %529 = vector.broadcast %cst_227 : f32 to vector<32x32xf32>
        %530 = arith.cmpf olt, %463, %529 : vector<32x32xf32>
        %531 = arith.andi %528, %530 : vector<32x32xi1>
        %cst_228 = arith.constant 1.000000e+00 : f32
        %cst_229 = arith.constant 0.000000e+00 : f32
        %532 = vector.broadcast %cst_228 : f32 to vector<32x32xf32>
        %533 = vector.broadcast %cst_229 : f32 to vector<32x32xf32>
        %534 = arith.select %531, %532, %533 : vector<32x32xi1>, vector<32x32xf32>
        %cst_230 = arith.constant 1.000000e+00 : f32
        %535 = vector.broadcast %cst_230 : f32 to vector<32x32xf32>
        %536 = arith.cmpf oge, %463, %535 : vector<32x32xf32>
        %cst_231 = arith.constant 1.400000e+00 : f32
        %537 = vector.broadcast %cst_231 : f32 to vector<32x32xf32>
        %538 = arith.cmpf olt, %463, %537 : vector<32x32xf32>
        %539 = arith.andi %536, %538 : vector<32x32xi1>
        %cst_232 = arith.constant 1.000000e+00 : f32
        %cst_233 = arith.constant 0.000000e+00 : f32
        %540 = vector.broadcast %cst_232 : f32 to vector<32x32xf32>
        %541 = vector.broadcast %cst_233 : f32 to vector<32x32xf32>
        %542 = arith.select %539, %540, %541 : vector<32x32xi1>, vector<32x32xf32>
        %cst_234 = arith.constant 1.400000e+00 : f32
        %543 = vector.broadcast %cst_234 : f32 to vector<32x32xf32>
        %544 = arith.cmpf oge, %463, %543 : vector<32x32xf32>
        %cst_235 = arith.constant 1.800000e+00 : f32
        %545 = vector.broadcast %cst_235 : f32 to vector<32x32xf32>
        %546 = arith.cmpf olt, %463, %545 : vector<32x32xf32>
        %547 = arith.andi %544, %546 : vector<32x32xi1>
        %cst_236 = arith.constant 1.000000e+00 : f32
        %cst_237 = arith.constant 0.000000e+00 : f32
        %548 = vector.broadcast %cst_236 : f32 to vector<32x32xf32>
        %549 = vector.broadcast %cst_237 : f32 to vector<32x32xf32>
        %550 = arith.select %547, %548, %549 : vector<32x32xi1>, vector<32x32xf32>
        %cst_238 = arith.constant 1.800000e+00 : f32
        %551 = vector.broadcast %cst_238 : f32 to vector<32x32xf32>
        %552 = arith.cmpf oge, %463, %551 : vector<32x32xf32>
        %cst_239 = arith.constant 2.200000e+00 : f32
        %553 = vector.broadcast %cst_239 : f32 to vector<32x32xf32>
        %554 = arith.cmpf olt, %463, %553 : vector<32x32xf32>
        %555 = arith.andi %552, %554 : vector<32x32xi1>
        %cst_240 = arith.constant 1.000000e+00 : f32
        %cst_241 = arith.constant 0.000000e+00 : f32
        %556 = vector.broadcast %cst_240 : f32 to vector<32x32xf32>
        %557 = vector.broadcast %cst_241 : f32 to vector<32x32xf32>
        %558 = arith.select %555, %556, %557 : vector<32x32xi1>, vector<32x32xf32>
        %cst_242 = arith.constant -2.200000e+00 : f32
        %559 = vector.broadcast %cst_242 : f32 to vector<32x32xf32>
        %560 = arith.subf %463, %559 : vector<32x32xf32>
        %cst_243 = arith.constant 2.500000e+00 : f32
        %561 = vector.broadcast %cst_243 : f32 to vector<32x32xf32>
        %562 = arith.mulf %560, %561 : vector<32x32xf32>
        %563 = arith.mulf %562, %478 : vector<32x32xf32>
        %cst_244 = arith.constant -1.400000e+00 : f32
        %564 = vector.broadcast %cst_244 : f32 to vector<32x32xf32>
        %565 = arith.subf %564, %463 : vector<32x32xf32>
        %cst_245 = arith.constant 2.500000e+00 : f32
        %566 = vector.broadcast %cst_245 : f32 to vector<32x32xf32>
        %567 = arith.mulf %565, %566 : vector<32x32xf32>
        %568 = arith.mulf %567, %486 : vector<32x32xf32>
        %569 = arith.addf %563, %568 : vector<32x32xf32>
        %cst_246 = arith.constant -1.800000e+00 : f32
        %570 = vector.broadcast %cst_246 : f32 to vector<32x32xf32>
        %571 = arith.subf %463, %570 : vector<32x32xf32>
        %cst_247 = arith.constant 2.500000e+00 : f32
        %572 = vector.broadcast %cst_247 : f32 to vector<32x32xf32>
        %573 = arith.mulf %571, %572 : vector<32x32xf32>
        %574 = arith.mulf %573, %486 : vector<32x32xf32>
        %cst_248 = arith.constant -1.000000e+00 : f32
        %575 = vector.broadcast %cst_248 : f32 to vector<32x32xf32>
        %576 = arith.subf %575, %463 : vector<32x32xf32>
        %cst_249 = arith.constant 2.500000e+00 : f32
        %577 = vector.broadcast %cst_249 : f32 to vector<32x32xf32>
        %578 = arith.mulf %576, %577 : vector<32x32xf32>
        %579 = arith.mulf %578, %494 : vector<32x32xf32>
        %580 = arith.addf %574, %579 : vector<32x32xf32>
        %cst_250 = arith.constant -1.400000e+00 : f32
        %581 = vector.broadcast %cst_250 : f32 to vector<32x32xf32>
        %582 = arith.subf %463, %581 : vector<32x32xf32>
        %cst_251 = arith.constant 2.500000e+00 : f32
        %583 = vector.broadcast %cst_251 : f32 to vector<32x32xf32>
        %584 = arith.mulf %582, %583 : vector<32x32xf32>
        %585 = arith.mulf %584, %494 : vector<32x32xf32>
        %cst_252 = arith.constant -6.000000e-01 : f32
        %586 = vector.broadcast %cst_252 : f32 to vector<32x32xf32>
        %587 = arith.subf %586, %463 : vector<32x32xf32>
        %cst_253 = arith.constant 2.500000e+00 : f32
        %588 = vector.broadcast %cst_253 : f32 to vector<32x32xf32>
        %589 = arith.mulf %587, %588 : vector<32x32xf32>
        %590 = arith.mulf %589, %502 : vector<32x32xf32>
        %591 = arith.addf %585, %590 : vector<32x32xf32>
        %cst_254 = arith.constant -1.000000e+00 : f32
        %592 = vector.broadcast %cst_254 : f32 to vector<32x32xf32>
        %593 = arith.subf %463, %592 : vector<32x32xf32>
        %cst_255 = arith.constant 2.500000e+00 : f32
        %594 = vector.broadcast %cst_255 : f32 to vector<32x32xf32>
        %595 = arith.mulf %593, %594 : vector<32x32xf32>
        %596 = arith.mulf %595, %502 : vector<32x32xf32>
        %cst_256 = arith.constant -2.000000e-01 : f32
        %597 = vector.broadcast %cst_256 : f32 to vector<32x32xf32>
        %598 = arith.subf %597, %463 : vector<32x32xf32>
        %cst_257 = arith.constant 2.500000e+00 : f32
        %599 = vector.broadcast %cst_257 : f32 to vector<32x32xf32>
        %600 = arith.mulf %598, %599 : vector<32x32xf32>
        %601 = arith.mulf %600, %510 : vector<32x32xf32>
        %602 = arith.addf %596, %601 : vector<32x32xf32>
        %cst_258 = arith.constant -6.000000e-01 : f32
        %603 = vector.broadcast %cst_258 : f32 to vector<32x32xf32>
        %604 = arith.subf %463, %603 : vector<32x32xf32>
        %cst_259 = arith.constant 2.500000e+00 : f32
        %605 = vector.broadcast %cst_259 : f32 to vector<32x32xf32>
        %606 = arith.mulf %604, %605 : vector<32x32xf32>
        %607 = arith.mulf %606, %510 : vector<32x32xf32>
        %cst_260 = arith.constant 2.000000e-01 : f32
        %608 = vector.broadcast %cst_260 : f32 to vector<32x32xf32>
        %609 = arith.subf %608, %463 : vector<32x32xf32>
        %cst_261 = arith.constant 2.500000e+00 : f32
        %610 = vector.broadcast %cst_261 : f32 to vector<32x32xf32>
        %611 = arith.mulf %609, %610 : vector<32x32xf32>
        %612 = arith.mulf %611, %518 : vector<32x32xf32>
        %613 = arith.addf %607, %612 : vector<32x32xf32>
        %cst_262 = arith.constant -2.000000e-01 : f32
        %614 = vector.broadcast %cst_262 : f32 to vector<32x32xf32>
        %615 = arith.subf %463, %614 : vector<32x32xf32>
        %cst_263 = arith.constant 2.500000e+00 : f32
        %616 = vector.broadcast %cst_263 : f32 to vector<32x32xf32>
        %617 = arith.mulf %615, %616 : vector<32x32xf32>
        %618 = arith.mulf %617, %518 : vector<32x32xf32>
        %cst_264 = arith.constant 6.000000e-01 : f32
        %619 = vector.broadcast %cst_264 : f32 to vector<32x32xf32>
        %620 = arith.subf %619, %463 : vector<32x32xf32>
        %cst_265 = arith.constant 2.500000e+00 : f32
        %621 = vector.broadcast %cst_265 : f32 to vector<32x32xf32>
        %622 = arith.mulf %620, %621 : vector<32x32xf32>
        %623 = arith.mulf %622, %526 : vector<32x32xf32>
        %624 = arith.addf %618, %623 : vector<32x32xf32>
        %cst_266 = arith.constant 2.000000e-01 : f32
        %625 = vector.broadcast %cst_266 : f32 to vector<32x32xf32>
        %626 = arith.subf %463, %625 : vector<32x32xf32>
        %cst_267 = arith.constant 2.500000e+00 : f32
        %627 = vector.broadcast %cst_267 : f32 to vector<32x32xf32>
        %628 = arith.mulf %626, %627 : vector<32x32xf32>
        %629 = arith.mulf %628, %526 : vector<32x32xf32>
        %cst_268 = arith.constant 1.000000e+00 : f32
        %630 = vector.broadcast %cst_268 : f32 to vector<32x32xf32>
        %631 = arith.subf %630, %463 : vector<32x32xf32>
        %cst_269 = arith.constant 2.500000e+00 : f32
        %632 = vector.broadcast %cst_269 : f32 to vector<32x32xf32>
        %633 = arith.mulf %631, %632 : vector<32x32xf32>
        %634 = arith.mulf %633, %534 : vector<32x32xf32>
        %635 = arith.addf %629, %634 : vector<32x32xf32>
        %cst_270 = arith.constant 6.000000e-01 : f32
        %636 = vector.broadcast %cst_270 : f32 to vector<32x32xf32>
        %637 = arith.subf %463, %636 : vector<32x32xf32>
        %cst_271 = arith.constant 2.500000e+00 : f32
        %638 = vector.broadcast %cst_271 : f32 to vector<32x32xf32>
        %639 = arith.mulf %637, %638 : vector<32x32xf32>
        %640 = arith.mulf %639, %534 : vector<32x32xf32>
        %cst_272 = arith.constant 1.400000e+00 : f32
        %641 = vector.broadcast %cst_272 : f32 to vector<32x32xf32>
        %642 = arith.subf %641, %463 : vector<32x32xf32>
        %cst_273 = arith.constant 2.500000e+00 : f32
        %643 = vector.broadcast %cst_273 : f32 to vector<32x32xf32>
        %644 = arith.mulf %642, %643 : vector<32x32xf32>
        %645 = arith.mulf %644, %542 : vector<32x32xf32>
        %646 = arith.addf %640, %645 : vector<32x32xf32>
        %cst_274 = arith.constant 1.000000e+00 : f32
        %647 = vector.broadcast %cst_274 : f32 to vector<32x32xf32>
        %648 = arith.subf %463, %647 : vector<32x32xf32>
        %cst_275 = arith.constant 2.500000e+00 : f32
        %649 = vector.broadcast %cst_275 : f32 to vector<32x32xf32>
        %650 = arith.mulf %648, %649 : vector<32x32xf32>
        %651 = arith.mulf %650, %542 : vector<32x32xf32>
        %cst_276 = arith.constant 1.800000e+00 : f32
        %652 = vector.broadcast %cst_276 : f32 to vector<32x32xf32>
        %653 = arith.subf %652, %463 : vector<32x32xf32>
        %cst_277 = arith.constant 2.500000e+00 : f32
        %654 = vector.broadcast %cst_277 : f32 to vector<32x32xf32>
        %655 = arith.mulf %653, %654 : vector<32x32xf32>
        %656 = arith.mulf %655, %550 : vector<32x32xf32>
        %657 = arith.addf %651, %656 : vector<32x32xf32>
        %cst_278 = arith.constant 1.400000e+00 : f32
        %658 = vector.broadcast %cst_278 : f32 to vector<32x32xf32>
        %659 = arith.subf %463, %658 : vector<32x32xf32>
        %cst_279 = arith.constant 2.500000e+00 : f32
        %660 = vector.broadcast %cst_279 : f32 to vector<32x32xf32>
        %661 = arith.mulf %659, %660 : vector<32x32xf32>
        %662 = arith.mulf %661, %550 : vector<32x32xf32>
        %cst_280 = arith.constant 2.200000e+00 : f32
        %663 = vector.broadcast %cst_280 : f32 to vector<32x32xf32>
        %664 = arith.subf %663, %463 : vector<32x32xf32>
        %cst_281 = arith.constant 2.500000e+00 : f32
        %665 = vector.broadcast %cst_281 : f32 to vector<32x32xf32>
        %666 = arith.mulf %664, %665 : vector<32x32xf32>
        %667 = arith.mulf %666, %558 : vector<32x32xf32>
        %668 = arith.addf %662, %667 : vector<32x32xf32>
        %cst_282 = arith.constant -2.200000e+00 : f32
        %669 = vector.broadcast %cst_282 : f32 to vector<32x32xf32>
        %670 = arith.subf %463, %669 : vector<32x32xf32>
        %cst_283 = arith.constant 1.250000e+00 : f32
        %671 = vector.broadcast %cst_283 : f32 to vector<32x32xf32>
        %672 = arith.mulf %670, %671 : vector<32x32xf32>
        %673 = arith.mulf %672, %569 : vector<32x32xf32>
        %cst_284 = arith.constant -1.000000e+00 : f32
        %674 = vector.broadcast %cst_284 : f32 to vector<32x32xf32>
        %675 = arith.subf %674, %463 : vector<32x32xf32>
        %cst_285 = arith.constant 1.250000e+00 : f32
        %676 = vector.broadcast %cst_285 : f32 to vector<32x32xf32>
        %677 = arith.mulf %675, %676 : vector<32x32xf32>
        %678 = arith.mulf %677, %580 : vector<32x32xf32>
        %679 = arith.addf %673, %678 : vector<32x32xf32>
        %cst_286 = arith.constant -1.800000e+00 : f32
        %680 = vector.broadcast %cst_286 : f32 to vector<32x32xf32>
        %681 = arith.subf %463, %680 : vector<32x32xf32>
        %cst_287 = arith.constant 1.250000e+00 : f32
        %682 = vector.broadcast %cst_287 : f32 to vector<32x32xf32>
        %683 = arith.mulf %681, %682 : vector<32x32xf32>
        %684 = arith.mulf %683, %580 : vector<32x32xf32>
        %cst_288 = arith.constant -6.000000e-01 : f32
        %685 = vector.broadcast %cst_288 : f32 to vector<32x32xf32>
        %686 = arith.subf %685, %463 : vector<32x32xf32>
        %cst_289 = arith.constant 1.250000e+00 : f32
        %687 = vector.broadcast %cst_289 : f32 to vector<32x32xf32>
        %688 = arith.mulf %686, %687 : vector<32x32xf32>
        %689 = arith.mulf %688, %591 : vector<32x32xf32>
        %690 = arith.addf %684, %689 : vector<32x32xf32>
        %cst_290 = arith.constant -1.400000e+00 : f32
        %691 = vector.broadcast %cst_290 : f32 to vector<32x32xf32>
        %692 = arith.subf %463, %691 : vector<32x32xf32>
        %cst_291 = arith.constant 1.250000e+00 : f32
        %693 = vector.broadcast %cst_291 : f32 to vector<32x32xf32>
        %694 = arith.mulf %692, %693 : vector<32x32xf32>
        %695 = arith.mulf %694, %591 : vector<32x32xf32>
        %cst_292 = arith.constant -2.000000e-01 : f32
        %696 = vector.broadcast %cst_292 : f32 to vector<32x32xf32>
        %697 = arith.subf %696, %463 : vector<32x32xf32>
        %cst_293 = arith.constant 1.250000e+00 : f32
        %698 = vector.broadcast %cst_293 : f32 to vector<32x32xf32>
        %699 = arith.mulf %697, %698 : vector<32x32xf32>
        %700 = arith.mulf %699, %602 : vector<32x32xf32>
        %701 = arith.addf %695, %700 : vector<32x32xf32>
        %cst_294 = arith.constant -1.000000e+00 : f32
        %702 = vector.broadcast %cst_294 : f32 to vector<32x32xf32>
        %703 = arith.subf %463, %702 : vector<32x32xf32>
        %cst_295 = arith.constant 1.250000e+00 : f32
        %704 = vector.broadcast %cst_295 : f32 to vector<32x32xf32>
        %705 = arith.mulf %703, %704 : vector<32x32xf32>
        %706 = arith.mulf %705, %602 : vector<32x32xf32>
        %cst_296 = arith.constant 2.000000e-01 : f32
        %707 = vector.broadcast %cst_296 : f32 to vector<32x32xf32>
        %708 = arith.subf %707, %463 : vector<32x32xf32>
        %cst_297 = arith.constant 1.250000e+00 : f32
        %709 = vector.broadcast %cst_297 : f32 to vector<32x32xf32>
        %710 = arith.mulf %708, %709 : vector<32x32xf32>
        %711 = arith.mulf %710, %613 : vector<32x32xf32>
        %712 = arith.addf %706, %711 : vector<32x32xf32>
        %cst_298 = arith.constant -6.000000e-01 : f32
        %713 = vector.broadcast %cst_298 : f32 to vector<32x32xf32>
        %714 = arith.subf %463, %713 : vector<32x32xf32>
        %cst_299 = arith.constant 1.250000e+00 : f32
        %715 = vector.broadcast %cst_299 : f32 to vector<32x32xf32>
        %716 = arith.mulf %714, %715 : vector<32x32xf32>
        %717 = arith.mulf %716, %613 : vector<32x32xf32>
        %cst_300 = arith.constant 6.000000e-01 : f32
        %718 = vector.broadcast %cst_300 : f32 to vector<32x32xf32>
        %719 = arith.subf %718, %463 : vector<32x32xf32>
        %cst_301 = arith.constant 1.250000e+00 : f32
        %720 = vector.broadcast %cst_301 : f32 to vector<32x32xf32>
        %721 = arith.mulf %719, %720 : vector<32x32xf32>
        %722 = arith.mulf %721, %624 : vector<32x32xf32>
        %723 = arith.addf %717, %722 : vector<32x32xf32>
        %cst_302 = arith.constant -2.000000e-01 : f32
        %724 = vector.broadcast %cst_302 : f32 to vector<32x32xf32>
        %725 = arith.subf %463, %724 : vector<32x32xf32>
        %cst_303 = arith.constant 1.250000e+00 : f32
        %726 = vector.broadcast %cst_303 : f32 to vector<32x32xf32>
        %727 = arith.mulf %725, %726 : vector<32x32xf32>
        %728 = arith.mulf %727, %624 : vector<32x32xf32>
        %cst_304 = arith.constant 1.000000e+00 : f32
        %729 = vector.broadcast %cst_304 : f32 to vector<32x32xf32>
        %730 = arith.subf %729, %463 : vector<32x32xf32>
        %cst_305 = arith.constant 1.250000e+00 : f32
        %731 = vector.broadcast %cst_305 : f32 to vector<32x32xf32>
        %732 = arith.mulf %730, %731 : vector<32x32xf32>
        %733 = arith.mulf %732, %635 : vector<32x32xf32>
        %734 = arith.addf %728, %733 : vector<32x32xf32>
        %cst_306 = arith.constant 2.000000e-01 : f32
        %735 = vector.broadcast %cst_306 : f32 to vector<32x32xf32>
        %736 = arith.subf %463, %735 : vector<32x32xf32>
        %cst_307 = arith.constant 1.250000e+00 : f32
        %737 = vector.broadcast %cst_307 : f32 to vector<32x32xf32>
        %738 = arith.mulf %736, %737 : vector<32x32xf32>
        %739 = arith.mulf %738, %635 : vector<32x32xf32>
        %cst_308 = arith.constant 1.400000e+00 : f32
        %740 = vector.broadcast %cst_308 : f32 to vector<32x32xf32>
        %741 = arith.subf %740, %463 : vector<32x32xf32>
        %cst_309 = arith.constant 1.250000e+00 : f32
        %742 = vector.broadcast %cst_309 : f32 to vector<32x32xf32>
        %743 = arith.mulf %741, %742 : vector<32x32xf32>
        %744 = arith.mulf %743, %646 : vector<32x32xf32>
        %745 = arith.addf %739, %744 : vector<32x32xf32>
        %cst_310 = arith.constant 6.000000e-01 : f32
        %746 = vector.broadcast %cst_310 : f32 to vector<32x32xf32>
        %747 = arith.subf %463, %746 : vector<32x32xf32>
        %cst_311 = arith.constant 1.250000e+00 : f32
        %748 = vector.broadcast %cst_311 : f32 to vector<32x32xf32>
        %749 = arith.mulf %747, %748 : vector<32x32xf32>
        %750 = arith.mulf %749, %646 : vector<32x32xf32>
        %cst_312 = arith.constant 1.800000e+00 : f32
        %751 = vector.broadcast %cst_312 : f32 to vector<32x32xf32>
        %752 = arith.subf %751, %463 : vector<32x32xf32>
        %cst_313 = arith.constant 1.250000e+00 : f32
        %753 = vector.broadcast %cst_313 : f32 to vector<32x32xf32>
        %754 = arith.mulf %752, %753 : vector<32x32xf32>
        %755 = arith.mulf %754, %657 : vector<32x32xf32>
        %756 = arith.addf %750, %755 : vector<32x32xf32>
        %cst_314 = arith.constant 1.000000e+00 : f32
        %757 = vector.broadcast %cst_314 : f32 to vector<32x32xf32>
        %758 = arith.subf %463, %757 : vector<32x32xf32>
        %cst_315 = arith.constant 1.250000e+00 : f32
        %759 = vector.broadcast %cst_315 : f32 to vector<32x32xf32>
        %760 = arith.mulf %758, %759 : vector<32x32xf32>
        %761 = arith.mulf %760, %657 : vector<32x32xf32>
        %cst_316 = arith.constant 2.200000e+00 : f32
        %762 = vector.broadcast %cst_316 : f32 to vector<32x32xf32>
        %763 = arith.subf %762, %463 : vector<32x32xf32>
        %cst_317 = arith.constant 1.250000e+00 : f32
        %764 = vector.broadcast %cst_317 : f32 to vector<32x32xf32>
        %765 = arith.mulf %763, %764 : vector<32x32xf32>
        %766 = arith.mulf %765, %668 : vector<32x32xf32>
        %767 = arith.addf %761, %766 : vector<32x32xf32>
        %cst_318 = arith.constant -2.200000e+00 : f32
        %768 = vector.broadcast %cst_318 : f32 to vector<32x32xf32>
        %769 = arith.subf %463, %768 : vector<32x32xf32>
        %cst_319 = arith.constant 0.833333313 : f32
        %770 = vector.broadcast %cst_319 : f32 to vector<32x32xf32>
        %771 = arith.mulf %769, %770 : vector<32x32xf32>
        %772 = arith.mulf %771, %679 : vector<32x32xf32>
        %cst_320 = arith.constant -6.000000e-01 : f32
        %773 = vector.broadcast %cst_320 : f32 to vector<32x32xf32>
        %774 = arith.subf %773, %463 : vector<32x32xf32>
        %cst_321 = arith.constant 0.833333313 : f32
        %775 = vector.broadcast %cst_321 : f32 to vector<32x32xf32>
        %776 = arith.mulf %774, %775 : vector<32x32xf32>
        %777 = arith.mulf %776, %690 : vector<32x32xf32>
        %778 = arith.addf %772, %777 : vector<32x32xf32>
        %cst_322 = arith.constant -1.800000e+00 : f32
        %779 = vector.broadcast %cst_322 : f32 to vector<32x32xf32>
        %780 = arith.subf %463, %779 : vector<32x32xf32>
        %cst_323 = arith.constant 0.833333313 : f32
        %781 = vector.broadcast %cst_323 : f32 to vector<32x32xf32>
        %782 = arith.mulf %780, %781 : vector<32x32xf32>
        %783 = arith.mulf %782, %690 : vector<32x32xf32>
        %cst_324 = arith.constant -2.000000e-01 : f32
        %784 = vector.broadcast %cst_324 : f32 to vector<32x32xf32>
        %785 = arith.subf %784, %463 : vector<32x32xf32>
        %cst_325 = arith.constant 0.833333313 : f32
        %786 = vector.broadcast %cst_325 : f32 to vector<32x32xf32>
        %787 = arith.mulf %785, %786 : vector<32x32xf32>
        %788 = arith.mulf %787, %701 : vector<32x32xf32>
        %789 = arith.addf %783, %788 : vector<32x32xf32>
        %cst_326 = arith.constant -1.400000e+00 : f32
        %790 = vector.broadcast %cst_326 : f32 to vector<32x32xf32>
        %791 = arith.subf %463, %790 : vector<32x32xf32>
        %cst_327 = arith.constant 0.833333313 : f32
        %792 = vector.broadcast %cst_327 : f32 to vector<32x32xf32>
        %793 = arith.mulf %791, %792 : vector<32x32xf32>
        %794 = arith.mulf %793, %701 : vector<32x32xf32>
        %cst_328 = arith.constant 2.000000e-01 : f32
        %795 = vector.broadcast %cst_328 : f32 to vector<32x32xf32>
        %796 = arith.subf %795, %463 : vector<32x32xf32>
        %cst_329 = arith.constant 0.833333313 : f32
        %797 = vector.broadcast %cst_329 : f32 to vector<32x32xf32>
        %798 = arith.mulf %796, %797 : vector<32x32xf32>
        %799 = arith.mulf %798, %712 : vector<32x32xf32>
        %800 = arith.addf %794, %799 : vector<32x32xf32>
        %cst_330 = arith.constant -1.000000e+00 : f32
        %801 = vector.broadcast %cst_330 : f32 to vector<32x32xf32>
        %802 = arith.subf %463, %801 : vector<32x32xf32>
        %cst_331 = arith.constant 0.833333313 : f32
        %803 = vector.broadcast %cst_331 : f32 to vector<32x32xf32>
        %804 = arith.mulf %802, %803 : vector<32x32xf32>
        %805 = arith.mulf %804, %712 : vector<32x32xf32>
        %cst_332 = arith.constant 6.000000e-01 : f32
        %806 = vector.broadcast %cst_332 : f32 to vector<32x32xf32>
        %807 = arith.subf %806, %463 : vector<32x32xf32>
        %cst_333 = arith.constant 0.833333313 : f32
        %808 = vector.broadcast %cst_333 : f32 to vector<32x32xf32>
        %809 = arith.mulf %807, %808 : vector<32x32xf32>
        %810 = arith.mulf %809, %723 : vector<32x32xf32>
        %811 = arith.addf %805, %810 : vector<32x32xf32>
        %cst_334 = arith.constant -6.000000e-01 : f32
        %812 = vector.broadcast %cst_334 : f32 to vector<32x32xf32>
        %813 = arith.subf %463, %812 : vector<32x32xf32>
        %cst_335 = arith.constant 0.833333313 : f32
        %814 = vector.broadcast %cst_335 : f32 to vector<32x32xf32>
        %815 = arith.mulf %813, %814 : vector<32x32xf32>
        %816 = arith.mulf %815, %723 : vector<32x32xf32>
        %cst_336 = arith.constant 1.000000e+00 : f32
        %817 = vector.broadcast %cst_336 : f32 to vector<32x32xf32>
        %818 = arith.subf %817, %463 : vector<32x32xf32>
        %cst_337 = arith.constant 0.833333313 : f32
        %819 = vector.broadcast %cst_337 : f32 to vector<32x32xf32>
        %820 = arith.mulf %818, %819 : vector<32x32xf32>
        %821 = arith.mulf %820, %734 : vector<32x32xf32>
        %822 = arith.addf %816, %821 : vector<32x32xf32>
        %cst_338 = arith.constant -2.000000e-01 : f32
        %823 = vector.broadcast %cst_338 : f32 to vector<32x32xf32>
        %824 = arith.subf %463, %823 : vector<32x32xf32>
        %cst_339 = arith.constant 0.833333313 : f32
        %825 = vector.broadcast %cst_339 : f32 to vector<32x32xf32>
        %826 = arith.mulf %824, %825 : vector<32x32xf32>
        %827 = arith.mulf %826, %734 : vector<32x32xf32>
        %cst_340 = arith.constant 1.400000e+00 : f32
        %828 = vector.broadcast %cst_340 : f32 to vector<32x32xf32>
        %829 = arith.subf %828, %463 : vector<32x32xf32>
        %cst_341 = arith.constant 0.833333313 : f32
        %830 = vector.broadcast %cst_341 : f32 to vector<32x32xf32>
        %831 = arith.mulf %829, %830 : vector<32x32xf32>
        %832 = arith.mulf %831, %745 : vector<32x32xf32>
        %833 = arith.addf %827, %832 : vector<32x32xf32>
        %cst_342 = arith.constant 2.000000e-01 : f32
        %834 = vector.broadcast %cst_342 : f32 to vector<32x32xf32>
        %835 = arith.subf %463, %834 : vector<32x32xf32>
        %cst_343 = arith.constant 0.833333313 : f32
        %836 = vector.broadcast %cst_343 : f32 to vector<32x32xf32>
        %837 = arith.mulf %835, %836 : vector<32x32xf32>
        %838 = arith.mulf %837, %745 : vector<32x32xf32>
        %cst_344 = arith.constant 1.800000e+00 : f32
        %839 = vector.broadcast %cst_344 : f32 to vector<32x32xf32>
        %840 = arith.subf %839, %463 : vector<32x32xf32>
        %cst_345 = arith.constant 0.833333313 : f32
        %841 = vector.broadcast %cst_345 : f32 to vector<32x32xf32>
        %842 = arith.mulf %840, %841 : vector<32x32xf32>
        %843 = arith.mulf %842, %756 : vector<32x32xf32>
        %844 = arith.addf %838, %843 : vector<32x32xf32>
        %cst_346 = arith.constant 6.000000e-01 : f32
        %845 = vector.broadcast %cst_346 : f32 to vector<32x32xf32>
        %846 = arith.subf %463, %845 : vector<32x32xf32>
        %cst_347 = arith.constant 0.833333313 : f32
        %847 = vector.broadcast %cst_347 : f32 to vector<32x32xf32>
        %848 = arith.mulf %846, %847 : vector<32x32xf32>
        %849 = arith.mulf %848, %756 : vector<32x32xf32>
        %cst_348 = arith.constant 2.200000e+00 : f32
        %850 = vector.broadcast %cst_348 : f32 to vector<32x32xf32>
        %851 = arith.subf %850, %463 : vector<32x32xf32>
        %cst_349 = arith.constant 0.833333313 : f32
        %852 = vector.broadcast %cst_349 : f32 to vector<32x32xf32>
        %853 = arith.mulf %851, %852 : vector<32x32xf32>
        %854 = arith.mulf %853, %767 : vector<32x32xf32>
        %855 = arith.addf %849, %854 : vector<32x32xf32>
        %856 = tpu.concatenate %470, %778, %789, %800, %811, %822, %833, %844, %855 in 1 : vector<32x32xf32>, vector<32x32xf32>, vector<32x32xf32>, vector<32x32xf32>, vector<32x32xf32>, vector<32x32xf32>, vector<32x32xf32>, vector<32x32xf32>, vector<32x32xf32> -> vector<32x288xf32>
        %857 = arith.truncf %856 : vector<32x288xf32> to vector<32x288xbf16>
        %c0_350 = arith.constant 0 : index
        %c0_351 = arith.constant 0 : index
        %858 = vector.load %arg10[%c0_350, %c0_351] : memref<288x16xbf16, #tpu.memory_space<vmem>>, vector<288x16xbf16>
        %cst_352 = arith.constant dense<0.000000e+00> : vector<32x16xf32>
        %859 = tpu.matmul %857, %858, %cst_352 {dimension_numbers = #tpu.dot_dimension_numbers<[1], [0], [0], [1], [0, 0, 1, 1], [], []>} : vector<32x288xbf16>, vector<288x16xbf16>, vector<32x16xf32> -> vector<32x16xf32>
        %860 = arith.addf %859, %67 : vector<32x16xf32>
        %c0_353 = arith.constant 0 : index
        %c0_354 = arith.constant 0 : index
        %861 = vector.load %arg11[%c0_353, %c0_354] : memref<32x16xf32, #tpu.memory_space<vmem>>, vector<32x16xf32>
        tpu.vector_store %arg11[%c0_353, %c0_354], %860 {strides = array<i32>} : memref<32x16xf32, #tpu.memory_space<vmem>>, vector<32x16xf32>,
      } else {
      }
    } else {
    }
    return
  }
  func.func @transform_0(%arg0: i32, %arg1: i32, %arg2: i32) -> (i32, i32) {
    %c0_i32 = arith.constant 0 : i32
    %c0_i32_0 = arith.constant 0 : i32
    return %c0_i32, %arg2 : i32, i32
  }
  func.func @transform_1(%arg0: i32, %arg1: i32, %arg2: i32) -> (i32, i32) {
    %c0_i32 = arith.constant 0 : i32
    %c0_i32_0 = arith.constant 0 : i32
    return %c0_i32, %arg2 : i32, i32
  }
  func.func @transform_2(%arg0: i32, %arg1: i32, %arg2: i32) -> (i32, i32) {
    %0 = arith.muli %arg1, %arg2 : i32
    %c0_i32 = arith.constant 0 : i32
    %c0_i32_0 = arith.constant 0 : i32
    return %0, %c0_i32 : i32, i32
  }
  func.func @transform_3(%arg0: i32, %arg1: i32, %arg2: i32) -> (i32, i32) {
    %c0_i32 = arith.constant 0 : i32
    %c0_i32_0 = arith.constant 0 : i32
    return %arg0, %c0_i32 : i32, i32
  }
  func.func @transform_4(%arg0: i32, %arg1: i32, %arg2: i32) -> (i32, i32) {
    %c0_i32 = arith.constant 0 : i32
    %c0_i32_0 = arith.constant 0 : i32
    return %arg0, %c0_i32 : i32, i32
  }
  func.func @transform_5(%arg0: i32, %arg1: i32, %arg2: i32) -> (i32, i32) {
    %c0_i32 = arith.constant 0 : i32
    %c0_i32_0 = arith.constant 0 : i32
    return %arg0, %c0_i32 : i32, i32
  }
  func.func @transform_6(%arg0: i32, %arg1: i32, %arg2: i32) -> (i32, i32) {
    %c0_i32 = arith.constant 0 : i32
    %c0_i32_0 = arith.constant 0 : i32
    %c0_i32_1 = arith.constant 0 : i32
    return %c0_i32, %c0_i32_0 : i32, i32
  }
  func.func @transform_7(%arg0: i32, %arg1: i32, %arg2: i32) -> (i32, i32) {
    %c0_i32 = arith.constant 0 : i32
    %c0_i32_0 = arith.constant 0 : i32
    %c0_i32_1 = arith.constant 0 : i32
    return %c0_i32, %c0_i32_0 : i32, i32
  }
  func.func @transform_8(%arg0: i32, %arg1: i32, %arg2: i32) -> (i32, i32) {
    %c0_i32 = arith.constant 0 : i32
    %c0_i32_0 = arith.constant 0 : i32
    return %arg0, %c0_i32 : i32, i32
  }
}

</mosaic_0001>

<llo_original>
// kernel: tpu_custom_call.1
$region0: #{tpu_custom_call.1}
  #allocation0 [shape = 'u32[]', space=smem, size = 0x4, offset = 0x4, fixed_abs, tag = 'smem constant byte address 0x4 - core index']
  #allocation1 [shape = 'u32[144,128]{1,0:T(1,128)}', space=vmem, size = 0x12000, scoped, tag = 'internal scratch']
  #allocation2 [shape = 'f32[32,8]{1,0:T(8,128)}', space=vmem, size = 0x4000, scoped, tag = 'scratch operand']
  #allocation3 [shape = 'f32[32,8]{1,0:T(8,128)}', space=vmem, size = 0x4000, scoped, tag = 'scratch operand']
  #allocation4 [shape = 'f32[32,1]{1,0:T(8,128)}', space=vmem, size = 0x4000, scoped, tag = 'scratch operand']
  %s0 = inlined_call_operand.vmem [shape: f32[8,128], index: 0, kind: input, shape index: {}]
  %s1 = inlined_call_operand.vmem [shape: s32[1,128], index: 1, kind: input, shape index: {}]
  %s2 = inlined_call_operand.vmem [shape: bf16[128,8], index: 2, kind: input, shape index: {}]
  %s3 = inlined_call_operand.vmem [shape: f32[32,3], index: 3, kind: input, shape index: {}]
  %s4 = inlined_call_operand.vmem [shape: s32[32,1], index: 4, kind: input, shape index: {}]
  %s5 = inlined_call_operand.vmem [shape: f32[32,8], index: 5, kind: input, shape index: {}]
  %s6 = inlined_call_operand.vmem [shape: bf16[144,32], index: 6, kind: input, shape index: {}]
  %s7 = inlined_call_operand.vmem [shape: bf16[288,16], index: 7, kind: input, shape index: {}]
  %s8 = inlined_call_operand.vmem [shape: f32[32,16], index: 8, kind: output, shape index: {}]
  %s9 = sld [smem:[#allocation0]]
  $region85: #{tpu_custom_call.1} parent=0
    _
  %s11 = ssub.s32 1, %s9
  %s12 = scalar_select 0, %s11, %s9
  loop: start=0, step=1, limit=4
  $region2: #{tpu_custom_call.1} parent=0 // loop_pre_header
    _
  $region3: #{tpu_custom_call.1} parent=0 // loop_header
    %s14 = sphi 0, %s18
    %p15 = scmp.ge.s32.totalorder %s14, 4
    %s21 = sphi 0, %s40
    %s22 = sphi 0, %s36
    %s23 = sphi 0, %s32
    %s24 = sphi 0, %s21
    %s25 = sphi 0, %s22
    %s26 = sphi 0, %s23
    %s27 = sphi 0, %s24
    %s28 = sphi 0, %s25
    %s29 = sphi 0, %s26
    %s43 = sphi 0, %s45
    %s46 = sphi 0, %s43
    %s47 = sphi 0, %s46
    %s63 = sphi 0, %s47
    %s69 = sphi 0, %s71
    %s72 = sphi 0, %s69
    %s73 = sphi 0, %s72
    %s89 = sphi 0, %s73
    %s97 = sphi 0, %s99
    %s100 = sphi 0, %s97
    %s101 = sphi 0, %s100
    %s117 = sphi 0, %s101
    %s123 = sphi 0, %s125
    %s126 = sphi 0, %s123
    %s127 = sphi 0, %s126
    %s143 = sphi 0, %s127
    %s149 = sphi 0, %s151
    %s152 = sphi 0, %s149
    %s153 = sphi 0, %s152
    %s169 = sphi 0, %s153
    %s175 = sphi 0, %s177
    %s178 = sphi 0, %s175
    %s179 = sphi 0, %s178
    %s195 = sphi 0, %s179
    %s199 = sphi 0, %s199
    %s201 = sphi 0, %s199
    %s202 = sphi 0, %s201
    %s216 = sphi 0, %s202
    %s220 = sphi 0, %s220
    %s222 = sphi 0, %s220
    %s223 = sphi 0, %s222
    %s237 = sphi 0, %s223
    %s243 = sphi 0, %s245
    %s246 = sphi 0, %s243
    %s247 = sphi 0, %s246
    %s263 = sphi 0, %s247
  $region4: #{tpu_custom_call.1} parent=0 // loop_header_branch
    %17 = sbr.rel (%p15) target = $region8
  $region5: #{tpu_custom_call.1} parent=0 // loop_body
    %s19 = ssub.s32 %s14, 1
    %s20 = ssub.s32 %s14, 2
    %s30 = sadd.s32 1, %s23
    %p31 = scmp.ge.s32.totalorder %s30, 1
    %s32 = scalar_select %p31, 0, %s30
    %s33 = sadd.s32 1, %s22
    %s34 = scalar_select %p31, %s33, %s22
    %p35 = scmp.ge.s32.totalorder %s34, 2
    %s36 = scalar_select %p35, 0, %s34
    %s37 = sadd.s32 1, %s21
    %s38 = scalar_select %p35, %s37, %s21
    %p39 = scmp.ge.s32.totalorder %s38, 1
    %s40 = scalar_select %p39, 0, %s38
    %s41 = ssub.s32 %s23, %s32
    %p42 = scmp.eq.s32.totalorder %s41, 0
    %s44 = sadd.s32 %s43, 1
    %s45 = scalar_select %p42, %s43, %s44
    %p48 = pneg %p42
    %p49 = scmp.eq.s32.totalorder %s14, 1
    %p50 = por %p48, %p49
    %p51 = scmp.ne.s32.totalorder %s43, %s46
    %p52 = scmp.eq.s32.totalorder %s14, 0
    %p53 = por %p51, %p52
    %p54 = scmp.ne.s32.totalorder %s43, %s46
    %p55 = scmp.eq.s32.totalorder %s19, 1
    %p56 = por %p54, %p55
    %p57 = scmp.ne.s32.totalorder %s46, %s47
    %p58 = scmp.eq.s32.totalorder %s19, 0
    %p59 = por %p57, %p58
    %p60 = scmp.ne.s32.totalorder %s46, %s47
    %p61 = scmp.eq.s32.totalorder %s20, 1
    %p62 = por %p60, %p61
    %p64 = scmp.ne.s32.totalorder %s47, %s63
    %p65 = scmp.eq.s32.totalorder %s20, 0
    %p66 = por %p64, %p65
    %s67 = ssub.s32 %s23, %s32
    %p68 = scmp.eq.s32.totalorder %s67, 0
    %s70 = sadd.s32 %s69, 1
    %s71 = scalar_select %p68, %s69, %s70
    %p74 = pneg %p68
    %p75 = scmp.eq.s32.totalorder %s14, 1
    %p76 = por %p74, %p75
    %p77 = scmp.ne.s32.totalorder %s69, %s72
    %p78 = scmp.eq.s32.totalorder %s14, 0
    %p79 = por %p77, %p78
    %p80 = scmp.ne.s32.totalorder %s69, %s72
    %p81 = scmp.eq.s32.totalorder %s19, 1
    %p82 = por %p80, %p81
    %p83 = scmp.ne.s32.totalorder %s72, %s73
    %p84 = scmp.eq.s32.totalorder %s19, 0
    %p85 = por %p83, %p84
    %p86 = scmp.ne.s32.totalorder %s72, %s73
    %p87 = scmp.eq.s32.totalorder %s20, 1
    %p88 = por %p86, %p87
    %p90 = scmp.ne.s32.totalorder %s73, %s89
    %p91 = scmp.eq.s32.totalorder %s20, 0
    %p92 = por %p90, %p91
    %s93 = smul.u32 %s22, %s23
    %s94 = smul.u32 %s36, %s32
    %s95 = ssub.s32 %s93, %s94
    %p96 = scmp.eq.s32.totalorder %s95, 0
    %s98 = sadd.s32 %s97, 1
    %s99 = scalar_select %p96, %s97, %s98
    %p102 = pneg %p96
    %p103 = scmp.eq.s32.totalorder %s14, 1
    %p104 = por %p102, %p103
    %p105 = scmp.ne.s32.totalorder %s97, %s100
    %p106 = scmp.eq.s32.totalorder %s14, 0
    %p107 = por %p105, %p106
    %p108 = scmp.ne.s32.totalorder %s97, %s100
    %p109 = scmp.eq.s32.totalorder %s19, 1
    %p110 = por %p108, %p109
    %p111 = scmp.ne.s32.totalorder %s100, %s101
    %p112 = scmp.eq.s32.totalorder %s19, 0
    %p113 = por %p111, %p112
    %p114 = scmp.ne.s32.totalorder %s100, %s101
    %p115 = scmp.eq.s32.totalorder %s20, 1
    %p116 = por %p114, %p115
    %p118 = scmp.ne.s32.totalorder %s101, %s117
    %p119 = scmp.eq.s32.totalorder %s20, 0
    %p120 = por %p118, %p119
    %s121 = ssub.s32 %s21, %s40
    %p122 = scmp.eq.s32.totalorder %s121, 0
    %s124 = sadd.s32 %s123, 1
    %s125 = scalar_select %p122, %s123, %s124
    %p128 = pneg %p122
    %p129 = scmp.eq.s32.totalorder %s14, 1
    %p130 = por %p128, %p129
    %p131 = scmp.ne.s32.totalorder %s123, %s126
    %p132 = scmp.eq.s32.totalorder %s14, 0
    %p133 = por %p131, %p132
    %p134 = scmp.ne.s32.totalorder %s123, %s126
    %p135 = scmp.eq.s32.totalorder %s19, 1
    %p136 = por %p134, %p135
    %p137 = scmp.ne.s32.totalorder %s126, %s127
    %p138 = scmp.eq.s32.totalorder %s19, 0
    %p139 = por %p137, %p138
    %p140 = scmp.ne.s32.totalorder %s126, %s127
    %p141 = scmp.eq.s32.totalorder %s20, 1
    %p142 = por %p140, %p141
    %p144 = scmp.ne.s32.totalorder %s127, %s143
    %p145 = scmp.eq.s32.totalorder %s20, 0
    %p146 = por %p144, %p145
    %s147 = ssub.s32 %s21, %s40
    %p148 = scmp.eq.s32.totalorder %s147, 0
    %s150 = sadd.s32 %s149, 1
    %s151 = scalar_select %p148, %s149, %s150
    %p154 = pneg %p148
    %p155 = scmp.eq.s32.totalorder %s14, 1
    %p156 = por %p154, %p155
    %p157 = scmp.ne.s32.totalorder %s149, %s152
    %p158 = scmp.eq.s32.totalorder %s14, 0
    %p159 = por %p157, %p158
    %p160 = scmp.ne.s32.totalorder %s149, %s152
    %p161 = scmp.eq.s32.totalorder %s19, 1
    %p162 = por %p160, %p161
    %p163 = scmp.ne.s32.totalorder %s152, %s153
    %p164 = scmp.eq.s32.totalorder %s19, 0
    %p165 = por %p163, %p164
    %p166 = scmp.ne.s32.totalorder %s152, %s153
    %p167 = scmp.eq.s32.totalorder %s20, 1
    %p168 = por %p166, %p167
    %p170 = scmp.ne.s32.totalorder %s153, %s169
    %p171 = scmp.eq.s32.totalorder %s20, 0
    %p172 = por %p170, %p171
    %s173 = ssub.s32 %s21, %s40
    %p174 = scmp.eq.s32.totalorder %s173, 0
    %s176 = sadd.s32 %s175, 1
    %s177 = scalar_select %p174, %s175, %s176
    %p180 = pneg %p174
    %p181 = scmp.eq.s32.totalorder %s14, 1
    %p182 = por %p180, %p181
    %p183 = scmp.ne.s32.totalorder %s175, %s178
    %p184 = scmp.eq.s32.totalorder %s14, 0
    %p185 = por %p183, %p184
    %p186 = scmp.ne.s32.totalorder %s175, %s178
    %p187 = scmp.eq.s32.totalorder %s19, 1
    %p188 = por %p186, %p187
    %p189 = scmp.ne.s32.totalorder %s178, %s179
    %p190 = scmp.eq.s32.totalorder %s19, 0
    %p191 = por %p189, %p190
    %p192 = scmp.ne.s32.totalorder %s178, %s179
    %p193 = scmp.eq.s32.totalorder %s20, 1
    %p194 = por %p192, %p193
    %p196 = scmp.ne.s32.totalorder %s179, %s195
    %p197 = scmp.eq.s32.totalorder %s20, 0
    %p198 = por %p196, %p197
    %s200 = sadd.s32 %s199, 1
    %p203 = scmp.eq.s32.totalorder %s14, 1
    %p204 = scmp.ne.s32.totalorder %s199, %s201
    %p205 = scmp.eq.s32.totalorder %s14, 0
    %p206 = por %p204, %p205
    %p207 = scmp.ne.s32.totalorder %s199, %s201
    %p208 = scmp.eq.s32.totalorder %s19, 1
    %p209 = por %p207, %p208
    %p210 = scmp.ne.s32.totalorder %s201, %s202
    %p211 = scmp.eq.s32.totalorder %s19, 0
    %p212 = por %p210, %p211
    %p213 = scmp.ne.s32.totalorder %s201, %s202
    %p214 = scmp.eq.s32.totalorder %s20, 1
    %p215 = por %p213, %p214
    %p217 = scmp.ne.s32.totalorder %s202, %s216
    %p218 = scmp.eq.s32.totalorder %s20, 0
    %p219 = por %p217, %p218
    %s221 = sadd.s32 %s220, 1
    %p224 = scmp.eq.s32.totalorder %s14, 1
    %p225 = scmp.ne.s32.totalorder %s220, %s222
    %p226 = scmp.eq.s32.totalorder %s14, 0
    %p227 = por %p225, %p226
    %p228 = scmp.ne.s32.totalorder %s220, %s222
    %p229 = scmp.eq.s32.totalorder %s19, 1
    %p230 = por %p228, %p229
    %p231 = scmp.ne.s32.totalorder %s222, %s223
    %p232 = scmp.eq.s32.totalorder %s19, 0
    %p233 = por %p231, %p232
    %p234 = scmp.ne.s32.totalorder %s222, %s223
    %p235 = scmp.eq.s32.totalorder %s20, 1
    %p236 = por %p234, %p235
    %p238 = scmp.ne.s32.totalorder %s223, %s237
    %p239 = scmp.eq.s32.totalorder %s20, 0
    %p240 = por %p238, %p239
    %s241 = ssub.s32 %s21, %s40
    %p242 = scmp.eq.s32.totalorder %s241, 0
    %s244 = sadd.s32 %s243, 1
    %s245 = scalar_select %p242, %s243, %s244
    %p248 = pneg %p242
    %p249 = scmp.eq.s32.totalorder %s14, 1
    %p250 = por %p248, %p249
    %p251 = scmp.ne.s32.totalorder %s243, %s246
    %p252 = scmp.eq.s32.totalorder %s14, 0
    %p253 = por %p251, %p252
    %p254 = scmp.ne.s32.totalorder %s243, %s246
    %p255 = scmp.eq.s32.totalorder %s19, 1
    %p256 = por %p254, %p255
    %p257 = scmp.ne.s32.totalorder %s246, %s247
    %p258 = scmp.eq.s32.totalorder %s19, 0
    %p259 = por %p257, %p258
    %p260 = scmp.ne.s32.totalorder %s246, %s247
    %p261 = scmp.eq.s32.totalorder %s20, 1
    %p262 = por %p260, %p261
    %p264 = scmp.ne.s32.totalorder %s247, %s263
    %p265 = scmp.eq.s32.totalorder %s20, 0
    %p266 = por %p264, %p265
    %p267 = scmp.le.s32.totalorder 1, %s14
    %p268 = scmp.lt.s32.totalorder %s14, 3
    %p269 = pnand %p267, %p268
    %p270 = pneg %p269
    // Predicated region
    $region9: #{tpu_custom_call.1} parent=5 // pred_check
      _
    $region10: #{tpu_custom_call.1} parent=5 // pred_check_branch
      %272 = sbr.rel (%p269) target = $region12
    $region11: #{tpu_custom_call.1} parent=5 // pred_region
      %s273 = ssub.s32 %s14, 1
      // Predicated region
      $region13: #{tpu_custom_call.1} parent=11 // pred_check
        %p274 = pneg %p59
      $region14: #{tpu_custom_call.1} parent=11 // pred_check_branch
        %276 = sbr.rel (%p274) target = $region16
      $region15: #{tpu_custom_call.1} parent=11 // pred_region
        %p277 = scmp.lt.s32.totalorder %s26, 0
        %s278 = scalar_select %p277, %s26, 0
        %s279 = smul.addr %s278, 8
        %s280 = scalar_lea.vmem %s0, %s279
      $region16: #{tpu_custom_call.1} parent=11 // pred_fallthru
        _
      // Predicated region
      $region17: #{tpu_custom_call.1} parent=11 // pred_check
        %p281 = pneg %p85
      $region18: #{tpu_custom_call.1} parent=11 // pred_check_branch
        %283 = sbr.rel (%p281) target = $region20
      $region19: #{tpu_custom_call.1} parent=11 // pred_region
        %p284 = scmp.lt.s32.totalorder %s26, 0
        %s285 = scalar_select %p284, %s26, 0
        %s286 = scalar_lea.vmem %s1, %s285
      $region20: #{tpu_custom_call.1} parent=11 // pred_fallthru
        _
      // Predicated region
      $region21: #{tpu_custom_call.1} parent=11 // pred_check
        %p287 = pneg %p139
      $region22: #{tpu_custom_call.1} parent=11 // pred_check_branch
        %289 = sbr.rel (%p287) target = $region24
      $region23: #{tpu_custom_call.1} parent=11 // pred_region
        %s290 = smul.u32 4, %s24
        %p291 = scmp.lt.s32.totalorder %s290, 3
        %s292 = scalar_select %p291, %s290, 3
        %s293 = smul.addr %s292, 8
        %s294 = scalar_lea.vmem %s3, %s293
        %s295 = smul.u32 4, %s24
      $region24: #{tpu_custom_call.1} parent=11 // pred_fallthru
        _
      // Predicated region
      $region25: #{tpu_custom_call.1} parent=11 // pred_check
        %p296 = pneg %p165
      $region26: #{tpu_custom_call.1} parent=11 // pred_check_branch
        %298 = sbr.rel (%p296) target = $region28
      $region27: #{tpu_custom_call.1} parent=11 // pred_region
        %s299 = smul.u32 4, %s24
        %p300 = scmp.lt.s32.totalorder %s299, 3
        %s301 = scalar_select %p300, %s299, 3
        %s302 = smul.addr %s301, 8
        %s303 = scalar_lea.vmem %s4, %s302
        %s304 = smul.u32 4, %s24
      $region28: #{tpu_custom_call.1} parent=11 // pred_fallthru
        _
      // Predicated region
      $region29: #{tpu_custom_call.1} parent=11 // pred_check
        %p305 = pneg %p191
      $region30: #{tpu_custom_call.1} parent=11 // pred_check_branch
        %307 = sbr.rel (%p305) target = $region32
      $region31: #{tpu_custom_call.1} parent=11 // pred_region
        %s308 = smul.u32 4, %s24
        %p309 = scmp.lt.s32.totalorder %s308, 3
        %s310 = scalar_select %p309, %s308, 3
        %s311 = smul.addr %s310, 8
        %s312 = scalar_lea.vmem %s5, %s311
        %s313 = smul.u32 4, %s24
      $region32: #{tpu_custom_call.1} parent=11 // pred_fallthru
        _
      // Predicated region
      $region33: #{tpu_custom_call.1} parent=11 // pred_check
        %p314 = pneg %p212
      $region34: #{tpu_custom_call.1} parent=11 // pred_check_branch
        %316 = sbr.rel (%p314) target = $region36
      $region35: #{tpu_custom_call.1} parent=11 // pred_region
        _
      $region36: #{tpu_custom_call.1} parent=11 // pred_fallthru
        _
      // Predicated region
      $region37: #{tpu_custom_call.1} parent=11 // pred_check
        %p317 = pneg %p233
      $region38: #{tpu_custom_call.1} parent=11 // pred_check_branch
        %319 = sbr.rel (%p317) target = $region40
      $region39: #{tpu_custom_call.1} parent=11 // pred_region
        _
      $region40: #{tpu_custom_call.1} parent=11 // pred_fallthru
        _
    $region12: #{tpu_custom_call.1} parent=5 // pred_fallthru
      _
    %p320 = scmp.lt.s32.totalorder %s14, 2
    // Predicated region
    $region41: #{tpu_custom_call.1} parent=5 // pred_check
      %p321 = pneg %p320
    $region42: #{tpu_custom_call.1} parent=5 // pred_check_branch
      %323 = sbr.rel (%p321) target = $region44
    $region43: #{tpu_custom_call.1} parent=5 // pred_region
      // Predicated region
      $region45: #{tpu_custom_call.1} parent=43 // pred_check
        %p324 = pneg %p107
      $region46: #{tpu_custom_call.1} parent=43 // pred_check_branch
        %326 = sbr.rel (%p324) target = $region48
      $region47: #{tpu_custom_call.1} parent=43 // pred_region
        %s327 = smul.u32 %s22, %s23
        %s328 = smul.u32 16, %s327
        %p329 = scmp.lt.s32.totalorder %s328, 15
        %s330 = scalar_select %p329, %s328, 15
        %s331 = smul.addr %s330, 4
        %s332 = scalar_lea.vmem %s2, %s331
        %s333 = smul.u32 %s22, %s23
        %s334 = smul.u32 16, %s333
      $region48: #{tpu_custom_call.1} parent=43 // pred_fallthru
        _
    $region44: #{tpu_custom_call.1} parent=5 // pred_fallthru
      _
    %p335 = scmp.le.s32.totalorder 1, %s14
    %p336 = scmp.lt.s32.totalorder %s14, 3
    %p337 = pnand %p335, %p336
    %p338 = pneg %p337
    // Predicated region
    $region49: #{tpu_custom_call.1} parent=5 // pred_check
      _
    $region50: #{tpu_custom_call.1} parent=5 // pred_check_branch
      %340 = sbr.rel (%p337) target = $region52
    $region51: #{tpu_custom_call.1} parent=5 // pred_region
      %s341 = ssub.s32 %s14, 1
      %p342 = scmp.lt.s32.totalorder %s26, 0
      %s343 = scalar_select %p342, %s26, 0
      %s344 = smul.addr %s343, 8
      %s345 = scalar_lea.vmem %s0, %s344
      %p346 = pneg %p59
      %p347 = pneg %p56
      %p348 = scmp.lt.s32.totalorder %s26, 0
      %s349 = scalar_select %p348, %s26, 0
      %s350 = scalar_lea.vmem %s1, %s349
      %p351 = pneg %p85
      %p352 = pneg %p82
      %s353 = smul.u32 %s25, %s26
      %s354 = smul.u32 16, %s353
      %p355 = scmp.lt.s32.totalorder %s354, 15
      %s356 = scalar_select %p355, %s354, 15
      %s357 = smul.addr %s356, 4
      %s358 = scalar_lea.vmem %s2, %s357
      %p359 = pneg %p113
      %p360 = pneg %p110
      %s361 = smul.u32 4, %s24
      %p362 = scmp.lt.s32.totalorder %s361, 3
      %s363 = scalar_select %p362, %s361, 3
      %s364 = smul.addr %s363, 8
      %s365 = scalar_lea.vmem %s3, %s364
      %p366 = pneg %p139
      %p367 = pneg %p136
      %s368 = smul.u32 4, %s24
      %p369 = scmp.lt.s32.totalorder %s368, 3
      %s370 = scalar_select %p369, %s368, 3
      %s371 = smul.addr %s370, 8
      %s372 = scalar_lea.vmem %s4, %s371
      %p373 = pneg %p165
      %p374 = pneg %p162
      %s375 = smul.u32 4, %s24
      %p376 = scmp.lt.s32.totalorder %s375, 3
      %s377 = scalar_select %p376, %s375, 3
      %s378 = smul.addr %s377, 8
      %s379 = scalar_lea.vmem %s5, %s378
      %p380 = pneg %p191
      %p381 = pneg %p188
      %p382 = pneg %p212
      %p383 = pneg %p209
      %p384 = pneg %p233
      %p385 = pneg %p230
      %p386 = pneg %p259
      %p387 = pneg %p256
      %s388 = smul.u32 4, %s24
      %p389 = scmp.lt.s32.totalorder %s388, 3
      %s390 = scalar_select %p389, %s388, 3
      %s391 = smul.addr %s390, 8
      %s392 = scalar_lea.vmem %s8, %s391
      %p393 = scmp.lt.s32.totalorder %s26, 0
      %s394 = scalar_select %p393, %s26, 0
      %s395 = smul.addr %s394, 8
      %s396 = scalar_lea.vmem %s0, %s395
      %p397 = scmp.lt.s32.totalorder %s26, 0
      %s398 = scalar_select %p397, %s26, 0
      %s399 = scalar_lea.vmem %s1, %s398
      %s400 = smul.u32 %s25, %s26
      %s401 = smul.u32 16, %s400
      %p402 = scmp.lt.s32.totalorder %s401, 15
      %s403 = scalar_select %p402, %s401, 15
      %s404 = smul.addr %s403, 4
      %s405 = scalar_lea.vmem %s2, %s404
      %s406 = smul.u32 %s25, %s26
      %s407 = smul.u32 16, %s406
      %s408 = smul.u32 4, %s24
      %p409 = scmp.lt.s32.totalorder %s408, 3
      %s410 = scalar_select %p409, %s408, 3
      %s411 = smul.addr %s410, 8
      %s412 = scalar_lea.vmem %s3, %s411
      %s413 = smul.u32 4, %s24
      %s414 = smul.u32 4, %s24
      %p415 = scmp.lt.s32.totalorder %s414, 3
      %s416 = scalar_select %p415, %s414, 3
      %s417 = smul.addr %s416, 8
      %s418 = scalar_lea.vmem %s4, %s417
      %s419 = smul.u32 4, %s24
      %s420 = smul.u32 4, %s24
      %p421 = scmp.lt.s32.totalorder %s420, 3
      %s422 = scalar_select %p421, %s420, 3
      %s423 = smul.addr %s422, 8
      %s424 = scalar_lea.vmem %s5, %s423
      %s425 = smul.u32 4, %s24
      %s426 = smul.u32 4, %s24
      %p427 = scmp.lt.s32.totalorder %s426, 3
      %s428 = scalar_select %p427, %s426, 3
      %s429 = smul.addr %s428, 8
      %s430 = scalar_lea.vmem %s8, %s429
      %s431 = smul.u32 4, %s24
      %p433 = scmp.eq.s32.totalorder %s25, 0
      // Predicated region
      $region53: #{tpu_custom_call.1} parent=51 // pred_check
        %p434 = pneg %p433
      $region54: #{tpu_custom_call.1} parent=51 // pred_check_branch
        %436 = sbr.rel (%p434) target = $region56
      $region55: #{tpu_custom_call.1} parent=51 // pred_region
        %p437 = scmp.eq.s32.totalorder %s26, 0
        // Predicated region
        $region57: #{tpu_custom_call.1} parent=55 // pred_check
          %p438 = pneg %p437
        $region58: #{tpu_custom_call.1} parent=55 // pred_check_branch
          %440 = sbr.rel (%p438) target = $region60
        $region59: #{tpu_custom_call.1} parent=55 // pred_region
          %vm441 = vcmask 64512
          %442 = vst.msk [vmem:[#allocation2] sm:$0xff] %vm441, 1e+30
          %443 = vst.msk [vmem:[#allocation2 + $0x8] sm:$0xff] %vm441, 1e+30
          %444 = vst.msk [vmem:[#allocation2 + $0x10] sm:$0xff] %vm441, 1e+30
          %445 = vst.msk [vmem:[#allocation2 + $0x18] sm:$0xff] %vm441, 1e+30
        $region60: #{tpu_custom_call.1} parent=55 // pred_fallthru
          _
        %v446 = vld [vmem:[%s412] sm:$0xff]
        %v447 = vld [vmem:[%s412 + $0x8] sm:$0xff]
        %v448 = vld [vmem:[%s412 + $0x10] sm:$0xff]
        %v449 = vld [vmem:[%s412 + $0x18] sm:$0xff]
        %v450 = vld [vmem:[%s396] sm:$0x1]
        %452 = vset.pattern.permute.xlu0 0
        %453 = vperm.xlu0 %452, %v446
        %v454 = vpop.permute.xlu0 %453
        %457 = vset.pattern.permute.xlu0 0
        %458 = vperm.xlu0 %457, %v447
        %v459 = vpop.permute.xlu0 %458
        %462 = vset.pattern.permute.xlu0 0
        %463 = vperm.xlu0 %462, %v448
        %v464 = vpop.permute.xlu0 %463
        %467 = vset.pattern.permute.xlu0 0
        %468 = vperm.xlu0 %467, %v449
        %v469 = vpop.permute.xlu0 %468
        %v471 = vlaneseq
        %v472 = vshrl.u32 %v471, 7
        %v473 = vsub.s32 0, %v472
        %v474 = vrot.slane %v450, %v473
        %v475 = vsub.f32 %v454, %v474
        %v476 = vsub.f32 %v459, %v474
        %v477 = vsub.f32 %v464, %v474
        %v478 = vsub.f32 %v469, %v474
        %v479 = vmul.f32 %v475, %v475
        %v480 = vmul.f32 %v476, %v476
        %v481 = vmul.f32 %v477, %v477
        %v482 = vmul.f32 %v478, %v478
        %v483 = vadd.f32 %v479, 0.0
        %v484 = vadd.f32 %v480, 0.0
        %v485 = vadd.f32 %v481, 0.0
        %v486 = vadd.f32 %v482, 0.0
        %v487 = vld [vmem:[%s396 + $0x1] sm:$0x1]
        %488 = vset.pattern.permute.xlu0 1
        %489 = vperm.xlu0 %488, %v446
        %v490 = vpop.permute.xlu0 %489
        %492 = vset.pattern.permute.xlu0 1
        %493 = vperm.xlu0 %492, %v447
        %v494 = vpop.permute.xlu0 %493
        %496 = vset.pattern.permute.xlu0 1
        %497 = vperm.xlu0 %496, %v448
        %v498 = vpop.permute.xlu0 %497
        %500 = vset.pattern.permute.xlu0 1
        %501 = vperm.xlu0 %500, %v449
        %v502 = vpop.permute.xlu0 %501
        %v504 = vlaneseq
        %v505 = vshrl.u32 %v504, 7
        %v506 = vsub.s32 0, %v505
        %v507 = vrot.slane %v487, %v506
        %v508 = vsub.f32 %v490, %v507
        %v509 = vsub.f32 %v494, %v507
        %v510 = vsub.f32 %v498, %v507
        %v511 = vsub.f32 %v502, %v507
        %v512 = vmul.f32 %v508, %v508
        %v513 = vmul.f32 %v509, %v509
        %v514 = vmul.f32 %v510, %v510
        %v515 = vmul.f32 %v511, %v511
        %v516 = vadd.f32 %v483, %v512
        %v517 = vadd.f32 %v484, %v513
        %v518 = vadd.f32 %v485, %v514
        %v519 = vadd.f32 %v486, %v515
        %v520 = vld [vmem:[%s396 + $0x2] sm:$0x1]
        %521 = vset.pattern.permute.xlu0 2
        %522 = vperm.xlu0 %521, %v446
        %v523 = vpop.permute.xlu0 %522
        %525 = vset.pattern.permute.xlu0 2
        %526 = vperm.xlu0 %525, %v447
        %v527 = vpop.permute.xlu0 %526
        %529 = vset.pattern.permute.xlu0 2
        %530 = vperm.xlu0 %529, %v448
        %v531 = vpop.permute.xlu0 %530
        %533 = vset.pattern.permute.xlu0 2
        %534 = vperm.xlu0 %533, %v449
        %v535 = vpop.permute.xlu0 %534
        %v537 = vlaneseq
        %v538 = vshrl.u32 %v537, 7
        %v539 = vsub.s32 0, %v538
        %v540 = vrot.slane %v520, %v539
        %v541 = vsub.f32 %v523, %v540
        %v542 = vsub.f32 %v527, %v540
        %v543 = vsub.f32 %v531, %v540
        %v544 = vsub.f32 %v535, %v540
        %v545 = vmul.f32 %v541, %v541
        %v546 = vmul.f32 %v542, %v542
        %v547 = vmul.f32 %v543, %v543
        %v548 = vmul.f32 %v544, %v544
        %v549 = vadd.f32 %v516, %v545
        %v550 = vadd.f32 %v517, %v546
        %v551 = vadd.f32 %v518, %v547
        %v552 = vadd.f32 %v519, %v548
        %v553 = vld [vmem:[%s418] sm:$0xff]
        %v554 = vld [vmem:[%s418 + $0x8] sm:$0xff]
        %v555 = vld [vmem:[%s418 + $0x10] sm:$0xff]
        %v556 = vld [vmem:[%s418 + $0x18] sm:$0xff]
        %v557 = vld [vmem:[%s399] sm:$0x1]
        %558 = vset.pattern.permute.xlu0 0
        %559 = vperm.xlu0 %558, %v553
        %v560 = vpop.permute.xlu0 %559
        %561 = vset.pattern.permute.xlu0 0
        %562 = vperm.xlu0 %561, %v554
        %v563 = vpop.permute.xlu0 %562
        %564 = vset.pattern.permute.xlu0 0
        %565 = vperm.xlu0 %564, %v555
        %v566 = vpop.permute.xlu0 %565
        %567 = vset.pattern.permute.xlu0 0
        %568 = vperm.xlu0 %567, %v556
        %v569 = vpop.permute.xlu0 %568
        %v570 = vlaneseq
        %v571 = vshrl.u32 %v570, 7
        %v572 = vsub.s32 0, %v571
        %v573 = vrot.slane %v557, %v572
        %vm574 = vcmp.eq.s32.totalorder %v560, %v573
        %vm575 = vcmp.eq.s32.totalorder %v563, %v573
        %vm576 = vcmp.eq.s32.totalorder %v566, %v573
        %vm577 = vcmp.eq.s32.totalorder %v569, %v573
        %v578 = vsel %vm574, %v549, 1e+30
        %v579 = vsel %vm575, %v550, 1e+30
        %v580 = vsel %vm576, %v551, 1e+30
        %v581 = vsel %vm577, %v552, 1e+30
        %v582 = vld [vmem:[#allocation2] sm:$0xff]
        %v583 = vld [vmem:[#allocation2 + $0x8] sm:$0xff]
        %v584 = vld [vmem:[#allocation2 + $0x10] sm:$0xff]
        %v585 = vld [vmem:[#allocation2 + $0x18] sm:$0xff]
        %590 = vrot.lane.b32.xlu0 %v578, 8
        %v591 = vpop.permute.xlu0 %590
        %592 = vrot.lane.b32.xlu0 %v579, 8
        %v593 = vpop.permute.xlu0 %592
        %594 = vrot.lane.b32.xlu0 %v580, 8
        %v595 = vpop.permute.xlu0 %594
        %596 = vrot.lane.b32.xlu0 %v581, 8
        %v597 = vpop.permute.xlu0 %596
        %vm602 = vcmask 64512
        %v603 = vsel %vm602, %v582, %v591
        %v604 = vsel %vm602, %v583, %v593
        %v605 = vsel %vm602, %v584, %v595
        %v606 = vsel %vm602, %v585, %v597
        %v607 = vlaneseq
        %v608 = vand.u32 %v607, 127
        %v609 = vadd.s32 %v608, 128
        %v610 = vsel %vm602, %v591, inf
        %v611 = vmin.f32 %v603, %v610
        %612 = vmin.xlane.f32.xlu0 %v611
        %v613 = vpop.xlane.xlu0 %612
        %v614 = vsel %vm602, %v593, inf
        %v615 = vmin.f32 %v604, %v614
        %616 = vmin.xlane.f32.xlu0 %v615
        %v617 = vpop.xlane.xlu0 %616
        %v618 = vsel %vm602, %v595, inf
        %v619 = vmin.f32 %v605, %v618
        %620 = vmin.xlane.f32.xlu0 %v619
        %v621 = vpop.xlane.xlu0 %620
        %v622 = vsel %vm602, %v597, inf
        %v623 = vmin.f32 %v606, %v622
        %624 = vmin.xlane.f32.xlu0 %v623
        %v625 = vpop.xlane.xlu0 %624
        %vm626 = vcmp.le.f32.partialorder %v603, %v613
        %vm627 = vcmp.le.f32.partialorder %v591, %v613
        %vm628 = vcmp.le.f32.partialorder %v604, %v617
        %vm629 = vcmp.le.f32.partialorder %v593, %v617
        %vm630 = vcmp.le.f32.partialorder %v605, %v621
        %vm631 = vcmp.le.f32.partialorder %v595, %v621
        %vm632 = vcmp.le.f32.partialorder %v606, %v625
        %vm633 = vcmp.le.f32.partialorder %v597, %v625
        %v634 = vsel %vm626, %v608, 136
        %v635 = vsel %vm627, %v609, 136
        %v636 = vsel %vm628, %v608, 136
        %v637 = vsel %vm629, %v609, 136
        %v638 = vsel %vm630, %v608, 136
        %v639 = vsel %vm631, %v609, 136
        %v640 = vsel %vm632, %v608, 136
        %v641 = vsel %vm633, %v609, 136
        %v642 = vsel %vm602, %v635, 2147483647
        %vm643 = vcmp.lt.s32.totalorder %v634, %v642
        %v644 = vsel %vm643, %v634, %v642
        %v645 = vand.u32 %v644, 65535
        %v646 = vshra.s32 %v644, 16
        %v647 = vcvt.s32.f32 %v645
        %v648 = vcvt.s32.f32 %v646
        %649 = vmin.xlane.f32.xlu0 %v648
        %v650 = vpop.xlane.xlu0 %649
        %vm651 = vcmp.eq.f32.partialorder %v648, %v650
        %v652 = vsel %vm651, %v647, inf
        %653 = vmin.xlane.f32.xlu0 %v652
        %v654 = vpop.xlane.xlu0 %653
        %v655 = vcvt.f32.s32 %v654
        %v656 = vcvt.f32.s32 %v650
        %v657 = vshll.u32 %v656, 16
        %v658 = vadd.s32 %v657, %v655
        %v659 = vsel %vm602, %v637, 2147483647
        %vm660 = vcmp.lt.s32.totalorder %v636, %v659
        %v661 = vsel %vm660, %v636, %v659
        %v662 = vand.u32 %v661, 65535
        %v663 = vshra.s32 %v661, 16
        %v664 = vcvt.s32.f32 %v662
        %v665 = vcvt.s32.f32 %v663
        %666 = vmin.xlane.f32.xlu0 %v665
        %v667 = vpop.xlane.xlu0 %666
        %vm668 = vcmp.eq.f32.partialorder %v665, %v667
        %v669 = vsel %vm668, %v664, inf
        %670 = vmin.xlane.f32.xlu0 %v669
        %v671 = vpop.xlane.xlu0 %670
        %v672 = vcvt.f32.s32 %v671
        %v673 = vcvt.f32.s32 %v667
        %v674 = vshll.u32 %v673, 16
        %v675 = vadd.s32 %v674, %v672
        %v676 = vsel %vm602, %v639, 2147483647
        %vm677 = vcmp.lt.s32.totalorder %v638, %v676
        %v678 = vsel %vm677, %v638, %v676
        %v679 = vand.u32 %v678, 65535
        %v680 = vshra.s32 %v678, 16
        %v681 = vcvt.s32.f32 %v679
        %v682 = vcvt.s32.f32 %v680
        %683 = vmin.xlane.f32.xlu0 %v682
        %v684 = vpop.xlane.xlu0 %683
        %vm685 = vcmp.eq.f32.partialorder %v682, %v684
        %v686 = vsel %vm685, %v681, inf
        %687 = vmin.xlane.f32.xlu0 %v686
        %v688 = vpop.xlane.xlu0 %687
        %v689 = vcvt.f32.s32 %v688
        %v690 = vcvt.f32.s32 %v684
        %v691 = vshll.u32 %v690, 16
        %v692 = vadd.s32 %v691, %v689
        %v693 = vsel %vm602, %v641, 2147483647
        %vm694 = vcmp.lt.s32.totalorder %v640, %v693
        %v695 = vsel %vm694, %v640, %v693
        %v696 = vand.u32 %v695, 65535
        %v697 = vshra.s32 %v695, 16
        %v698 = vcvt.s32.f32 %v696
        %v699 = vcvt.s32.f32 %v697
        %700 = vmin.xlane.f32.xlu0 %v699
        %v701 = vpop.xlane.xlu0 %700
        %vm702 = vcmp.eq.f32.partialorder %v699, %v701
        %v703 = vsel %vm702, %v698, inf
        %704 = vmin.xlane.f32.xlu0 %v703
        %v705 = vpop.xlane.xlu0 %704
        %v706 = vcvt.f32.s32 %v705
        %v707 = vcvt.f32.s32 %v701
        %v708 = vshll.u32 %v707, 16
        %v709 = vadd.s32 %v708, %v706
        %vm710 = vcmp.eq.s32.totalorder %v608, %v658
        %vm711 = vcmp.eq.s32.totalorder %v609, %v658
        %vm712 = vcmp.eq.s32.totalorder %v608, %v675
        %vm713 = vcmp.eq.s32.totalorder %v609, %v675
        %vm714 = vcmp.eq.s32.totalorder %v608, %v692
        %vm715 = vcmp.eq.s32.totalorder %v609, %v692
        %vm716 = vcmp.eq.s32.totalorder %v608, %v709
        %vm717 = vcmp.eq.s32.totalorder %v609, %v709
        %v718 = vsel %vm710, 1e+30, %v603
        %v719 = vsel %vm711, 1e+30, %v591
        %v720 = vsel %vm712, 1e+30, %v604
        %v721 = vsel %vm713, 1e+30, %v593
        %v722 = vsel %vm714, 1e+30, %v605
        %v723 = vsel %vm715, 1e+30, %v595
        %v724 = vsel %vm716, 1e+30, %v606
        %v725 = vsel %vm717, 1e+30, %v597
        %v726 = vsel %vm602, %v719, inf
        %v727 = vmin.f32 %v718, %v726
        %728 = vmin.xlane.f32.xlu0 %v727
        %v729 = vpop.xlane.xlu0 %728
        %v730 = vsel %vm602, %v721, inf
        %v731 = vmin.f32 %v720, %v730
        %732 = vmin.xlane.f32.xlu0 %v731
        %v733 = vpop.xlane.xlu0 %732
        %v734 = vsel %vm602, %v723, inf
        %v735 = vmin.f32 %v722, %v734
        %736 = vmin.xlane.f32.xlu0 %v735
        %v737 = vpop.xlane.xlu0 %736
        %v738 = vsel %vm602, %v725, inf
        %v739 = vmin.f32 %v724, %v738
        %740 = vmin.xlane.f32.xlu0 %v739
        %v741 = vpop.xlane.xlu0 %740
        %vm742 = vcmp.le.f32.partialorder %v718, %v729
        %vm743 = vcmp.le.f32.partialorder %v719, %v729
        %vm744 = vcmp.le.f32.partialorder %v720, %v733
        %vm745 = vcmp.le.f32.partialorder %v721, %v733
        %vm746 = vcmp.le.f32.partialorder %v722, %v737
        %vm747 = vcmp.le.f32.partialorder %v723, %v737
        %vm748 = vcmp.le.f32.partialorder %v724, %v741
        %vm749 = vcmp.le.f32.partialorder %v725, %v741
        %v750 = vsel %vm742, %v608, 136
        %v751 = vsel %vm743, %v609, 136
        %v752 = vsel %vm744, %v608, 136
        %v753 = vsel %vm745, %v609, 136
        %v754 = vsel %vm746, %v608, 136
        %v755 = vsel %vm747, %v609, 136
        %v756 = vsel %vm748, %v608, 136
        %v757 = vsel %vm749, %v609, 136
        %v758 = vsel %vm602, %v751, 2147483647
        %vm759 = vcmp.lt.s32.totalorder %v750, %v758
        %v760 = vsel %vm759, %v750, %v758
        %v761 = vand.u32 %v760, 65535
        %v762 = vshra.s32 %v760, 16
        %v763 = vcvt.s32.f32 %v761
        %v764 = vcvt.s32.f32 %v762
        %765 = vmin.xlane.f32.xlu0 %v764
        %v766 = vpop.xlane.xlu0 %765
        %vm767 = vcmp.eq.f32.partialorder %v764, %v766
        %v768 = vsel %vm767, %v763, inf
        %769 = vmin.xlane.f32.xlu0 %v768
        %v770 = vpop.xlane.xlu0 %769
        %v771 = vcvt.f32.s32 %v770
        %v772 = vcvt.f32.s32 %v766
        %v773 = vshll.u32 %v772, 16
        %v774 = vadd.s32 %v773, %v771
        %v775 = vsel %vm602, %v753, 2147483647
        %vm776 = vcmp.lt.s32.totalorder %v752, %v775
        %v777 = vsel %vm776, %v752, %v775
        %v778 = vand.u32 %v777, 65535
        %v779 = vshra.s32 %v777, 16
        %v780 = vcvt.s32.f32 %v778
        %v781 = vcvt.s32.f32 %v779
        %782 = vmin.xlane.f32.xlu0 %v781
        %v783 = vpop.xlane.xlu0 %782
        %vm784 = vcmp.eq.f32.partialorder %v781, %v783
        %v785 = vsel %vm784, %v780, inf
        %786 = vmin.xlane.f32.xlu0 %v785
        %v787 = vpop.xlane.xlu0 %786
        %v788 = vcvt.f32.s32 %v787
        %v789 = vcvt.f32.s32 %v783
        %v790 = vshll.u32 %v789, 16
        %v791 = vadd.s32 %v790, %v788
        %v792 = vsel %vm602, %v755, 2147483647
        %vm793 = vcmp.lt.s32.totalorder %v754, %v792
        %v794 = vsel %vm793, %v754, %v792
        %v795 = vand.u32 %v794, 65535
        %v796 = vshra.s32 %v794, 16
        %v797 = vcvt.s32.f32 %v795
        %v798 = vcvt.s32.f32 %v796
        %799 = vmin.xlane.f32.xlu0 %v798
        %v800 = vpop.xlane.xlu0 %799
        %vm801 = vcmp.eq.f32.partialorder %v798, %v800
        %v802 = vsel %vm801, %v797, inf
        %803 = vmin.xlane.f32.xlu0 %v802
        %v804 = vpop.xlane.xlu0 %803
        %v805 = vcvt.f32.s32 %v804
        %v806 = vcvt.f32.s32 %v800
        %v807 = vshll.u32 %v806, 16
        %v808 = vadd.s32 %v807, %v805
        %v809 = vsel %vm602, %v757, 2147483647
        %vm810 = vcmp.lt.s32.totalorder %v756, %v809
        %v811 = vsel %vm810, %v756, %v809
        %v812 = vand.u32 %v811, 65535
        %v813 = vshra.s32 %v811, 16
        %v814 = vcvt.s32.f32 %v812
        %v815 = vcvt.s32.f32 %v813
        %816 = vmin.xlane.f32.xlu0 %v815
        %v817 = vpop.xlane.xlu0 %816
        %vm818 = vcmp.eq.f32.partialorder %v815, %v817
        %v819 = vsel %vm818, %v814, inf
        %820 = vmin.xlane.f32.xlu0 %v819
        %v821 = vpop.xlane.xlu0 %820
        %v822 = vcvt.f32.s32 %v821
        %v823 = vcvt.f32.s32 %v817
        %v824 = vshll.u32 %v823, 16
        %v825 = vadd.s32 %v824, %v822
        %vm826 = vcmp.eq.s32.totalorder %v608, %v774
        %vm827 = vcmp.eq.s32.totalorder %v609, %v774
        %vm828 = vcmp.eq.s32.totalorder %v608, %v791
        %vm829 = vcmp.eq.s32.totalorder %v609, %v791
        %vm830 = vcmp.eq.s32.totalorder %v608, %v808
        %vm831 = vcmp.eq.s32.totalorder %v609, %v808
        %vm832 = vcmp.eq.s32.totalorder %v608, %v825
        %vm833 = vcmp.eq.s32.totalorder %v609, %v825
        %v834 = vsel %vm826, 1e+30, %v718
        %v835 = vsel %vm827, 1e+30, %v719
        %v836 = vsel %vm828, 1e+30, %v720
        %v837 = vsel %vm829, 1e+30, %v721
        %v838 = vsel %vm830, 1e+30, %v722
        %v839 = vsel %vm831, 1e+30, %v723
        %v840 = vsel %vm832, 1e+30, %v724
        %v841 = vsel %vm833, 1e+30, %v725
        %v842 = vsel %vm602, %v835, inf
        %v843 = vmin.f32 %v834, %v842
        %844 = vmin.xlane.f32.xlu0 %v843
        %v845 = vpop.xlane.xlu0 %844
        %v846 = vsel %vm602, %v837, inf
        %v847 = vmin.f32 %v836, %v846
        %848 = vmin.xlane.f32.xlu0 %v847
        %v849 = vpop.xlane.xlu0 %848
        %v850 = vsel %vm602, %v839, inf
        %v851 = vmin.f32 %v838, %v850
        %852 = vmin.xlane.f32.xlu0 %v851
        %v853 = vpop.xlane.xlu0 %852
        %v854 = vsel %vm602, %v841, inf
        %v855 = vmin.f32 %v840, %v854
        %856 = vmin.xlane.f32.xlu0 %v855
        %v857 = vpop.xlane.xlu0 %856
        %vm858 = vcmask 7168
        %v859 = vsel %vm858, %v613, %v729
        %v860 = vsel %vm858, %v617, %v733
        %v861 = vsel %vm858, %v621, %v737
        %v862 = vsel %vm858, %v625, %v741
        %vm863 = vcmask 15360
        %v864 = vsel %vm863, %v859, %v845
        %v865 = vsel %vm863, %v860, %v849
        %v866 = vsel %vm863, %v861, %v853
        %v867 = vsel %vm863, %v862, %v857
        %vm868 = vcmask 23552
        %v869 = vsel %vm868, %v864, 1e+30
        %v870 = vsel %vm868, %v865, 1e+30
        %v871 = vsel %vm868, %v866, 1e+30
        %v872 = vsel %vm868, %v867, 1e+30
        %873 = vst.msk [vmem:[#allocation2] sm:$0xff] %vm602, %v869
        %874 = vst.msk [vmem:[#allocation2 + $0x8] sm:$0xff] %vm602, %v870
        %875 = vst.msk [vmem:[#allocation2 + $0x10] sm:$0xff] %vm602, %v871
        %876 = vst.msk [vmem:[#allocation2 + $0x18] sm:$0xff] %vm602, %v872
      $region56: #{tpu_custom_call.1} parent=51 // pred_fallthru
        _
      %p877 = scmp.eq.s32.totalorder %s25, 1
      // Predicated region
      $region61: #{tpu_custom_call.1} parent=51 // pred_check
        %p878 = pneg %p877
      $region62: #{tpu_custom_call.1} parent=51 // pred_check_branch
        %880 = sbr.rel (%p878) target = $region64
      $region63: #{tpu_custom_call.1} parent=51 // pred_region
        %p881 = scmp.eq.s32.totalorder %s26, 0
        // Predicated region
        $region65: #{tpu_custom_call.1} parent=63 // pred_check
          %p882 = pneg %p881
        $region66: #{tpu_custom_call.1} parent=63 // pred_check_branch
          %884 = sbr.rel (%p882) target = $region68
        $region67: #{tpu_custom_call.1} parent=63 // pred_region
          %vm885 = vcmask 64512
          %886 = vst.msk [vmem:[#allocation3] sm:$0xff] %vm885, 0.0
          %887 = vst.msk [vmem:[#allocation3 + $0x8] sm:$0xff] %vm885, 0.0
          %888 = vst.msk [vmem:[#allocation3 + $0x10] sm:$0xff] %vm885, 0.0
          %889 = vst.msk [vmem:[#allocation3 + $0x18] sm:$0xff] %vm885, 0.0
          %vm890 = vcmask 7168
          %891 = vst.msk [vmem:[#allocation4] sm:$0xff] %vm890, 0.0
          %892 = vst.msk [vmem:[#allocation4 + $0x8] sm:$0xff] %vm890, 0.0
          %893 = vst.msk [vmem:[#allocation4 + $0x10] sm:$0xff] %vm890, 0.0
          %894 = vst.msk [vmem:[#allocation4 + $0x18] sm:$0xff] %vm890, 0.0
        $region68: #{tpu_custom_call.1} parent=63 // pred_fallthru
          _
        %v895 = vld [vmem:[%s412] sm:$0xff]
        %v896 = vld [vmem:[%s412 + $0x8] sm:$0xff]
        %v897 = vld [vmem:[%s412 + $0x10] sm:$0xff]
        %v898 = vld [vmem:[%s412 + $0x18] sm:$0xff]
        %v899 = vld [vmem:[%s396] sm:$0x1]
        %901 = vset.pattern.permute.xlu0 0
        %902 = vperm.xlu0 %901, %v895
        %v903 = vpop.permute.xlu0 %902
        %906 = vset.pattern.permute.xlu0 0
        %907 = vperm.xlu0 %906, %v896
        %v908 = vpop.permute.xlu0 %907
        %911 = vset.pattern.permute.xlu0 0
        %912 = vperm.xlu0 %911, %v897
        %v913 = vpop.permute.xlu0 %912
        %916 = vset.pattern.permute.xlu0 0
        %917 = vperm.xlu0 %916, %v898
        %v918 = vpop.permute.xlu0 %917
        %v920 = vlaneseq
        %v921 = vshrl.u32 %v920, 7
        %v922 = vsub.s32 0, %v921
        %v923 = vrot.slane %v899, %v922
        %v924 = vsub.f32 %v903, %v923
        %v925 = vsub.f32 %v908, %v923
        %v926 = vsub.f32 %v913, %v923
        %v927 = vsub.f32 %v918, %v923
        %v928 = vmul.f32 %v924, %v924
        %v929 = vmul.f32 %v925, %v925
        %v930 = vmul.f32 %v926, %v926
        %v931 = vmul.f32 %v927, %v927
        %v932 = vadd.f32 %v928, 0.0
        %v933 = vadd.f32 %v929, 0.0
        %v934 = vadd.f32 %v930, 0.0
        %v935 = vadd.f32 %v931, 0.0
        %v936 = vld [vmem:[%s396 + $0x1] sm:$0x1]
        %937 = vset.pattern.permute.xlu0 1
        %938 = vperm.xlu0 %937, %v895
        %v939 = vpop.permute.xlu0 %938
        %941 = vset.pattern.permute.xlu0 1
        %942 = vperm.xlu0 %941, %v896
        %v943 = vpop.permute.xlu0 %942
        %945 = vset.pattern.permute.xlu0 1
        %946 = vperm.xlu0 %945, %v897
        %v947 = vpop.permute.xlu0 %946
        %949 = vset.pattern.permute.xlu0 1
        %950 = vperm.xlu0 %949, %v898
        %v951 = vpop.permute.xlu0 %950
        %v953 = vlaneseq
        %v954 = vshrl.u32 %v953, 7
        %v955 = vsub.s32 0, %v954
        %v956 = vrot.slane %v936, %v955
        %v957 = vsub.f32 %v939, %v956
        %v958 = vsub.f32 %v943, %v956
        %v959 = vsub.f32 %v947, %v956
        %v960 = vsub.f32 %v951, %v956
        %v961 = vmul.f32 %v957, %v957
        %v962 = vmul.f32 %v958, %v958
        %v963 = vmul.f32 %v959, %v959
        %v964 = vmul.f32 %v960, %v960
        %v965 = vadd.f32 %v932, %v961
        %v966 = vadd.f32 %v933, %v962
        %v967 = vadd.f32 %v934, %v963
        %v968 = vadd.f32 %v935, %v964
        %v969 = vld [vmem:[%s396 + $0x2] sm:$0x1]
        %970 = vset.pattern.permute.xlu0 2
        %971 = vperm.xlu0 %970, %v895
        %v972 = vpop.permute.xlu0 %971
        %974 = vset.pattern.permute.xlu0 2
        %975 = vperm.xlu0 %974, %v896
        %v976 = vpop.permute.xlu0 %975
        %978 = vset.pattern.permute.xlu0 2
        %979 = vperm.xlu0 %978, %v897
        %v980 = vpop.permute.xlu0 %979
        %982 = vset.pattern.permute.xlu0 2
        %983 = vperm.xlu0 %982, %v898
        %v984 = vpop.permute.xlu0 %983
        %v986 = vlaneseq
        %v987 = vshrl.u32 %v986, 7
        %v988 = vsub.s32 0, %v987
        %v989 = vrot.slane %v969, %v988
        %v990 = vsub.f32 %v972, %v989
        %v991 = vsub.f32 %v976, %v989
        %v992 = vsub.f32 %v980, %v989
        %v993 = vsub.f32 %v984, %v989
        %v994 = vmul.f32 %v990, %v990
        %v995 = vmul.f32 %v991, %v991
        %v996 = vmul.f32 %v992, %v992
        %v997 = vmul.f32 %v993, %v993
        %v998 = vadd.f32 %v965, %v994
        %v999 = vadd.f32 %v966, %v995
        %v1000 = vadd.f32 %v967, %v996
        %v1001 = vadd.f32 %v968, %v997
        %v1002 = vld [vmem:[%s418] sm:$0xff]
        %v1003 = vld [vmem:[%s418 + $0x8] sm:$0xff]
        %v1004 = vld [vmem:[%s418 + $0x10] sm:$0xff]
        %v1005 = vld [vmem:[%s418 + $0x18] sm:$0xff]
        %v1006 = vld [vmem:[%s399] sm:$0x1]
        %1007 = vset.pattern.permute.xlu0 0
        %1008 = vperm.xlu0 %1007, %v1002
        %v1009 = vpop.permute.xlu0 %1008
        %1010 = vset.pattern.permute.xlu0 0
        %1011 = vperm.xlu0 %1010, %v1003
        %v1012 = vpop.permute.xlu0 %1011
        %1013 = vset.pattern.permute.xlu0 0
        %1014 = vperm.xlu0 %1013, %v1004
        %v1015 = vpop.permute.xlu0 %1014
        %1016 = vset.pattern.permute.xlu0 0
        %1017 = vperm.xlu0 %1016, %v1005
        %v1018 = vpop.permute.xlu0 %1017
        %v1019 = vlaneseq
        %v1020 = vshrl.u32 %v1019, 7
        %v1021 = vsub.s32 0, %v1020
        %v1022 = vrot.slane %v1006, %v1021
        %vm1023 = vcmp.eq.s32.totalorder %v1009, %v1022
        %vm1024 = vcmp.eq.s32.totalorder %v1012, %v1022
        %vm1025 = vcmp.eq.s32.totalorder %v1015, %v1022
        %vm1026 = vcmp.eq.s32.totalorder %v1018, %v1022
        %v1027 = vsel %vm1023, %v998, 1e+30
        %v1028 = vsel %vm1024, %v999, 1e+30
        %v1029 = vsel %vm1025, %v1000, 1e+30
        %v1030 = vsel %vm1026, %v1001, 1e+30
        %v1031 = vld [vmem:[#allocation2] sm:$0xff]
        %v1032 = vld [vmem:[#allocation2 + $0x8] sm:$0xff]
        %v1033 = vld [vmem:[#allocation2 + $0x10] sm:$0xff]
        %v1034 = vld [vmem:[#allocation2 + $0x18] sm:$0xff]
        %1036 = vset.pattern.permute.xlu0 2
        %1037 = vperm.xlu0 %1036, %v1031
        %v1038 = vpop.permute.xlu0 %1037
        %1041 = vset.pattern.permute.xlu0 2
        %1042 = vperm.xlu0 %1041, %v1032
        %v1043 = vpop.permute.xlu0 %1042
        %1046 = vset.pattern.permute.xlu0 2
        %1047 = vperm.xlu0 %1046, %v1033
        %v1048 = vpop.permute.xlu0 %1047
        %1051 = vset.pattern.permute.xlu0 2
        %1052 = vperm.xlu0 %1051, %v1034
        %v1053 = vpop.permute.xlu0 %1052
        %vm1055 = vcmp.le.f32.partialorder %v1027, %v1038
        %vm1056 = vcmp.le.f32.partialorder %v1028, %v1043
        %vm1057 = vcmp.le.f32.partialorder %v1029, %v1048
        %vm1058 = vcmp.le.f32.partialorder %v1030, %v1053
        %v1059 = vmax.f32 %v1027, 1e-16
        %v1060 = vmax.f32 %v1028, 1e-16
        %v1061 = vmax.f32 %v1029, 1e-16
        %v1062 = vmax.f32 %v1030, 1e-16
        %v1063 = vrcp.pop %v1059
        %v1064 = vrcp.pop %v1060
        %v1065 = vrcp.pop %v1061
        %v1066 = vrcp.pop %v1062
        %v1067 = vsel %vm1055, %v1063, 0.0
        %v1068 = vsel %vm1056, %v1064, 0.0
        %v1069 = vsel %vm1057, %v1065, 0.0
        %v1070 = vsel %vm1058, %v1066, 0.0
        %v1071 = vld [vmem:[#allocation4] sm:$0xff]
        %v1072 = vld [vmem:[#allocation4 + $0x8] sm:$0xff]
        %v1073 = vld [vmem:[#allocation4 + $0x10] sm:$0xff]
        %v1074 = vld [vmem:[#allocation4 + $0x18] sm:$0xff]
        %1075 = vadd.xlane.f32.xlu0 %v1067
        %v1076 = vpop.xlane.xlu0 %1075
        %1077 = vadd.xlane.f32.xlu0 %v1068
        %v1078 = vpop.xlane.xlu0 %1077
        %1079 = vadd.xlane.f32.xlu0 %v1069
        %v1080 = vpop.xlane.xlu0 %1079
        %1081 = vadd.xlane.f32.xlu0 %v1070
        %v1082 = vpop.xlane.xlu0 %1081
        %v1083 = vadd.f32 %v1071, %v1076
        %v1084 = vadd.f32 %v1072, %v1078
        %v1085 = vadd.f32 %v1073, %v1080
        %v1086 = vadd.f32 %v1074, %v1082
        %vm1087 = vcmask 7168
        %1088 = vst.msk [vmem:[#allocation4] sm:$0xff] %vm1087, %v1083
        %1089 = vst.msk [vmem:[#allocation4 + $0x8] sm:$0xff] %vm1087, %v1084
        %1090 = vst.msk [vmem:[#allocation4 + $0x10] sm:$0xff] %vm1087, %v1085
        %1091 = vst.msk [vmem:[#allocation4 + $0x18] sm:$0xff] %vm1087, %v1086
        %v1092 = vld [vmem:[#allocation3] sm:$0xff]
        %v1093 = vld [vmem:[#allocation3 + $0x8] sm:$0xff]
        %v1094 = vld [vmem:[#allocation3 + $0x10] sm:$0xff]
        %v1095 = vld [vmem:[#allocation3 + $0x18] sm:$0xff]
        %v1096 = vpack.c.bf16 %v1068, %v1067
        %v1097 = vpack.c.bf16 %v1070, %v1069
        %v1098 = vld [vmem:[%s405] sm:$0xf]
        %v1099 = vld [vmem:[%s405 + $0x4] sm:$0xf]
        %v1100 = vld [vmem:[%s405 + $0x8] sm:$0xf]
        %v1101 = vld [vmem:[%s405 + $0xc] sm:$0xf]
        %v1102 = vld [vmem:[%s405 + $0x10] sm:$0xf]
        %v1103 = vld [vmem:[%s405 + $0x14] sm:$0xf]
        %v1104 = vld [vmem:[%s405 + $0x18] sm:$0xf]
        %v1105 = vld [vmem:[%s405 + $0x1c] sm:$0xf]
        %v1106 = vld [vmem:[%s405 + $0x20] sm:$0xf]
        %v1107 = vld [vmem:[%s405 + $0x24] sm:$0xf]
        %v1108 = vld [vmem:[%s405 + $0x28] sm:$0xf]
        %v1109 = vld [vmem:[%s405 + $0x2c] sm:$0xf]
        %v1110 = vld [vmem:[%s405 + $0x30] sm:$0xf]
        %v1111 = vld [vmem:[%s405 + $0x34] sm:$0xf]
        %v1112 = vld [vmem:[%s405 + $0x38] sm:$0xf]
        %v1113 = vld [vmem:[%s405 + $0x3c] sm:$0xf]
        %v1130 = vunpack.c.l.b16 %v1098
        %v1131 = vunpack.c.l.b16 %v1099
        %v1132 = vunpack.c.l.b16 %v1100
        %v1133 = vunpack.c.l.b16 %v1101
        %v1134 = vunpack.c.l.b16 %v1102
        %v1135 = vunpack.c.l.b16 %v1103
        %v1136 = vunpack.c.l.b16 %v1104
        %v1137 = vunpack.c.l.b16 %v1105
        %v1138 = vunpack.c.l.b16 %v1106
        %v1139 = vunpack.c.l.b16 %v1107
        %v1140 = vunpack.c.l.b16 %v1108
        %v1141 = vunpack.c.l.b16 %v1109
        %v1142 = vunpack.c.l.b16 %v1110
        %v1143 = vunpack.c.l.b16 %v1111
        %v1144 = vunpack.c.l.b16 %v1112
        %v1145 = vunpack.c.l.b16 %v1113
        %v1146 = vpack.c.b16 %v1131, %v1130
        %v1147 = vpack.c.b16 %v1133, %v1132
        %v1148 = vpack.c.b16 %v1135, %v1134
        %v1149 = vpack.c.b16 %v1137, %v1136
        %v1150 = vpack.c.b16 %v1139, %v1138
        %v1151 = vpack.c.b16 %v1141, %v1140
        %v1152 = vpack.c.b16 %v1143, %v1142
        %v1153 = vpack.c.b16 %v1145, %v1144
        %1162 = vmatprep.subr.bf16.mxu0 0
        %1163 = vmatpush1.bf16.msra.mxu0 %v1153
        %1164 = vmatprep.subr.bf16.mxu0 0
        %1165 = vmatpush1.bf16.msra.mxu0 %v1152
        %1166 = vmatprep.subr.bf16.mxu0 0
        %1167 = vmatpush1.bf16.msra.mxu0 %v1151
        %1168 = vmatprep.subr.bf16.mxu0 0
        %1169 = vmatpush1.bf16.msra.mxu0 %v1150
        %1170 = vmatprep.subr.bf16.mxu0 0
        %1171 = vmatpush1.bf16.msra.mxu0 %v1149
        %1172 = vmatprep.subr.bf16.mxu0 0
        %1173 = vmatpush1.bf16.msra.mxu0 %v1148
        %1174 = vmatprep.subr.bf16.mxu0 0
        %1175 = vmatpush1.bf16.msra.mxu0 %v1147
        %1176 = vmatprep.subr.bf16.mxu0 0
        %1177 = vmatpush1.bf16.msra.mxu0 %v1146
        %1178 = vmatprep.subr.bf16.mxu0 0
        %1179 = vmatpush2.bf16.msra.mxu0 0
        %1180 = vmatprep.subr.bf16.mxu0 0
        %1181 = vmatpush2.bf16.msra.mxu0 0
        %1182 = vmatprep.subr.bf16.mxu0 0
        %1183 = vmatpush2.bf16.msra.mxu0 0
        %1184 = vmatprep.subr.bf16.mxu0 0
        %1185 = vmatpush2.bf16.msra.mxu0 0
        %1186 = vmatprep.subr.bf16.mxu0 0
        %1187 = vmatpush2.bf16.msra.mxu0 0
        %1188 = vmatprep.subr.bf16.mxu0 0
        %1189 = vmatpush2.bf16.msra.mxu0 0
        %1190 = vmatprep.subr.bf16.mxu0 0
        %1191 = vmatpush2.bf16.msra.mxu0 0
        %1192 = vmatprep.subr.bf16.mxu0 0
        %1193 = vmatpush2.bf16.msra.mxu0 0
        %1194 = vmatprep.mubr.bf16.mxu0 0
        %1195 = vmatmul.mubr.bf16.gmra.mxu0 %v1096
        %v1196 = vpop.f32.mrf.mxu0
        %v1197 = vadd.f32 0.0, %v1196
        %v1198 = vpop.f32.mrf.mxu0
        %v1199 = vpop.f32.mrf.mxu0
        %v1200 = vadd.f32 0.0, %v1199
        %v1201 = vpop.f32.mrf.mxu0
        %1202 = vmatprep.mubr.bf16.mxu0 0
        %1203 = vmatmul.mubr.bf16.gmra.mxu0 %v1097
        %v1204 = vpop.f32.mrf.mxu0
        %v1205 = vadd.f32 0.0, %v1204
        %v1206 = vpop.f32.mrf.mxu0
        %v1207 = vpop.f32.mrf.mxu0
        %v1208 = vadd.f32 0.0, %v1207
        %v1209 = vpop.f32.mrf.mxu0
        %1210 = vdwg.mxu0
        %v1211 = vadd.f32 %v1092, %v1197
        %v1212 = vadd.f32 %v1093, %v1200
        %v1213 = vadd.f32 %v1094, %v1205
        %v1214 = vadd.f32 %v1095, %v1208
        %vm1215 = vcmask 64512
        %1216 = vst.msk [vmem:[#allocation3] sm:$0xff] %vm1215, %v1211
        %1217 = vst.msk [vmem:[#allocation3 + $0x8] sm:$0xff] %vm1215, %v1212
        %1218 = vst.msk [vmem:[#allocation3 + $0x10] sm:$0xff] %vm1215, %v1213
        %1219 = vst.msk [vmem:[#allocation3 + $0x18] sm:$0xff] %vm1215, %v1214
        // Predicated region
        $region69: #{tpu_custom_call.1} parent=63 // pred_check
          %p1220 = pneg %p881
        $region70: #{tpu_custom_call.1} parent=63 // pred_check_branch
          %1222 = sbr.rel (%p1220) target = $region72
        $region71: #{tpu_custom_call.1} parent=63 // pred_region
          %v1223 = vld [vmem:[#allocation3] sm:$0xff]
          %v1224 = vld [vmem:[#allocation3 + $0x8] sm:$0xff]
          %v1225 = vld [vmem:[#allocation3 + $0x10] sm:$0xff]
          %v1226 = vld [vmem:[#allocation3 + $0x18] sm:$0xff]
          %v1227 = vld [vmem:[#allocation4] sm:$0xff]
          %v1228 = vld [vmem:[#allocation4 + $0x8] sm:$0xff]
          %v1229 = vld [vmem:[#allocation4 + $0x10] sm:$0xff]
          %v1230 = vld [vmem:[#allocation4 + $0x18] sm:$0xff]
          %v1231 = vrcp.pop %v1227
          %v1232 = vrcp.pop %v1228
          %v1233 = vrcp.pop %v1229
          %v1234 = vrcp.pop %v1230
          %1236 = vset.pattern.permute.xlu0 0
          %1237 = vperm.xlu0 %1236, %v1231
          %v1238 = vpop.permute.xlu0 %1237
          %1241 = vset.pattern.permute.xlu0 0
          %1242 = vperm.xlu0 %1241, %v1232
          %v1243 = vpop.permute.xlu0 %1242
          %1246 = vset.pattern.permute.xlu0 0
          %1247 = vperm.xlu0 %1246, %v1233
          %v1248 = vpop.permute.xlu0 %1247
          %1251 = vset.pattern.permute.xlu0 0
          %1252 = vperm.xlu0 %1251, %v1234
          %v1253 = vpop.permute.xlu0 %1252
          %v1255 = vmul.f32 %v1223, %v1238
          %v1256 = vmul.f32 %v1224, %v1243
          %v1257 = vmul.f32 %v1225, %v1248
          %v1258 = vmul.f32 %v1226, %v1253
          %v1259 = vld [vmem:[%s424] sm:$0xff]
          %v1260 = vld [vmem:[%s424 + $0x8] sm:$0xff]
          %v1261 = vld [vmem:[%s424 + $0x10] sm:$0xff]
          %v1262 = vld [vmem:[%s424 + $0x18] sm:$0xff]
          %1267 = vrot.lane.b32.xlu0 %v1259, 8
          %v1268 = vpop.permute.xlu0 %1267
          %1269 = vrot.lane.b32.xlu0 %v1260, 8
          %v1270 = vpop.permute.xlu0 %1269
          %1271 = vrot.lane.b32.xlu0 %v1261, 8
          %v1272 = vpop.permute.xlu0 %1271
          %1273 = vrot.lane.b32.xlu0 %v1262, 8
          %v1274 = vpop.permute.xlu0 %1273
          %v1279 = vsel %vm1215, %v1255, %v1268
          %v1280 = vsel %vm1215, %v1256, %v1270
          %v1281 = vsel %vm1215, %v1257, %v1272
          %v1282 = vsel %vm1215, %v1258, %v1274
          %v1283 = vsub.f32 0.0, %v1279
          %v1284 = vsub.f32 0.0, %v1280
          %v1285 = vsub.f32 0.0, %v1281
          %v1286 = vsub.f32 0.0, %v1282
          %v1287 = vmul.f32 %v1283, 1.442695
          %v1288 = vpow.pop %v1287
          %v1289 = vmul.f32 %v1284, 1.442695
          %v1290 = vpow.pop %v1289
          %v1291 = vmul.f32 %v1285, 1.442695
          %v1292 = vpow.pop %v1291
          %v1293 = vmul.f32 %v1286, 1.442695
          %v1294 = vpow.pop %v1293
          %v1295 = vadd.f32 %v1288, 1.0
          %v1296 = vadd.f32 %v1290, 1.0
          %v1297 = vadd.f32 %v1292, 1.0
          %v1298 = vadd.f32 %v1294, 1.0
          %v1299 = vrcp.pop %v1295
          %v1300 = vrcp.pop %v1296
          %v1301 = vrcp.pop %v1297
          %v1302 = vrcp.pop %v1298
          %v1303 = vmul.f32 %v1279, %v1299
          %v1304 = vmul.f32 %v1280, %v1300
          %v1305 = vmul.f32 %v1281, %v1301
          %v1306 = vmul.f32 %v1282, %v1302
          %vm1307 = vcmp.ge.f32.partialorder %v1279, -2.2
          %vm1308 = vcmp.ge.f32.partialorder %v1280, -2.2
          %vm1309 = vcmp.ge.f32.partialorder %v1281, -2.2
          %vm1310 = vcmp.ge.f32.partialorder %v1282, -2.2
          %vm1311 = vcmp.lt.f32.partialorder %v1279, -1.8
          %vm1312 = vcmp.lt.f32.partialorder %v1280, -1.8
          %vm1313 = vcmp.lt.f32.partialorder %v1281, -1.8
          %vm1314 = vcmp.lt.f32.partialorder %v1282, -1.8
          %vm1315 = vmand %vm1307, %vm1311
          %vm1316 = vmand %vm1308, %vm1312
          %vm1317 = vmand %vm1309, %vm1313
          %vm1318 = vmand %vm1310, %vm1314
          %v1319 = vsel %vm1315, 1.0, 0.0
          %v1320 = vsel %vm1316, 1.0, 0.0
          %v1321 = vsel %vm1317, 1.0, 0.0
          %v1322 = vsel %vm1318, 1.0, 0.0
          %vm1323 = vcmp.ge.f32.partialorder %v1279, -1.8
          %vm1324 = vcmp.ge.f32.partialorder %v1280, -1.8
          %vm1325 = vcmp.ge.f32.partialorder %v1281, -1.8
          %vm1326 = vcmp.ge.f32.partialorder %v1282, -1.8
          %vm1327 = vcmp.lt.f32.partialorder %v1279, -1.4
          %vm1328 = vcmp.lt.f32.partialorder %v1280, -1.4
          %vm1329 = vcmp.lt.f32.partialorder %v1281, -1.4
          %vm1330 = vcmp.lt.f32.partialorder %v1282, -1.4
          %vm1331 = vmand %vm1323, %vm1327
          %vm1332 = vmand %vm1324, %vm1328
          %vm1333 = vmand %vm1325, %vm1329
          %vm1334 = vmand %vm1326, %vm1330
          %v1335 = vsel %vm1331, 1.0, 0.0
          %v1336 = vsel %vm1332, 1.0, 0.0
          %v1337 = vsel %vm1333, 1.0, 0.0
          %v1338 = vsel %vm1334, 1.0, 0.0
          %vm1339 = vcmp.ge.f32.partialorder %v1279, -1.4
          %vm1340 = vcmp.ge.f32.partialorder %v1280, -1.4
          %vm1341 = vcmp.ge.f32.partialorder %v1281, -1.4
          %vm1342 = vcmp.ge.f32.partialorder %v1282, -1.4
          %vm1343 = vcmp.lt.f32.partialorder %v1279, -1.0
          %vm1344 = vcmp.lt.f32.partialorder %v1280, -1.0
          %vm1345 = vcmp.lt.f32.partialorder %v1281, -1.0
          %vm1346 = vcmp.lt.f32.partialorder %v1282, -1.0
          %vm1347 = vmand %vm1339, %vm1343
          %vm1348 = vmand %vm1340, %vm1344
          %vm1349 = vmand %vm1341, %vm1345
          %vm1350 = vmand %vm1342, %vm1346
          %v1351 = vsel %vm1347, 1.0, 0.0
          %v1352 = vsel %vm1348, 1.0, 0.0
          %v1353 = vsel %vm1349, 1.0, 0.0
          %v1354 = vsel %vm1350, 1.0, 0.0
          %vm1355 = vcmp.ge.f32.partialorder %v1279, -1.0
          %vm1356 = vcmp.ge.f32.partialorder %v1280, -1.0
          %vm1357 = vcmp.ge.f32.partialorder %v1281, -1.0
          %vm1358 = vcmp.ge.f32.partialorder %v1282, -1.0
          %vm1359 = vcmp.lt.f32.partialorder %v1279, -0.6
          %vm1360 = vcmp.lt.f32.partialorder %v1280, -0.6
          %vm1361 = vcmp.lt.f32.partialorder %v1281, -0.6
          %vm1362 = vcmp.lt.f32.partialorder %v1282, -0.6
          %vm1363 = vmand %vm1355, %vm1359
          %vm1364 = vmand %vm1356, %vm1360
          %vm1365 = vmand %vm1357, %vm1361
          %vm1366 = vmand %vm1358, %vm1362
          %v1367 = vsel %vm1363, 1.0, 0.0
          %v1368 = vsel %vm1364, 1.0, 0.0
          %v1369 = vsel %vm1365, 1.0, 0.0
          %v1370 = vsel %vm1366, 1.0, 0.0
          %vm1371 = vcmp.ge.f32.partialorder %v1279, -0.6
          %vm1372 = vcmp.ge.f32.partialorder %v1280, -0.6
          %vm1373 = vcmp.ge.f32.partialorder %v1281, -0.6
          %vm1374 = vcmp.ge.f32.partialorder %v1282, -0.6
          %vm1375 = vcmp.lt.f32.partialorder %v1279, -0.2
          %vm1376 = vcmp.lt.f32.partialorder %v1280, -0.2
          %vm1377 = vcmp.lt.f32.partialorder %v1281, -0.2
          %vm1378 = vcmp.lt.f32.partialorder %v1282, -0.2
          %vm1379 = vmand %vm1371, %vm1375
          %vm1380 = vmand %vm1372, %vm1376
          %vm1381 = vmand %vm1373, %vm1377
          %vm1382 = vmand %vm1374, %vm1378
          %v1383 = vsel %vm1379, 1.0, 0.0
          %v1384 = vsel %vm1380, 1.0, 0.0
          %v1385 = vsel %vm1381, 1.0, 0.0
          %v1386 = vsel %vm1382, 1.0, 0.0
          %vm1387 = vcmp.ge.f32.partialorder %v1279, -0.2
          %vm1388 = vcmp.ge.f32.partialorder %v1280, -0.2
          %vm1389 = vcmp.ge.f32.partialorder %v1281, -0.2
          %vm1390 = vcmp.ge.f32.partialorder %v1282, -0.2
          %vm1391 = vcmp.lt.f32.partialorder %v1279, 0.2
          %vm1392 = vcmp.lt.f32.partialorder %v1280, 0.2
          %vm1393 = vcmp.lt.f32.partialorder %v1281, 0.2
          %vm1394 = vcmp.lt.f32.partialorder %v1282, 0.2
          %vm1395 = vmand %vm1387, %vm1391
          %vm1396 = vmand %vm1388, %vm1392
          %vm1397 = vmand %vm1389, %vm1393
          %vm1398 = vmand %vm1390, %vm1394
          %v1399 = vsel %vm1395, 1.0, 0.0
          %v1400 = vsel %vm1396, 1.0, 0.0
          %v1401 = vsel %vm1397, 1.0, 0.0
          %v1402 = vsel %vm1398, 1.0, 0.0
          %vm1403 = vcmp.ge.f32.partialorder %v1279, 0.2
          %vm1404 = vcmp.ge.f32.partialorder %v1280, 0.2
          %vm1405 = vcmp.ge.f32.partialorder %v1281, 0.2
          %vm1406 = vcmp.ge.f32.partialorder %v1282, 0.2
          %vm1407 = vcmp.lt.f32.partialorder %v1279, 0.6
          %vm1408 = vcmp.lt.f32.partialorder %v1280, 0.6
          %vm1409 = vcmp.lt.f32.partialorder %v1281, 0.6
          %vm1410 = vcmp.lt.f32.partialorder %v1282, 0.6
          %vm1411 = vmand %vm1403, %vm1407
          %vm1412 = vmand %vm1404, %vm1408
          %vm1413 = vmand %vm1405, %vm1409
          %vm1414 = vmand %vm1406, %vm1410
          %v1415 = vsel %vm1411, 1.0, 0.0
          %v1416 = vsel %vm1412, 1.0, 0.0
          %v1417 = vsel %vm1413, 1.0, 0.0
          %v1418 = vsel %vm1414, 1.0, 0.0
          %vm1419 = vcmp.ge.f32.partialorder %v1279, 0.6
          %vm1420 = vcmp.ge.f32.partialorder %v1280, 0.6
          %vm1421 = vcmp.ge.f32.partialorder %v1281, 0.6
          %vm1422 = vcmp.ge.f32.partialorder %v1282, 0.6
          %vm1423 = vcmp.lt.f32.partialorder %v1279, 1.0
          %vm1424 = vcmp.lt.f32.partialorder %v1280, 1.0
          %vm1425 = vcmp.lt.f32.partialorder %v1281, 1.0
          %vm1426 = vcmp.lt.f32.partialorder %v1282, 1.0
          %vm1427 = vmand %vm1419, %vm1423
          %vm1428 = vmand %vm1420, %vm1424
          %vm1429 = vmand %vm1421, %vm1425
          %vm1430 = vmand %vm1422, %vm1426
          %v1431 = vsel %vm1427, 1.0, 0.0
          %v1432 = vsel %vm1428, 1.0, 0.0
          %v1433 = vsel %vm1429, 1.0, 0.0
          %v1434 = vsel %vm1430, 1.0, 0.0
          %vm1435 = vcmp.ge.f32.partialorder %v1279, 1.0
          %vm1436 = vcmp.ge.f32.partialorder %v1280, 1.0
          %vm1437 = vcmp.ge.f32.partialorder %v1281, 1.0
          %vm1438 = vcmp.ge.f32.partialorder %v1282, 1.0
          %vm1439 = vcmp.lt.f32.partialorder %v1279, 1.4
          %vm1440 = vcmp.lt.f32.partialorder %v1280, 1.4
          %vm1441 = vcmp.lt.f32.partialorder %v1281, 1.4
          %vm1442 = vcmp.lt.f32.partialorder %v1282, 1.4
          %vm1443 = vmand %vm1435, %vm1439
          %vm1444 = vmand %vm1436, %vm1440
          %vm1445 = vmand %vm1437, %vm1441
          %vm1446 = vmand %vm1438, %vm1442
          %v1447 = vsel %vm1443, 1.0, 0.0
          %v1448 = vsel %vm1444, 1.0, 0.0
          %v1449 = vsel %vm1445, 1.0, 0.0
          %v1450 = vsel %vm1446, 1.0, 0.0
          %vm1451 = vcmp.ge.f32.partialorder %v1279, 1.4
          %vm1452 = vcmp.ge.f32.partialorder %v1280, 1.4
          %vm1453 = vcmp.ge.f32.partialorder %v1281, 1.4
          %vm1454 = vcmp.ge.f32.partialorder %v1282, 1.4
          %vm1455 = vcmp.lt.f32.partialorder %v1279, 1.8
          %vm1456 = vcmp.lt.f32.partialorder %v1280, 1.8
          %vm1457 = vcmp.lt.f32.partialorder %v1281, 1.8
          %vm1458 = vcmp.lt.f32.partialorder %v1282, 1.8
          %vm1459 = vmand %vm1451, %vm1455
          %vm1460 = vmand %vm1452, %vm1456
          %vm1461 = vmand %vm1453, %vm1457
          %vm1462 = vmand %vm1454, %vm1458
          %v1463 = vsel %vm1459, 1.0, 0.0
          %v1464 = vsel %vm1460, 1.0, 0.0
          %v1465 = vsel %vm1461, 1.0, 0.0
          %v1466 = vsel %vm1462, 1.0, 0.0
          %vm1467 = vcmp.ge.f32.partialorder %v1279, 1.8
          %vm1468 = vcmp.ge.f32.partialorder %v1280, 1.8
          %vm1469 = vcmp.ge.f32.partialorder %v1281, 1.8
          %vm1470 = vcmp.ge.f32.partialorder %v1282, 1.8
          %vm1471 = vcmp.lt.f32.partialorder %v1279, 2.2
          %vm1472 = vcmp.lt.f32.partialorder %v1280, 2.2
          %vm1473 = vcmp.lt.f32.partialorder %v1281, 2.2
          %vm1474 = vcmp.lt.f32.partialorder %v1282, 2.2
          %vm1475 = vmand %vm1467, %vm1471
          %vm1476 = vmand %vm1468, %vm1472
          %vm1477 = vmand %vm1469, %vm1473
          %vm1478 = vmand %vm1470, %vm1474
          %v1479 = vsel %vm1475, 1.0, 0.0
          %v1480 = vsel %vm1476, 1.0, 0.0
          %v1481 = vsel %vm1477, 1.0, 0.0
          %v1482 = vsel %vm1478, 1.0, 0.0
          %v1483 = vsub.f32 %v1279, -2.2
          %v1484 = vsub.f32 %v1280, -2.2
          %v1485 = vsub.f32 %v1281, -2.2
          %v1486 = vsub.f32 %v1282, -2.2
          %v1487 = vmul.f32 %v1483, 2.5
          %v1488 = vmul.f32 %v1484, 2.5
          %v1489 = vmul.f32 %v1485, 2.5
          %v1490 = vmul.f32 %v1486, 2.5
          %v1491 = vmul.f32 %v1487, %v1319
          %v1492 = vmul.f32 %v1488, %v1320
          %v1493 = vmul.f32 %v1489, %v1321
          %v1494 = vmul.f32 %v1490, %v1322
          %v1495 = vsub.f32 -1.4, %v1279
          %v1496 = vsub.f32 -1.4, %v1280
          %v1497 = vsub.f32 -1.4, %v1281
          %v1498 = vsub.f32 -1.4, %v1282
          %v1499 = vmul.f32 %v1495, 2.5
          %v1500 = vmul.f32 %v1496, 2.5
          %v1501 = vmul.f32 %v1497, 2.5
          %v1502 = vmul.f32 %v1498, 2.5
          %v1503 = vmul.f32 %v1499, %v1335
          %v1504 = vmul.f32 %v1500, %v1336
          %v1505 = vmul.f32 %v1501, %v1337
          %v1506 = vmul.f32 %v1502, %v1338
          %v1507 = vadd.f32 %v1491, %v1503
          %v1508 = vadd.f32 %v1492, %v1504
          %v1509 = vadd.f32 %v1493, %v1505
          %v1510 = vadd.f32 %v1494, %v1506
          %v1511 = vsub.f32 %v1279, -1.8
          %v1512 = vsub.f32 %v1280, -1.8
          %v1513 = vsub.f32 %v1281, -1.8
          %v1514 = vsub.f32 %v1282, -1.8
          %v1515 = vmul.f32 %v1511, 2.5
          %v1516 = vmul.f32 %v1512, 2.5
          %v1517 = vmul.f32 %v1513, 2.5
          %v1518 = vmul.f32 %v1514, 2.5
          %v1519 = vmul.f32 %v1515, %v1335
          %v1520 = vmul.f32 %v1516, %v1336
          %v1521 = vmul.f32 %v1517, %v1337
          %v1522 = vmul.f32 %v1518, %v1338
          %v1523 = vsub.f32 -1.0, %v1279
          %v1524 = vsub.f32 -1.0, %v1280
          %v1525 = vsub.f32 -1.0, %v1281
          %v1526 = vsub.f32 -1.0, %v1282
          %v1527 = vmul.f32 %v1523, 2.5
          %v1528 = vmul.f32 %v1524, 2.5
          %v1529 = vmul.f32 %v1525, 2.5
          %v1530 = vmul.f32 %v1526, 2.5
          %v1531 = vmul.f32 %v1527, %v1351
          %v1532 = vmul.f32 %v1528, %v1352
          %v1533 = vmul.f32 %v1529, %v1353
          %v1534 = vmul.f32 %v1530, %v1354
          %v1535 = vadd.f32 %v1519, %v1531
          %v1536 = vadd.f32 %v1520, %v1532
          %v1537 = vadd.f32 %v1521, %v1533
          %v1538 = vadd.f32 %v1522, %v1534
          %v1539 = vsub.f32 %v1279, -1.4
          %v1540 = vsub.f32 %v1280, -1.4
          %v1541 = vsub.f32 %v1281, -1.4
          %v1542 = vsub.f32 %v1282, -1.4
          %v1543 = vmul.f32 %v1539, 2.5
          %v1544 = vmul.f32 %v1540, 2.5
          %v1545 = vmul.f32 %v1541, 2.5
          %v1546 = vmul.f32 %v1542, 2.5
          %v1547 = vmul.f32 %v1543, %v1351
          %v1548 = vmul.f32 %v1544, %v1352
          %v1549 = vmul.f32 %v1545, %v1353
          %v1550 = vmul.f32 %v1546, %v1354
          %v1551 = vsub.f32 -0.6, %v1279
          %v1552 = vsub.f32 -0.6, %v1280
          %v1553 = vsub.f32 -0.6, %v1281
          %v1554 = vsub.f32 -0.6, %v1282
          %v1555 = vmul.f32 %v1551, 2.5
          %v1556 = vmul.f32 %v1552, 2.5
          %v1557 = vmul.f32 %v1553, 2.5
          %v1558 = vmul.f32 %v1554, 2.5
          %v1559 = vmul.f32 %v1555, %v1367
          %v1560 = vmul.f32 %v1556, %v1368
          %v1561 = vmul.f32 %v1557, %v1369
          %v1562 = vmul.f32 %v1558, %v1370
          %v1563 = vadd.f32 %v1547, %v1559
          %v1564 = vadd.f32 %v1548, %v1560
          %v1565 = vadd.f32 %v1549, %v1561
          %v1566 = vadd.f32 %v1550, %v1562
          %v1567 = vsub.f32 %v1279, -1.0
          %v1568 = vsub.f32 %v1280, -1.0
          %v1569 = vsub.f32 %v1281, -1.0
          %v1570 = vsub.f32 %v1282, -1.0
          %v1571 = vmul.f32 %v1567, 2.5
          %v1572 = vmul.f32 %v1568, 2.5
          %v1573 = vmul.f32 %v1569, 2.5
          %v1574 = vmul.f32 %v1570, 2.5
          %v1575 = vmul.f32 %v1571, %v1367
          %v1576 = vmul.f32 %v1572, %v1368
          %v1577 = vmul.f32 %v1573, %v1369
          %v1578 = vmul.f32 %v1574, %v1370
          %v1579 = vsub.f32 -0.2, %v1279
          %v1580 = vsub.f32 -0.2, %v1280
          %v1581 = vsub.f32 -0.2, %v1281
          %v1582 = vsub.f32 -0.2, %v1282
          %v1583 = vmul.f32 %v1579, 2.5
          %v1584 = vmul.f32 %v1580, 2.5
          %v1585 = vmul.f32 %v1581, 2.5
          %v1586 = vmul.f32 %v1582, 2.5
          %v1587 = vmul.f32 %v1583, %v1383
          %v1588 = vmul.f32 %v1584, %v1384
          %v1589 = vmul.f32 %v1585, %v1385
          %v1590 = vmul.f32 %v1586, %v1386
          %v1591 = vadd.f32 %v1575, %v1587
          %v1592 = vadd.f32 %v1576, %v1588
          %v1593 = vadd.f32 %v1577, %v1589
          %v1594 = vadd.f32 %v1578, %v1590
          %v1595 = vsub.f32 %v1279, -0.6
          %v1596 = vsub.f32 %v1280, -0.6
          %v1597 = vsub.f32 %v1281, -0.6
          %v1598 = vsub.f32 %v1282, -0.6
          %v1599 = vmul.f32 %v1595, 2.5
          %v1600 = vmul.f32 %v1596, 2.5
          %v1601 = vmul.f32 %v1597, 2.5
          %v1602 = vmul.f32 %v1598, 2.5
          %v1603 = vmul.f32 %v1599, %v1383
          %v1604 = vmul.f32 %v1600, %v1384
          %v1605 = vmul.f32 %v1601, %v1385
          %v1606 = vmul.f32 %v1602, %v1386
          %v1607 = vsub.f32 0.2, %v1279
          %v1608 = vsub.f32 0.2, %v1280
          %v1609 = vsub.f32 0.2, %v1281
          %v1610 = vsub.f32 0.2, %v1282
          %v1611 = vmul.f32 %v1607, 2.5
          %v1612 = vmul.f32 %v1608, 2.5
          %v1613 = vmul.f32 %v1609, 2.5
          %v1614 = vmul.f32 %v1610, 2.5
          %v1615 = vmul.f32 %v1611, %v1399
          %v1616 = vmul.f32 %v1612, %v1400
          %v1617 = vmul.f32 %v1613, %v1401
          %v1618 = vmul.f32 %v1614, %v1402
          %v1619 = vadd.f32 %v1603, %v1615
          %v1620 = vadd.f32 %v1604, %v1616
          %v1621 = vadd.f32 %v1605, %v1617
          %v1622 = vadd.f32 %v1606, %v1618
          %v1623 = vsub.f32 %v1279, -0.2
          %v1624 = vsub.f32 %v1280, -0.2
          %v1625 = vsub.f32 %v1281, -0.2
          %v1626 = vsub.f32 %v1282, -0.2
          %v1627 = vmul.f32 %v1623, 2.5
          %v1628 = vmul.f32 %v1624, 2.5
          %v1629 = vmul.f32 %v1625, 2.5
          %v1630 = vmul.f32 %v1626, 2.5
          %v1631 = vmul.f32 %v1627, %v1399
          %v1632 = vmul.f32 %v1628, %v1400
          %v1633 = vmul.f32 %v1629, %v1401
          %v1634 = vmul.f32 %v1630, %v1402
          %v1635 = vsub.f32 0.6, %v1279
          %v1636 = vsub.f32 0.6, %v1280
          %v1637 = vsub.f32 0.6, %v1281
          %v1638 = vsub.f32 0.6, %v1282
          %v1639 = vmul.f32 %v1635, 2.5
          %v1640 = vmul.f32 %v1636, 2.5
          %v1641 = vmul.f32 %v1637, 2.5
          %v1642 = vmul.f32 %v1638, 2.5
          %v1643 = vmul.f32 %v1639, %v1415
          %v1644 = vmul.f32 %v1640, %v1416
          %v1645 = vmul.f32 %v1641, %v1417
          %v1646 = vmul.f32 %v1642, %v1418
          %v1647 = vadd.f32 %v1631, %v1643
          %v1648 = vadd.f32 %v1632, %v1644
          %v1649 = vadd.f32 %v1633, %v1645
          %v1650 = vadd.f32 %v1634, %v1646
          %v1651 = vsub.f32 %v1279, 0.2
          %v1652 = vsub.f32 %v1280, 0.2
          %v1653 = vsub.f32 %v1281, 0.2
          %v1654 = vsub.f32 %v1282, 0.2
          %v1655 = vmul.f32 %v1651, 2.5
          %v1656 = vmul.f32 %v1652, 2.5
          %v1657 = vmul.f32 %v1653, 2.5
          %v1658 = vmul.f32 %v1654, 2.5
          %v1659 = vmul.f32 %v1655, %v1415
          %v1660 = vmul.f32 %v1656, %v1416
          %v1661 = vmul.f32 %v1657, %v1417
          %v1662 = vmul.f32 %v1658, %v1418
          %v1663 = vsub.f32 1.0, %v1279
          %v1664 = vsub.f32 1.0, %v1280
          %v1665 = vsub.f32 1.0, %v1281
          %v1666 = vsub.f32 1.0, %v1282
          %v1667 = vmul.f32 %v1663, 2.5
          %v1668 = vmul.f32 %v1664, 2.5
          %v1669 = vmul.f32 %v1665, 2.5
          %v1670 = vmul.f32 %v1666, 2.5
          %v1671 = vmul.f32 %v1667, %v1431
          %v1672 = vmul.f32 %v1668, %v1432
          %v1673 = vmul.f32 %v1669, %v1433
          %v1674 = vmul.f32 %v1670, %v1434
          %v1675 = vadd.f32 %v1659, %v1671
          %v1676 = vadd.f32 %v1660, %v1672
          %v1677 = vadd.f32 %v1661, %v1673
          %v1678 = vadd.f32 %v1662, %v1674
          %v1679 = vsub.f32 %v1279, 0.6
          %v1680 = vsub.f32 %v1280, 0.6
          %v1681 = vsub.f32 %v1281, 0.6
          %v1682 = vsub.f32 %v1282, 0.6
          %v1683 = vmul.f32 %v1679, 2.5
          %v1684 = vmul.f32 %v1680, 2.5
          %v1685 = vmul.f32 %v1681, 2.5
          %v1686 = vmul.f32 %v1682, 2.5
          %v1687 = vmul.f32 %v1683, %v1431
          %v1688 = vmul.f32 %v1684, %v1432
          %v1689 = vmul.f32 %v1685, %v1433
          %v1690 = vmul.f32 %v1686, %v1434
          %v1691 = vsub.f32 1.4, %v1279
          %v1692 = vsub.f32 1.4, %v1280
          %v1693 = vsub.f32 1.4, %v1281
          %v1694 = vsub.f32 1.4, %v1282
          %v1695 = vmul.f32 %v1691, 2.5
          %v1696 = vmul.f32 %v1692, 2.5
          %v1697 = vmul.f32 %v1693, 2.5
          %v1698 = vmul.f32 %v1694, 2.5
          %v1699 = vmul.f32 %v1695, %v1447
          %v1700 = vmul.f32 %v1696, %v1448
          %v1701 = vmul.f32 %v1697, %v1449
          %v1702 = vmul.f32 %v1698, %v1450
          %v1703 = vadd.f32 %v1687, %v1699
          %v1704 = vadd.f32 %v1688, %v1700
          %v1705 = vadd.f32 %v1689, %v1701
          %v1706 = vadd.f32 %v1690, %v1702
          %v1707 = vsub.f32 %v1279, 1.0
          %v1708 = vsub.f32 %v1280, 1.0
          %v1709 = vsub.f32 %v1281, 1.0
          %v1710 = vsub.f32 %v1282, 1.0
          %v1711 = vmul.f32 %v1707, 2.5
          %v1712 = vmul.f32 %v1708, 2.5
          %v1713 = vmul.f32 %v1709, 2.5
          %v1714 = vmul.f32 %v1710, 2.5
          %v1715 = vmul.f32 %v1711, %v1447
          %v1716 = vmul.f32 %v1712, %v1448
          %v1717 = vmul.f32 %v1713, %v1449
          %v1718 = vmul.f32 %v1714, %v1450
          %v1719 = vsub.f32 1.8, %v1279
          %v1720 = vsub.f32 1.8, %v1280
          %v1721 = vsub.f32 1.8, %v1281
          %v1722 = vsub.f32 1.8, %v1282
          %v1723 = vmul.f32 %v1719, 2.5
          %v1724 = vmul.f32 %v1720, 2.5
          %v1725 = vmul.f32 %v1721, 2.5
          %v1726 = vmul.f32 %v1722, 2.5
          %v1727 = vmul.f32 %v1723, %v1463
          %v1728 = vmul.f32 %v1724, %v1464
          %v1729 = vmul.f32 %v1725, %v1465
          %v1730 = vmul.f32 %v1726, %v1466
          %v1731 = vadd.f32 %v1715, %v1727
          %v1732 = vadd.f32 %v1716, %v1728
          %v1733 = vadd.f32 %v1717, %v1729
          %v1734 = vadd.f32 %v1718, %v1730
          %v1735 = vsub.f32 %v1279, 1.4
          %v1736 = vsub.f32 %v1280, 1.4
          %v1737 = vsub.f32 %v1281, 1.4
          %v1738 = vsub.f32 %v1282, 1.4
          %v1739 = vmul.f32 %v1735, 2.5
          %v1740 = vmul.f32 %v1736, 2.5
          %v1741 = vmul.f32 %v1737, 2.5
          %v1742 = vmul.f32 %v1738, 2.5
          %v1743 = vmul.f32 %v1739, %v1463
          %v1744 = vmul.f32 %v1740, %v1464
          %v1745 = vmul.f32 %v1741, %v1465
          %v1746 = vmul.f32 %v1742, %v1466
          %v1747 = vsub.f32 2.2, %v1279
          %v1748 = vsub.f32 2.2, %v1280
          %v1749 = vsub.f32 2.2, %v1281
          %v1750 = vsub.f32 2.2, %v1282
          %v1751 = vmul.f32 %v1747, 2.5
          %v1752 = vmul.f32 %v1748, 2.5
          %v1753 = vmul.f32 %v1749, 2.5
          %v1754 = vmul.f32 %v1750, 2.5
          %v1755 = vmul.f32 %v1751, %v1479
          %v1756 = vmul.f32 %v1752, %v1480
          %v1757 = vmul.f32 %v1753, %v1481
          %v1758 = vmul.f32 %v1754, %v1482
          %v1759 = vadd.f32 %v1743, %v1755
          %v1760 = vadd.f32 %v1744, %v1756
          %v1761 = vadd.f32 %v1745, %v1757
          %v1762 = vadd.f32 %v1746, %v1758
          %v1763 = vmul.f32 %v1483, 1.25
          %v1764 = vmul.f32 %v1484, 1.25
          %v1765 = vmul.f32 %v1485, 1.25
          %v1766 = vmul.f32 %v1486, 1.25
          %v1767 = vmul.f32 %v1763, %v1507
          %v1768 = vmul.f32 %v1764, %v1508
          %v1769 = vmul.f32 %v1765, %v1509
          %v1770 = vmul.f32 %v1766, %v1510
          %v1771 = vmul.f32 %v1523, 1.25
          %v1772 = vmul.f32 %v1524, 1.25
          %v1773 = vmul.f32 %v1525, 1.25
          %v1774 = vmul.f32 %v1526, 1.25
          %v1775 = vmul.f32 %v1771, %v1535
          %v1776 = vmul.f32 %v1772, %v1536
          %v1777 = vmul.f32 %v1773, %v1537
          %v1778 = vmul.f32 %v1774, %v1538
          %v1779 = vadd.f32 %v1767, %v1775
          %v1780 = vadd.f32 %v1768, %v1776
          %v1781 = vadd.f32 %v1769, %v1777
          %v1782 = vadd.f32 %v1770, %v1778
          %v1783 = vmul.f32 %v1511, 1.25
          %v1784 = vmul.f32 %v1512, 1.25
          %v1785 = vmul.f32 %v1513, 1.25
          %v1786 = vmul.f32 %v1514, 1.25
          %v1787 = vmul.f32 %v1783, %v1535
          %v1788 = vmul.f32 %v1784, %v1536
          %v1789 = vmul.f32 %v1785, %v1537
          %v1790 = vmul.f32 %v1786, %v1538
          %v1791 = vmul.f32 %v1551, 1.25
          %v1792 = vmul.f32 %v1552, 1.25
          %v1793 = vmul.f32 %v1553, 1.25
          %v1794 = vmul.f32 %v1554, 1.25
          %v1795 = vmul.f32 %v1791, %v1563
          %v1796 = vmul.f32 %v1792, %v1564
          %v1797 = vmul.f32 %v1793, %v1565
          %v1798 = vmul.f32 %v1794, %v1566
          %v1799 = vadd.f32 %v1787, %v1795
          %v1800 = vadd.f32 %v1788, %v1796
          %v1801 = vadd.f32 %v1789, %v1797
          %v1802 = vadd.f32 %v1790, %v1798
          %v1803 = vmul.f32 %v1539, 1.25
          %v1804 = vmul.f32 %v1540, 1.25
          %v1805 = vmul.f32 %v1541, 1.25
          %v1806 = vmul.f32 %v1542, 1.25
          %v1807 = vmul.f32 %v1803, %v1563
          %v1808 = vmul.f32 %v1804, %v1564
          %v1809 = vmul.f32 %v1805, %v1565
          %v1810 = vmul.f32 %v1806, %v1566
          %v1811 = vmul.f32 %v1579, 1.25
          %v1812 = vmul.f32 %v1580, 1.25
          %v1813 = vmul.f32 %v1581, 1.25
          %v1814 = vmul.f32 %v1582, 1.25
          %v1815 = vmul.f32 %v1811, %v1591
          %v1816 = vmul.f32 %v1812, %v1592
          %v1817 = vmul.f32 %v1813, %v1593
          %v1818 = vmul.f32 %v1814, %v1594
          %v1819 = vadd.f32 %v1807, %v1815
          %v1820 = vadd.f32 %v1808, %v1816
          %v1821 = vadd.f32 %v1809, %v1817
          %v1822 = vadd.f32 %v1810, %v1818
          %v1823 = vmul.f32 %v1567, 1.25
          %v1824 = vmul.f32 %v1568, 1.25
          %v1825 = vmul.f32 %v1569, 1.25
          %v1826 = vmul.f32 %v1570, 1.25
          %v1827 = vmul.f32 %v1823, %v1591
          %v1828 = vmul.f32 %v1824, %v1592
          %v1829 = vmul.f32 %v1825, %v1593
          %v1830 = vmul.f32 %v1826, %v1594
          %v1831 = vmul.f32 %v1607, 1.25
          %v1832 = vmul.f32 %v1608, 1.25
          %v1833 = vmul.f32 %v1609, 1.25
          %v1834 = vmul.f32 %v1610, 1.25
          %v1835 = vmul.f32 %v1831, %v1619
          %v1836 = vmul.f32 %v1832, %v1620
          %v1837 = vmul.f32 %v1833, %v1621
          %v1838 = vmul.f32 %v1834, %v1622
          %v1839 = vadd.f32 %v1827, %v1835
          %v1840 = vadd.f32 %v1828, %v1836
          %v1841 = vadd.f32 %v1829, %v1837
          %v1842 = vadd.f32 %v1830, %v1838
          %v1843 = vmul.f32 %v1595, 1.25
          %v1844 = vmul.f32 %v1596, 1.25
          %v1845 = vmul.f32 %v1597, 1.25
          %v1846 = vmul.f32 %v1598, 1.25
          %v1847 = vmul.f32 %v1843, %v1619
          %v1848 = vmul.f32 %v1844, %v1620
          %v1849 = vmul.f32 %v1845, %v1621
          %v1850 = vmul.f32 %v1846, %v1622
          %v1851 = vmul.f32 %v1635, 1.25
          %v1852 = vmul.f32 %v1636, 1.25
          %v1853 = vmul.f32 %v1637, 1.25
          %v1854 = vmul.f32 %v1638, 1.25
          %v1855 = vmul.f32 %v1851, %v1647
          %v1856 = vmul.f32 %v1852, %v1648
          %v1857 = vmul.f32 %v1853, %v1649
          %v1858 = vmul.f32 %v1854, %v1650
          %v1859 = vadd.f32 %v1847, %v1855
          %v1860 = vadd.f32 %v1848, %v1856
          %v1861 = vadd.f32 %v1849, %v1857
          %v1862 = vadd.f32 %v1850, %v1858
          %v1863 = vmul.f32 %v1623, 1.25
          %v1864 = vmul.f32 %v1624, 1.25
          %v1865 = vmul.f32 %v1625, 1.25
          %v1866 = vmul.f32 %v1626, 1.25
          %v1867 = vmul.f32 %v1863, %v1647
          %v1868 = vmul.f32 %v1864, %v1648
          %v1869 = vmul.f32 %v1865, %v1649
          %v1870 = vmul.f32 %v1866, %v1650
          %v1871 = vmul.f32 %v1663, 1.25
          %v1872 = vmul.f32 %v1664, 1.25
          %v1873 = vmul.f32 %v1665, 1.25
          %v1874 = vmul.f32 %v1666, 1.25
          %v1875 = vmul.f32 %v1871, %v1675
          %v1876 = vmul.f32 %v1872, %v1676
          %v1877 = vmul.f32 %v1873, %v1677
          %v1878 = vmul.f32 %v1874, %v1678
          %v1879 = vadd.f32 %v1867, %v1875
          %v1880 = vadd.f32 %v1868, %v1876
          %v1881 = vadd.f32 %v1869, %v1877
          %v1882 = vadd.f32 %v1870, %v1878
          %v1883 = vmul.f32 %v1651, 1.25
          %v1884 = vmul.f32 %v1652, 1.25
          %v1885 = vmul.f32 %v1653, 1.25
          %v1886 = vmul.f32 %v1654, 1.25
          %v1887 = vmul.f32 %v1883, %v1675
          %v1888 = vmul.f32 %v1884, %v1676
          %v1889 = vmul.f32 %v1885, %v1677
          %v1890 = vmul.f32 %v1886, %v1678
          %v1891 = vmul.f32 %v1691, 1.25
          %v1892 = vmul.f32 %v1692, 1.25
          %v1893 = vmul.f32 %v1693, 1.25
          %v1894 = vmul.f32 %v1694, 1.25
          %v1895 = vmul.f32 %v1891, %v1703
          %v1896 = vmul.f32 %v1892, %v1704
          %v1897 = vmul.f32 %v1893, %v1705
          %v1898 = vmul.f32 %v1894, %v1706
          %v1899 = vadd.f32 %v1887, %v1895
          %v1900 = vadd.f32 %v1888, %v1896
          %v1901 = vadd.f32 %v1889, %v1897
          %v1902 = vadd.f32 %v1890, %v1898
          %v1903 = vmul.f32 %v1679, 1.25
          %v1904 = vmul.f32 %v1680, 1.25
          %v1905 = vmul.f32 %v1681, 1.25
          %v1906 = vmul.f32 %v1682, 1.25
          %v1907 = vmul.f32 %v1903, %v1703
          %v1908 = vmul.f32 %v1904, %v1704
          %v1909 = vmul.f32 %v1905, %v1705
          %v1910 = vmul.f32 %v1906, %v1706
          %v1911 = vmul.f32 %v1719, 1.25
          %v1912 = vmul.f32 %v1720, 1.25
          %v1913 = vmul.f32 %v1721, 1.25
          %v1914 = vmul.f32 %v1722, 1.25
          %v1915 = vmul.f32 %v1911, %v1731
          %v1916 = vmul.f32 %v1912, %v1732
          %v1917 = vmul.f32 %v1913, %v1733
          %v1918 = vmul.f32 %v1914, %v1734
          %v1919 = vadd.f32 %v1907, %v1915
          %v1920 = vadd.f32 %v1908, %v1916
          %v1921 = vadd.f32 %v1909, %v1917
          %v1922 = vadd.f32 %v1910, %v1918
          %v1923 = vmul.f32 %v1707, 1.25
          %v1924 = vmul.f32 %v1708, 1.25
          %v1925 = vmul.f32 %v1709, 1.25
          %v1926 = vmul.f32 %v1710, 1.25
          %v1927 = vmul.f32 %v1923, %v1731
          %v1928 = vmul.f32 %v1924, %v1732
          %v1929 = vmul.f32 %v1925, %v1733
          %v1930 = vmul.f32 %v1926, %v1734
          %v1931 = vmul.f32 %v1747, 1.25
          %v1932 = vmul.f32 %v1748, 1.25
          %v1933 = vmul.f32 %v1749, 1.25
          %v1934 = vmul.f32 %v1750, 1.25
          %v1935 = vmul.f32 %v1931, %v1759
          %v1936 = vmul.f32 %v1932, %v1760
          %v1937 = vmul.f32 %v1933, %v1761
          %v1938 = vmul.f32 %v1934, %v1762
          %v1939 = vadd.f32 %v1927, %v1935
          %v1940 = vadd.f32 %v1928, %v1936
          %v1941 = vadd.f32 %v1929, %v1937
          %v1942 = vadd.f32 %v1930, %v1938
          %v1943 = vmul.f32 %v1483, 0.8333333
          %v1944 = vmul.f32 %v1484, 0.8333333
          %v1945 = vmul.f32 %v1485, 0.8333333
          %v1946 = vmul.f32 %v1486, 0.8333333
          %v1947 = vmul.f32 %v1943, %v1779
          %v1948 = vmul.f32 %v1944, %v1780
          %v1949 = vmul.f32 %v1945, %v1781
          %v1950 = vmul.f32 %v1946, %v1782
          %v1951 = vmul.f32 %v1551, 0.8333333
          %v1952 = vmul.f32 %v1552, 0.8333333
          %v1953 = vmul.f32 %v1553, 0.8333333
          %v1954 = vmul.f32 %v1554, 0.8333333
          %v1955 = vmul.f32 %v1951, %v1799
          %v1956 = vmul.f32 %v1952, %v1800
          %v1957 = vmul.f32 %v1953, %v1801
          %v1958 = vmul.f32 %v1954, %v1802
          %v1959 = vadd.f32 %v1947, %v1955
          %v1960 = vadd.f32 %v1948, %v1956
          %v1961 = vadd.f32 %v1949, %v1957
          %v1962 = vadd.f32 %v1950, %v1958
          %v1963 = vmul.f32 %v1511, 0.8333333
          %v1964 = vmul.f32 %v1512, 0.8333333
          %v1965 = vmul.f32 %v1513, 0.8333333
          %v1966 = vmul.f32 %v1514, 0.8333333
          %v1967 = vmul.f32 %v1963, %v1799
          %v1968 = vmul.f32 %v1964, %v1800
          %v1969 = vmul.f32 %v1965, %v1801
          %v1970 = vmul.f32 %v1966, %v1802
          %v1971 = vmul.f32 %v1579, 0.8333333
          %v1972 = vmul.f32 %v1580, 0.8333333
          %v1973 = vmul.f32 %v1581, 0.8333333
          %v1974 = vmul.f32 %v1582, 0.8333333
          %v1975 = vmul.f32 %v1971, %v1819
          %v1976 = vmul.f32 %v1972, %v1820
          %v1977 = vmul.f32 %v1973, %v1821
          %v1978 = vmul.f32 %v1974, %v1822
          %v1979 = vadd.f32 %v1967, %v1975
          %v1980 = vadd.f32 %v1968, %v1976
          %v1981 = vadd.f32 %v1969, %v1977
          %v1982 = vadd.f32 %v1970, %v1978
          %v1983 = vmul.f32 %v1539, 0.8333333
          %v1984 = vmul.f32 %v1540, 0.8333333
          %v1985 = vmul.f32 %v1541, 0.8333333
          %v1986 = vmul.f32 %v1542, 0.8333333
          %v1987 = vmul.f32 %v1983, %v1819
          %v1988 = vmul.f32 %v1984, %v1820
          %v1989 = vmul.f32 %v1985, %v1821
          %v1990 = vmul.f32 %v1986, %v1822
          %v1991 = vmul.f32 %v1607, 0.8333333
          %v1992 = vmul.f32 %v1608, 0.8333333
          %v1993 = vmul.f32 %v1609, 0.8333333
          %v1994 = vmul.f32 %v1610, 0.8333333
          %v1995 = vmul.f32 %v1991, %v1839
          %v1996 = vmul.f32 %v1992, %v1840
          %v1997 = vmul.f32 %v1993, %v1841
          %v1998 = vmul.f32 %v1994, %v1842
          %v1999 = vadd.f32 %v1987, %v1995
          %v2000 = vadd.f32 %v1988, %v1996
          %v2001 = vadd.f32 %v1989, %v1997
          %v2002 = vadd.f32 %v1990, %v1998
          %v2003 = vmul.f32 %v1567, 0.8333333
          %v2004 = vmul.f32 %v1568, 0.8333333
          %v2005 = vmul.f32 %v1569, 0.8333333
          %v2006 = vmul.f32 %v1570, 0.8333333
          %v2007 = vmul.f32 %v2003, %v1839
          %v2008 = vmul.f32 %v2004, %v1840
          %v2009 = vmul.f32 %v2005, %v1841
          %v2010 = vmul.f32 %v2006, %v1842
          %v2011 = vmul.f32 %v1635, 0.8333333
          %v2012 = vmul.f32 %v1636, 0.8333333
          %v2013 = vmul.f32 %v1637, 0.8333333
          %v2014 = vmul.f32 %v1638, 0.8333333
          %v2015 = vmul.f32 %v2011, %v1859
          %v2016 = vmul.f32 %v2012, %v1860
          %v2017 = vmul.f32 %v2013, %v1861
          %v2018 = vmul.f32 %v2014, %v1862
          %v2019 = vadd.f32 %v2007, %v2015
          %v2020 = vadd.f32 %v2008, %v2016
          %v2021 = vadd.f32 %v2009, %v2017
          %v2022 = vadd.f32 %v2010, %v2018
          %v2023 = vmul.f32 %v1595, 0.8333333
          %v2024 = vmul.f32 %v1596, 0.8333333
          %v2025 = vmul.f32 %v1597, 0.8333333
          %v2026 = vmul.f32 %v1598, 0.8333333
          %v2027 = vmul.f32 %v2023, %v1859
          %v2028 = vmul.f32 %v2024, %v1860
          %v2029 = vmul.f32 %v2025, %v1861
          %v2030 = vmul.f32 %v2026, %v1862
          %v2031 = vmul.f32 %v1663, 0.8333333
          %v2032 = vmul.f32 %v1664, 0.8333333
          %v2033 = vmul.f32 %v1665, 0.8333333
          %v2034 = vmul.f32 %v1666, 0.8333333
          %v2035 = vmul.f32 %v2031, %v1879
          %v2036 = vmul.f32 %v2032, %v1880
          %v2037 = vmul.f32 %v2033, %v1881
          %v2038 = vmul.f32 %v2034, %v1882
          %v2039 = vadd.f32 %v2027, %v2035
          %v2040 = vadd.f32 %v2028, %v2036
          %v2041 = vadd.f32 %v2029, %v2037
          %v2042 = vadd.f32 %v2030, %v2038
          %v2043 = vmul.f32 %v1623, 0.8333333
          %v2044 = vmul.f32 %v1624, 0.8333333
          %v2045 = vmul.f32 %v1625, 0.8333333
          %v2046 = vmul.f32 %v1626, 0.8333333
          %v2047 = vmul.f32 %v2043, %v1879
          %v2048 = vmul.f32 %v2044, %v1880
          %v2049 = vmul.f32 %v2045, %v1881
          %v2050 = vmul.f32 %v2046, %v1882
          %v2051 = vmul.f32 %v1691, 0.8333333
          %v2052 = vmul.f32 %v1692, 0.8333333
          %v2053 = vmul.f32 %v1693, 0.8333333
          %v2054 = vmul.f32 %v1694, 0.8333333
          %v2055 = vmul.f32 %v2051, %v1899
          %v2056 = vmul.f32 %v2052, %v1900
          %v2057 = vmul.f32 %v2053, %v1901
          %v2058 = vmul.f32 %v2054, %v1902
          %v2059 = vadd.f32 %v2047, %v2055
          %v2060 = vadd.f32 %v2048, %v2056
          %v2061 = vadd.f32 %v2049, %v2057
          %v2062 = vadd.f32 %v2050, %v2058
          %v2063 = vmul.f32 %v1651, 0.8333333
          %v2064 = vmul.f32 %v1652, 0.8333333
          %v2065 = vmul.f32 %v1653, 0.8333333
          %v2066 = vmul.f32 %v1654, 0.8333333
          %v2067 = vmul.f32 %v2063, %v1899
          %v2068 = vmul.f32 %v2064, %v1900
          %v2069 = vmul.f32 %v2065, %v1901
          %v2070 = vmul.f32 %v2066, %v1902
          %v2071 = vmul.f32 %v1719, 0.8333333
          %v2072 = vmul.f32 %v1720, 0.8333333
          %v2073 = vmul.f32 %v1721, 0.8333333
          %v2074 = vmul.f32 %v1722, 0.8333333
          %v2075 = vmul.f32 %v2071, %v1919
          %v2076 = vmul.f32 %v2072, %v1920
          %v2077 = vmul.f32 %v2073, %v1921
          %v2078 = vmul.f32 %v2074, %v1922
          %v2079 = vadd.f32 %v2067, %v2075
          %v2080 = vadd.f32 %v2068, %v2076
          %v2081 = vadd.f32 %v2069, %v2077
          %v2082 = vadd.f32 %v2070, %v2078
          %v2083 = vmul.f32 %v1679, 0.8333333
          %v2084 = vmul.f32 %v1680, 0.8333333
          %v2085 = vmul.f32 %v1681, 0.8333333
          %v2086 = vmul.f32 %v1682, 0.8333333
          %v2087 = vmul.f32 %v2083, %v1919
          %v2088 = vmul.f32 %v2084, %v1920
          %v2089 = vmul.f32 %v2085, %v1921
          %v2090 = vmul.f32 %v2086, %v1922
          %v2091 = vmul.f32 %v1747, 0.8333333
          %v2092 = vmul.f32 %v1748, 0.8333333
          %v2093 = vmul.f32 %v1749, 0.8333333
          %v2094 = vmul.f32 %v1750, 0.8333333
          %v2095 = vmul.f32 %v2091, %v1939
          %v2096 = vmul.f32 %v2092, %v1940
          %v2097 = vmul.f32 %v2093, %v1941
          %v2098 = vmul.f32 %v2094, %v1942
          %v2099 = vadd.f32 %v2087, %v2095
          %v2100 = vadd.f32 %v2088, %v2096
          %v2101 = vadd.f32 %v2089, %v2097
          %v2102 = vadd.f32 %v2090, %v2098
          %2107 = vrot.lane.b32.xlu0 %v1959, 16
          %v2108 = vpop.permute.xlu0 %2107
          %2109 = vrot.lane.b32.xlu0 %v1960, 16
          %v2110 = vpop.permute.xlu0 %2109
          %2111 = vrot.lane.b32.xlu0 %v1961, 16
          %v2112 = vpop.permute.xlu0 %2111
          %2113 = vrot.lane.b32.xlu0 %v1962, 16
          %v2114 = vpop.permute.xlu0 %2113
          %2123 = vrot.lane.b32.xlu0 %v1979, 32
          %v2124 = vpop.permute.xlu0 %2123
          %2125 = vrot.lane.b32.xlu0 %v1980, 32
          %v2126 = vpop.permute.xlu0 %2125
          %2127 = vrot.lane.b32.xlu0 %v1981, 32
          %v2128 = vpop.permute.xlu0 %2127
          %2129 = vrot.lane.b32.xlu0 %v1982, 32
          %v2130 = vpop.permute.xlu0 %2129
          %2139 = vrot.lane.b32.xlu0 %v1999, 48
          %v2140 = vpop.permute.xlu0 %2139
          %2141 = vrot.lane.b32.xlu0 %v2000, 48
          %v2142 = vpop.permute.xlu0 %2141
          %2143 = vrot.lane.b32.xlu0 %v2001, 48
          %v2144 = vpop.permute.xlu0 %2143
          %2145 = vrot.lane.b32.xlu0 %v2002, 48
          %v2146 = vpop.permute.xlu0 %2145
          %2155 = vrot.lane.b32.xlu0 %v2019, 64
          %v2156 = vpop.permute.xlu0 %2155
          %2157 = vrot.lane.b32.xlu0 %v2020, 64
          %v2158 = vpop.permute.xlu0 %2157
          %2159 = vrot.lane.b32.xlu0 %v2021, 64
          %v2160 = vpop.permute.xlu0 %2159
          %2161 = vrot.lane.b32.xlu0 %v2022, 64
          %v2162 = vpop.permute.xlu0 %2161
          %2171 = vrot.lane.b32.xlu0 %v2039, 80
          %v2172 = vpop.permute.xlu0 %2171
          %2173 = vrot.lane.b32.xlu0 %v2040, 80
          %v2174 = vpop.permute.xlu0 %2173
          %2175 = vrot.lane.b32.xlu0 %v2041, 80
          %v2176 = vpop.permute.xlu0 %2175
          %2177 = vrot.lane.b32.xlu0 %v2042, 80
          %v2178 = vpop.permute.xlu0 %2177
          %2187 = vrot.lane.b32.xlu0 %v2059, 96
          %v2188 = vpop.permute.xlu0 %2187
          %2189 = vrot.lane.b32.xlu0 %v2060, 96
          %v2190 = vpop.permute.xlu0 %2189
          %2191 = vrot.lane.b32.xlu0 %v2061, 96
          %v2192 = vpop.permute.xlu0 %2191
          %2193 = vrot.lane.b32.xlu0 %v2062, 96
          %v2194 = vpop.permute.xlu0 %2193
          %2203 = vrot.lane.b32.xlu0 %v2079, 112
          %v2204 = vpop.permute.xlu0 %2203
          %2205 = vrot.lane.b32.xlu0 %v2080, 112
          %v2206 = vpop.permute.xlu0 %2205
          %2207 = vrot.lane.b32.xlu0 %v2081, 112
          %v2208 = vpop.permute.xlu0 %2207
          %2209 = vrot.lane.b32.xlu0 %v2082, 112
          %v2210 = vpop.permute.xlu0 %2209
          %vm2215 = vcmask 130048
          %v2216 = vsel %vm2215, %v1303, %v2108
          %v2217 = vsel %vm2215, %v1304, %v2110
          %v2218 = vsel %vm2215, %v1305, %v2112
          %v2219 = vsel %vm2215, %v1306, %v2114
          %vm2220 = vcmask 261120
          %v2221 = vsel %vm2220, %v2216, %v2124
          %v2222 = vsel %vm2220, %v2217, %v2126
          %v2223 = vsel %vm2220, %v2218, %v2128
          %v2224 = vsel %vm2220, %v2219, %v2130
          %vm2225 = vcmask 392192
          %v2226 = vsel %vm2225, %v2221, %v2140
          %v2227 = vsel %vm2225, %v2222, %v2142
          %v2228 = vsel %vm2225, %v2223, %v2144
          %v2229 = vsel %vm2225, %v2224, %v2146
          %vm2230 = vcmask 523264
          %v2231 = vsel %vm2230, %v2226, %v2156
          %v2232 = vsel %vm2230, %v2227, %v2158
          %v2233 = vsel %vm2230, %v2228, %v2160
          %v2234 = vsel %vm2230, %v2229, %v2162
          %vm2235 = vcmask 654336
          %v2236 = vsel %vm2235, %v2231, %v2172
          %v2237 = vsel %vm2235, %v2232, %v2174
          %v2238 = vsel %vm2235, %v2233, %v2176
          %v2239 = vsel %vm2235, %v2234, %v2178
          %vm2240 = vcmask 785408
          %v2241 = vsel %vm2240, %v2236, %v2188
          %v2242 = vsel %vm2240, %v2237, %v2190
          %v2243 = vsel %vm2240, %v2238, %v2192
          %v2244 = vsel %vm2240, %v2239, %v2194
          %vm2245 = vcmask 916480
          %v2246 = vsel %vm2245, %v2241, %v2204
          %v2247 = vsel %vm2245, %v2242, %v2206
          %v2248 = vsel %vm2245, %v2243, %v2208
          %v2249 = vsel %vm2245, %v2244, %v2210
          %v2250 = vpack.c.bf16 %v2247, %v2246
          %v2251 = vpack.c.bf16 %v2100, %v2099
          %v2252 = vpack.c.bf16 %v2249, %v2248
          %v2253 = vpack.c.bf16 %v2102, %v2101
          %v2254 = vld [vmem:[%s6] sm:$0xf]
          %v2255 = vld [vmem:[%s6 + $0x4] sm:$0xf]
          %v2256 = vld [vmem:[%s6 + $0x8] sm:$0xf]
          %v2257 = vld [vmem:[%s6 + $0xc] sm:$0xf]
          %v2258 = vld [vmem:[%s6 + $0x10] sm:$0xf]
          %v2259 = vld [vmem:[%s6 + $0x14] sm:$0xf]
          %v2260 = vld [vmem:[%s6 + $0x18] sm:$0xf]
          %v2261 = vld [vmem:[%s6 + $0x1c] sm:$0xf]
          %v2262 = vld [vmem:[%s6 + $0x20] sm:$0xf]
          %v2263 = vld [vmem:[%s6 + $0x24] sm:$0xf]
          %v2264 = vld [vmem:[%s6 + $0x28] sm:$0xf]
          %v2265 = vld [vmem:[%s6 + $0x2c] sm:$0xf]
          %v2266 = vld [vmem:[%s6 + $0x30] sm:$0xf]
          %v2267 = vld [vmem:[%s6 + $0x34] sm:$0xf]
          %v2268 = vld [vmem:[%s6 + $0x38] sm:$0xf]
          %v2269 = vld [vmem:[%s6 + $0x3c] sm:$0xf]
          %v2270 = vld [vmem:[%s6 + $0x40] sm:$0xf]
          %v2271 = vld [vmem:[%s6 + $0x44] sm:$0xf]
          %v2290 = vunpack.c.l.b16 %v2254
          %v2291 = vunpack.c.l.b16 %v2255
          %v2292 = vunpack.c.l.b16 %v2256
          %v2293 = vunpack.c.l.b16 %v2257
          %v2294 = vunpack.c.l.b16 %v2258
          %v2295 = vunpack.c.l.b16 %v2259
          %v2296 = vunpack.c.l.b16 %v2260
          %v2297 = vunpack.c.l.b16 %v2261
          %v2298 = vunpack.c.l.b16 %v2262
          %v2299 = vunpack.c.l.b16 %v2263
          %v2300 = vunpack.c.l.b16 %v2264
          %v2301 = vunpack.c.l.b16 %v2265
          %v2302 = vunpack.c.l.b16 %v2266
          %v2303 = vunpack.c.l.b16 %v2267
          %v2304 = vunpack.c.l.b16 %v2268
          %v2305 = vunpack.c.l.b16 %v2269
          %v2306 = vunpack.c.l.b16 %v2270
          %v2307 = vunpack.c.l.b16 %v2271
          %v2308 = vpack.c.b16 %v2291, %v2290
          %v2309 = vpack.c.b16 %v2293, %v2292
          %v2310 = vpack.c.b16 %v2295, %v2294
          %v2311 = vpack.c.b16 %v2297, %v2296
          %v2312 = vpack.c.b16 %v2299, %v2298
          %v2313 = vpack.c.b16 %v2301, %v2300
          %v2314 = vpack.c.b16 %v2303, %v2302
          %v2315 = vpack.c.b16 %v2305, %v2304
          %v2316 = vpack.c.b16 %v2307, %v2306
          %v2327 = vsel %vm2215, %v2251, 0
          %v2330 = vsel %vm2215, %v2253, 0
          %2332 = vmatprep.subr.bf16.mxu0 0
          %2333 = vmatpush1.bf16.msra.mxu0 %v2315
          %2334 = vmatprep.subr.bf16.mxu0 0
          %2335 = vmatpush1.bf16.msra.mxu0 %v2314
          %2336 = vmatprep.subr.bf16.mxu0 0
          %2337 = vmatpush1.bf16.msra.mxu0 %v2313
          %2338 = vmatprep.subr.bf16.mxu0 0
          %2339 = vmatpush1.bf16.msra.mxu0 %v2312
          %2340 = vmatprep.subr.bf16.mxu0 0
          %2341 = vmatpush1.bf16.msra.mxu0 %v2311
          %2342 = vmatprep.subr.bf16.mxu0 0
          %2343 = vmatpush1.bf16.msra.mxu0 %v2310
          %2344 = vmatprep.subr.bf16.mxu0 0
          %2345 = vmatpush1.bf16.msra.mxu0 %v2309
          %2346 = vmatprep.subr.bf16.mxu0 0
          %2347 = vmatpush1.bf16.msra.mxu0 %v2308
          %2348 = vmatprep.subr.bf16.mxu0 0
          %2349 = vmatpush2.bf16.msra.mxu0 0
          %2350 = vmatprep.subr.bf16.mxu0 0
          %2351 = vmatpush2.bf16.msra.mxu0 0
          %2352 = vmatprep.subr.bf16.mxu0 0
          %2353 = vmatpush2.bf16.msra.mxu0 0
          %2354 = vmatprep.subr.bf16.mxu0 0
          %2355 = vmatpush2.bf16.msra.mxu0 0
          %2356 = vmatprep.subr.bf16.mxu0 0
          %2357 = vmatpush2.bf16.msra.mxu0 0
          %2358 = vmatprep.subr.bf16.mxu0 0
          %2359 = vmatpush2.bf16.msra.mxu0 0
          %2360 = vmatprep.subr.bf16.mxu0 0
          %2361 = vmatpush2.bf16.msra.mxu0 0
          %2362 = vmatprep.subr.bf16.mxu0 0
          %2363 = vmatpush2.bf16.msra.mxu0 %v2316
          %2364 = vmatprep.mubr.bf16.mxu0 %v2327
          %2365 = vmatmul.mubr.bf16.gmra.mxu0 %v2250
          %v2366 = vpop.f32.mrf.mxu0
          %v2367 = vadd.f32 0.0, %v2366
          %v2368 = vpop.f32.mrf.mxu0
          %v2369 = vpop.f32.mrf.mxu0
          %v2370 = vadd.f32 0.0, %v2369
          %v2371 = vpop.f32.mrf.mxu0
          %2372 = vmatprep.mubr.bf16.mxu0 %v2330
          %2373 = vmatmul.mubr.bf16.gmra.mxu0 %v2252
          %v2374 = vpop.f32.mrf.mxu0
          %v2375 = vadd.f32 0.0, %v2374
          %v2376 = vpop.f32.mrf.mxu0
          %v2377 = vpop.f32.mrf.mxu0
          %v2378 = vadd.f32 0.0, %v2377
          %v2379 = vpop.f32.mrf.mxu0
          %2380 = vdwg.mxu0
          %v2381 = vsub.f32 0.0, %v2367
          %v2382 = vsub.f32 0.0, %v2370
          %v2383 = vsub.f32 0.0, %v2375
          %v2384 = vsub.f32 0.0, %v2378
          %v2385 = vmul.f32 %v2381, 1.442695
          %v2386 = vpow.pop %v2385
          %v2387 = vmul.f32 %v2382, 1.442695
          %v2388 = vpow.pop %v2387
          %v2389 = vmul.f32 %v2383, 1.442695
          %v2390 = vpow.pop %v2389
          %v2391 = vmul.f32 %v2384, 1.442695
          %v2392 = vpow.pop %v2391
          %v2393 = vadd.f32 %v2386, 1.0
          %v2394 = vadd.f32 %v2388, 1.0
          %v2395 = vadd.f32 %v2390, 1.0
          %v2396 = vadd.f32 %v2392, 1.0
          %v2397 = vrcp.pop %v2393
          %v2398 = vrcp.pop %v2394
          %v2399 = vrcp.pop %v2395
          %v2400 = vrcp.pop %v2396
          %v2401 = vmul.f32 %v2367, %v2397
          %v2402 = vmul.f32 %v2370, %v2398
          %v2403 = vmul.f32 %v2375, %v2399
          %v2404 = vmul.f32 %v2378, %v2400
          %vm2405 = vcmp.ge.f32.partialorder %v2367, -2.2
          %vm2406 = vcmp.ge.f32.partialorder %v2370, -2.2
          %vm2407 = vcmp.ge.f32.partialorder %v2375, -2.2
          %vm2408 = vcmp.ge.f32.partialorder %v2378, -2.2
          %vm2409 = vcmp.lt.f32.partialorder %v2367, -1.8
          %vm2410 = vcmp.lt.f32.partialorder %v2370, -1.8
          %vm2411 = vcmp.lt.f32.partialorder %v2375, -1.8
          %vm2412 = vcmp.lt.f32.partialorder %v2378, -1.8
          %vm2413 = vmand %vm2405, %vm2409
          %vm2414 = vmand %vm2406, %vm2410
          %vm2415 = vmand %vm2407, %vm2411
          %vm2416 = vmand %vm2408, %vm2412
          %v2417 = vsel %vm2413, 1.0, 0.0
          %v2418 = vsel %vm2414, 1.0, 0.0
          %v2419 = vsel %vm2415, 1.0, 0.0
          %v2420 = vsel %vm2416, 1.0, 0.0
          %vm2421 = vcmp.ge.f32.partialorder %v2367, -1.8
          %vm2422 = vcmp.ge.f32.partialorder %v2370, -1.8
          %vm2423 = vcmp.ge.f32.partialorder %v2375, -1.8
          %vm2424 = vcmp.ge.f32.partialorder %v2378, -1.8
          %vm2425 = vcmp.lt.f32.partialorder %v2367, -1.4
          %vm2426 = vcmp.lt.f32.partialorder %v2370, -1.4
          %vm2427 = vcmp.lt.f32.partialorder %v2375, -1.4
          %vm2428 = vcmp.lt.f32.partialorder %v2378, -1.4
          %vm2429 = vmand %vm2421, %vm2425
          %vm2430 = vmand %vm2422, %vm2426
          %vm2431 = vmand %vm2423, %vm2427
          %vm2432 = vmand %vm2424, %vm2428
          %v2433 = vsel %vm2429, 1.0, 0.0
          %v2434 = vsel %vm2430, 1.0, 0.0
          %v2435 = vsel %vm2431, 1.0, 0.0
          %v2436 = vsel %vm2432, 1.0, 0.0
          %vm2437 = vcmp.ge.f32.partialorder %v2367, -1.4
          %vm2438 = vcmp.ge.f32.partialorder %v2370, -1.4
          %vm2439 = vcmp.ge.f32.partialorder %v2375, -1.4
          %vm2440 = vcmp.ge.f32.partialorder %v2378, -1.4
          %vm2441 = vcmp.lt.f32.partialorder %v2367, -1.0
          %vm2442 = vcmp.lt.f32.partialorder %v2370, -1.0
          %vm2443 = vcmp.lt.f32.partialorder %v2375, -1.0
          %vm2444 = vcmp.lt.f32.partialorder %v2378, -1.0
          %vm2445 = vmand %vm2437, %vm2441
          %vm2446 = vmand %vm2438, %vm2442
          %vm2447 = vmand %vm2439, %vm2443
          %vm2448 = vmand %vm2440, %vm2444
          %v2449 = vsel %vm2445, 1.0, 0.0
          %v2450 = vsel %vm2446, 1.0, 0.0
          %v2451 = vsel %vm2447, 1.0, 0.0
          %v2452 = vsel %vm2448, 1.0, 0.0
          %vm2453 = vcmp.ge.f32.partialorder %v2367, -1.0
          %vm2454 = vcmp.ge.f32.partialorder %v2370, -1.0
          %vm2455 = vcmp.ge.f32.partialorder %v2375, -1.0
          %vm2456 = vcmp.ge.f32.partialorder %v2378, -1.0
          %vm2457 = vcmp.lt.f32.partialorder %v2367, -0.6
          %vm2458 = vcmp.lt.f32.partialorder %v2370, -0.6
          %vm2459 = vcmp.lt.f32.partialorder %v2375, -0.6
          %vm2460 = vcmp.lt.f32.partialorder %v2378, -0.6
          %vm2461 = vmand %vm2453, %vm2457
          %vm2462 = vmand %vm2454, %vm2458
          %vm2463 = vmand %vm2455, %vm2459
          %vm2464 = vmand %vm2456, %vm2460
          %v2465 = vsel %vm2461, 1.0, 0.0
          %v2466 = vsel %vm2462, 1.0, 0.0
          %v2467 = vsel %vm2463, 1.0, 0.0
          %v2468 = vsel %vm2464, 1.0, 0.0
          %vm2469 = vcmp.ge.f32.partialorder %v2367, -0.6
          %vm2470 = vcmp.ge.f32.partialorder %v2370, -0.6
          %vm2471 = vcmp.ge.f32.partialorder %v2375, -0.6
          %vm2472 = vcmp.ge.f32.partialorder %v2378, -0.6
          %vm2473 = vcmp.lt.f32.partialorder %v2367, -0.2
          %vm2474 = vcmp.lt.f32.partialorder %v2370, -0.2
          %vm2475 = vcmp.lt.f32.partialorder %v2375, -0.2
          %vm2476 = vcmp.lt.f32.partialorder %v2378, -0.2
          %vm2477 = vmand %vm2469, %vm2473
          %vm2478 = vmand %vm2470, %vm2474
          %vm2479 = vmand %vm2471, %vm2475
          %vm2480 = vmand %vm2472, %vm2476
          %v2481 = vsel %vm2477, 1.0, 0.0
          %v2482 = vsel %vm2478, 1.0, 0.0
          %v2483 = vsel %vm2479, 1.0, 0.0
          %v2484 = vsel %vm2480, 1.0, 0.0
          %vm2485 = vcmp.ge.f32.partialorder %v2367, -0.2
          %vm2486 = vcmp.ge.f32.partialorder %v2370, -0.2
          %vm2487 = vcmp.ge.f32.partialorder %v2375, -0.2
          %vm2488 = vcmp.ge.f32.partialorder %v2378, -0.2
          %vm2489 = vcmp.lt.f32.partialorder %v2367, 0.2
          %vm2490 = vcmp.lt.f32.partialorder %v2370, 0.2
          %vm2491 = vcmp.lt.f32.partialorder %v2375, 0.2
          %vm2492 = vcmp.lt.f32.partialorder %v2378, 0.2
          %vm2493 = vmand %vm2485, %vm2489
          %vm2494 = vmand %vm2486, %vm2490
          %vm2495 = vmand %vm2487, %vm2491
          %vm2496 = vmand %vm2488, %vm2492
          %v2497 = vsel %vm2493, 1.0, 0.0
          %v2498 = vsel %vm2494, 1.0, 0.0
          %v2499 = vsel %vm2495, 1.0, 0.0
          %v2500 = vsel %vm2496, 1.0, 0.0
          %vm2501 = vcmp.ge.f32.partialorder %v2367, 0.2
          %vm2502 = vcmp.ge.f32.partialorder %v2370, 0.2
          %vm2503 = vcmp.ge.f32.partialorder %v2375, 0.2
          %vm2504 = vcmp.ge.f32.partialorder %v2378, 0.2
          %vm2505 = vcmp.lt.f32.partialorder %v2367, 0.6
          %vm2506 = vcmp.lt.f32.partialorder %v2370, 0.6
          %vm2507 = vcmp.lt.f32.partialorder %v2375, 0.6
          %vm2508 = vcmp.lt.f32.partialorder %v2378, 0.6
          %vm2509 = vmand %vm2501, %vm2505
          %vm2510 = vmand %vm2502, %vm2506
          %vm2511 = vmand %vm2503, %vm2507
          %vm2512 = vmand %vm2504, %vm2508
          %v2513 = vsel %vm2509, 1.0, 0.0
          %v2514 = vsel %vm2510, 1.0, 0.0
          %v2515 = vsel %vm2511, 1.0, 0.0
          %v2516 = vsel %vm2512, 1.0, 0.0
          %vm2517 = vcmp.ge.f32.partialorder %v2367, 0.6
          %vm2518 = vcmp.ge.f32.partialorder %v2370, 0.6
          %vm2519 = vcmp.ge.f32.partialorder %v2375, 0.6
          %vm2520 = vcmp.ge.f32.partialorder %v2378, 0.6
          %vm2521 = vcmp.lt.f32.partialorder %v2367, 1.0
          %vm2522 = vcmp.lt.f32.partialorder %v2370, 1.0
          %vm2523 = vcmp.lt.f32.partialorder %v2375, 1.0
          %vm2524 = vcmp.lt.f32.partialorder %v2378, 1.0
          %vm2525 = vmand %vm2517, %vm2521
          %vm2526 = vmand %vm2518, %vm2522
          %vm2527 = vmand %vm2519, %vm2523
          %vm2528 = vmand %vm2520, %vm2524
          %v2529 = vsel %vm2525, 1.0, 0.0
          %v2530 = vsel %vm2526, 1.0, 0.0
          %v2531 = vsel %vm2527, 1.0, 0.0
          %v2532 = vsel %vm2528, 1.0, 0.0
          %vm2533 = vcmp.ge.f32.partialorder %v2367, 1.0
          %vm2534 = vcmp.ge.f32.partialorder %v2370, 1.0
          %vm2535 = vcmp.ge.f32.partialorder %v2375, 1.0
          %vm2536 = vcmp.ge.f32.partialorder %v2378, 1.0
          %vm2537 = vcmp.lt.f32.partialorder %v2367, 1.4
          %vm2538 = vcmp.lt.f32.partialorder %v2370, 1.4
          %vm2539 = vcmp.lt.f32.partialorder %v2375, 1.4
          %vm2540 = vcmp.lt.f32.partialorder %v2378, 1.4
          %vm2541 = vmand %vm2533, %vm2537
          %vm2542 = vmand %vm2534, %vm2538
          %vm2543 = vmand %vm2535, %vm2539
          %vm2544 = vmand %vm2536, %vm2540
          %v2545 = vsel %vm2541, 1.0, 0.0
          %v2546 = vsel %vm2542, 1.0, 0.0
          %v2547 = vsel %vm2543, 1.0, 0.0
          %v2548 = vsel %vm2544, 1.0, 0.0
          %vm2549 = vcmp.ge.f32.partialorder %v2367, 1.4
          %vm2550 = vcmp.ge.f32.partialorder %v2370, 1.4
          %vm2551 = vcmp.ge.f32.partialorder %v2375, 1.4
          %vm2552 = vcmp.ge.f32.partialorder %v2378, 1.4
          %vm2553 = vcmp.lt.f32.partialorder %v2367, 1.8
          %vm2554 = vcmp.lt.f32.partialorder %v2370, 1.8
          %vm2555 = vcmp.lt.f32.partialorder %v2375, 1.8
          %vm2556 = vcmp.lt.f32.partialorder %v2378, 1.8
          %vm2557 = vmand %vm2549, %vm2553
          %vm2558 = vmand %vm2550, %vm2554
          %vm2559 = vmand %vm2551, %vm2555
          %vm2560 = vmand %vm2552, %vm2556
          %v2561 = vsel %vm2557, 1.0, 0.0
          %v2562 = vsel %vm2558, 1.0, 0.0
          %v2563 = vsel %vm2559, 1.0, 0.0
          %v2564 = vsel %vm2560, 1.0, 0.0
          %vm2565 = vcmp.ge.f32.partialorder %v2367, 1.8
          %vm2566 = vcmp.ge.f32.partialorder %v2370, 1.8
          %vm2567 = vcmp.ge.f32.partialorder %v2375, 1.8
          %vm2568 = vcmp.ge.f32.partialorder %v2378, 1.8
          %vm2569 = vcmp.lt.f32.partialorder %v2367, 2.2
          %vm2570 = vcmp.lt.f32.partialorder %v2370, 2.2
          %vm2571 = vcmp.lt.f32.partialorder %v2375, 2.2
          %vm2572 = vcmp.lt.f32.partialorder %v2378, 2.2
          %vm2573 = vmand %vm2565, %vm2569
          %vm2574 = vmand %vm2566, %vm2570
          %vm2575 = vmand %vm2567, %vm2571
          %vm2576 = vmand %vm2568, %vm2572
          %v2577 = vsel %vm2573, 1.0, 0.0
          %v2578 = vsel %vm2574, 1.0, 0.0
          %v2579 = vsel %vm2575, 1.0, 0.0
          %v2580 = vsel %vm2576, 1.0, 0.0
          %v2581 = vsub.f32 %v2367, -2.2
          %v2582 = vsub.f32 %v2370, -2.2
          %v2583 = vsub.f32 %v2375, -2.2
          %v2584 = vsub.f32 %v2378, -2.2
          %v2585 = vmul.f32 %v2581, 2.5
          %v2586 = vmul.f32 %v2582, 2.5
          %v2587 = vmul.f32 %v2583, 2.5
          %v2588 = vmul.f32 %v2584, 2.5
          %v2589 = vmul.f32 %v2585, %v2417
          %v2590 = vmul.f32 %v2586, %v2418
          %v2591 = vmul.f32 %v2587, %v2419
          %v2592 = vmul.f32 %v2588, %v2420
          %v2593 = vsub.f32 -1.4, %v2367
          %v2594 = vsub.f32 -1.4, %v2370
          %v2595 = vsub.f32 -1.4, %v2375
          %v2596 = vsub.f32 -1.4, %v2378
          %v2597 = vmul.f32 %v2593, 2.5
          %v2598 = vmul.f32 %v2594, 2.5
          %v2599 = vmul.f32 %v2595, 2.5
          %v2600 = vmul.f32 %v2596, 2.5
          %v2601 = vmul.f32 %v2597, %v2433
          %v2602 = vmul.f32 %v2598, %v2434
          %v2603 = vmul.f32 %v2599, %v2435
          %v2604 = vmul.f32 %v2600, %v2436
          %v2605 = vadd.f32 %v2589, %v2601
          %v2606 = vadd.f32 %v2590, %v2602
          %v2607 = vadd.f32 %v2591, %v2603
          %v2608 = vadd.f32 %v2592, %v2604
          %v2609 = vsub.f32 %v2367, -1.8
          %v2610 = vsub.f32 %v2370, -1.8
          %v2611 = vsub.f32 %v2375, -1.8
          %v2612 = vsub.f32 %v2378, -1.8
          %v2613 = vmul.f32 %v2609, 2.5
          %v2614 = vmul.f32 %v2610, 2.5
          %v2615 = vmul.f32 %v2611, 2.5
          %v2616 = vmul.f32 %v2612, 2.5
          %v2617 = vmul.f32 %v2613, %v2433
          %v2618 = vmul.f32 %v2614, %v2434
          %v2619 = vmul.f32 %v2615, %v2435
          %v2620 = vmul.f32 %v2616, %v2436
          %v2621 = vsub.f32 -1.0, %v2367
          %v2622 = vsub.f32 -1.0, %v2370
          %v2623 = vsub.f32 -1.0, %v2375
          %v2624 = vsub.f32 -1.0, %v2378
          %v2625 = vmul.f32 %v2621, 2.5
          %v2626 = vmul.f32 %v2622, 2.5
          %v2627 = vmul.f32 %v2623, 2.5
          %v2628 = vmul.f32 %v2624, 2.5
          %v2629 = vmul.f32 %v2625, %v2449
          %v2630 = vmul.f32 %v2626, %v2450
          %v2631 = vmul.f32 %v2627, %v2451
          %v2632 = vmul.f32 %v2628, %v2452
          %v2633 = vadd.f32 %v2617, %v2629
          %v2634 = vadd.f32 %v2618, %v2630
          %v2635 = vadd.f32 %v2619, %v2631
          %v2636 = vadd.f32 %v2620, %v2632
          %v2637 = vsub.f32 %v2367, -1.4
          %v2638 = vsub.f32 %v2370, -1.4
          %v2639 = vsub.f32 %v2375, -1.4
          %v2640 = vsub.f32 %v2378, -1.4
          %v2641 = vmul.f32 %v2637, 2.5
          %v2642 = vmul.f32 %v2638, 2.5
          %v2643 = vmul.f32 %v2639, 2.5
          %v2644 = vmul.f32 %v2640, 2.5
          %v2645 = vmul.f32 %v2641, %v2449
          %v2646 = vmul.f32 %v2642, %v2450
          %v2647 = vmul.f32 %v2643, %v2451
          %v2648 = vmul.f32 %v2644, %v2452
          %v2649 = vsub.f32 -0.6, %v2367
          %v2650 = vsub.f32 -0.6, %v2370
          %v2651 = vsub.f32 -0.6, %v2375
          %v2652 = vsub.f32 -0.6, %v2378
          %v2653 = vmul.f32 %v2649, 2.5
          %v2654 = vmul.f32 %v2650, 2.5
          %v2655 = vmul.f32 %v2651, 2.5
          %v2656 = vmul.f32 %v2652, 2.5
          %v2657 = vmul.f32 %v2653, %v2465
          %v2658 = vmul.f32 %v2654, %v2466
          %v2659 = vmul.f32 %v2655, %v2467
          %v2660 = vmul.f32 %v2656, %v2468
          %v2661 = vadd.f32 %v2645, %v2657
          %v2662 = vadd.f32 %v2646, %v2658
          %v2663 = vadd.f32 %v2647, %v2659
          %v2664 = vadd.f32 %v2648, %v2660
          %v2665 = vsub.f32 %v2367, -1.0
          %v2666 = vsub.f32 %v2370, -1.0
          %v2667 = vsub.f32 %v2375, -1.0
          %v2668 = vsub.f32 %v2378, -1.0
          %v2669 = vmul.f32 %v2665, 2.5
          %v2670 = vmul.f32 %v2666, 2.5
          %v2671 = vmul.f32 %v2667, 2.5
          %v2672 = vmul.f32 %v2668, 2.5
          %v2673 = vmul.f32 %v2669, %v2465
          %v2674 = vmul.f32 %v2670, %v2466
          %v2675 = vmul.f32 %v2671, %v2467
          %v2676 = vmul.f32 %v2672, %v2468
          %v2677 = vsub.f32 -0.2, %v2367
          %v2678 = vsub.f32 -0.2, %v2370
          %v2679 = vsub.f32 -0.2, %v2375
          %v2680 = vsub.f32 -0.2, %v2378
          %v2681 = vmul.f32 %v2677, 2.5
          %v2682 = vmul.f32 %v2678, 2.5
          %v2683 = vmul.f32 %v2679, 2.5
          %v2684 = vmul.f32 %v2680, 2.5
          %v2685 = vmul.f32 %v2681, %v2481
          %v2686 = vmul.f32 %v2682, %v2482
          %v2687 = vmul.f32 %v2683, %v2483
          %v2688 = vmul.f32 %v2684, %v2484
          %v2689 = vadd.f32 %v2673, %v2685
          %v2690 = vadd.f32 %v2674, %v2686
          %v2691 = vadd.f32 %v2675, %v2687
          %v2692 = vadd.f32 %v2676, %v2688
          %v2693 = vsub.f32 %v2367, -0.6
          %v2694 = vsub.f32 %v2370, -0.6
          %v2695 = vsub.f32 %v2375, -0.6
          %v2696 = vsub.f32 %v2378, -0.6
          %v2697 = vmul.f32 %v2693, 2.5
          %v2698 = vmul.f32 %v2694, 2.5
          %v2699 = vmul.f32 %v2695, 2.5
          %v2700 = vmul.f32 %v2696, 2.5
          %v2701 = vmul.f32 %v2697, %v2481
          %v2702 = vmul.f32 %v2698, %v2482
          %v2703 = vmul.f32 %v2699, %v2483
          %v2704 = vmul.f32 %v2700, %v2484
          %v2705 = vsub.f32 0.2, %v2367
          %v2706 = vsub.f32 0.2, %v2370
          %v2707 = vsub.f32 0.2, %v2375
          %v2708 = vsub.f32 0.2, %v2378
          %v2709 = vmul.f32 %v2705, 2.5
          %v2710 = vmul.f32 %v2706, 2.5
          %v2711 = vmul.f32 %v2707, 2.5
          %v2712 = vmul.f32 %v2708, 2.5
          %v2713 = vmul.f32 %v2709, %v2497
          %v2714 = vmul.f32 %v2710, %v2498
          %v2715 = vmul.f32 %v2711, %v2499
          %v2716 = vmul.f32 %v2712, %v2500
          %v2717 = vadd.f32 %v2701, %v2713
          %v2718 = vadd.f32 %v2702, %v2714
          %v2719 = vadd.f32 %v2703, %v2715
          %v2720 = vadd.f32 %v2704, %v2716
          %v2721 = vsub.f32 %v2367, -0.2
          %v2722 = vsub.f32 %v2370, -0.2
          %v2723 = vsub.f32 %v2375, -0.2
          %v2724 = vsub.f32 %v2378, -0.2
          %v2725 = vmul.f32 %v2721, 2.5
          %v2726 = vmul.f32 %v2722, 2.5
          %v2727 = vmul.f32 %v2723, 2.5
          %v2728 = vmul.f32 %v2724, 2.5
          %v2729 = vmul.f32 %v2725, %v2497
          %v2730 = vmul.f32 %v2726, %v2498
          %v2731 = vmul.f32 %v2727, %v2499
          %v2732 = vmul.f32 %v2728, %v2500
          %v2733 = vsub.f32 0.6, %v2367
          %v2734 = vsub.f32 0.6, %v2370
          %v2735 = vsub.f32 0.6, %v2375
          %v2736 = vsub.f32 0.6, %v2378
          %v2737 = vmul.f32 %v2733, 2.5
          %v2738 = vmul.f32 %v2734, 2.5
          %v2739 = vmul.f32 %v2735, 2.5
          %v2740 = vmul.f32 %v2736, 2.5
          %v2741 = vmul.f32 %v2737, %v2513
          %v2742 = vmul.f32 %v2738, %v2514
          %v2743 = vmul.f32 %v2739, %v2515
          %v2744 = vmul.f32 %v2740, %v2516
          %v2745 = vadd.f32 %v2729, %v2741
          %v2746 = vadd.f32 %v2730, %v2742
          %v2747 = vadd.f32 %v2731, %v2743
          %v2748 = vadd.f32 %v2732, %v2744
          %v2749 = vsub.f32 %v2367, 0.2
          %v2750 = vsub.f32 %v2370, 0.2
          %v2751 = vsub.f32 %v2375, 0.2
          %v2752 = vsub.f32 %v2378, 0.2
          %v2753 = vmul.f32 %v2749, 2.5
          %v2754 = vmul.f32 %v2750, 2.5
          %v2755 = vmul.f32 %v2751, 2.5
          %v2756 = vmul.f32 %v2752, 2.5
          %v2757 = vmul.f32 %v2753, %v2513
          %v2758 = vmul.f32 %v2754, %v2514
          %v2759 = vmul.f32 %v2755, %v2515
          %v2760 = vmul.f32 %v2756, %v2516
          %v2761 = vsub.f32 1.0, %v2367
          %v2762 = vsub.f32 1.0, %v2370
          %v2763 = vsub.f32 1.0, %v2375
          %v2764 = vsub.f32 1.0, %v2378
          %v2765 = vmul.f32 %v2761, 2.5
          %v2766 = vmul.f32 %v2762, 2.5
          %v2767 = vmul.f32 %v2763, 2.5
          %v2768 = vmul.f32 %v2764, 2.5
          %v2769 = vmul.f32 %v2765, %v2529
          %v2770 = vmul.f32 %v2766, %v2530
          %v2771 = vmul.f32 %v2767, %v2531
          %v2772 = vmul.f32 %v2768, %v2532
          %v2773 = vadd.f32 %v2757, %v2769
          %v2774 = vadd.f32 %v2758, %v2770
          %v2775 = vadd.f32 %v2759, %v2771
          %v2776 = vadd.f32 %v2760, %v2772
          %v2777 = vsub.f32 %v2367, 0.6
          %v2778 = vsub.f32 %v2370, 0.6
          %v2779 = vsub.f32 %v2375, 0.6
          %v2780 = vsub.f32 %v2378, 0.6
          %v2781 = vmul.f32 %v2777, 2.5
          %v2782 = vmul.f32 %v2778, 2.5
          %v2783 = vmul.f32 %v2779, 2.5
          %v2784 = vmul.f32 %v2780, 2.5
          %v2785 = vmul.f32 %v2781, %v2529
          %v2786 = vmul.f32 %v2782, %v2530
          %v2787 = vmul.f32 %v2783, %v2531
          %v2788 = vmul.f32 %v2784, %v2532
          %v2789 = vsub.f32 1.4, %v2367
          %v2790 = vsub.f32 1.4, %v2370
          %v2791 = vsub.f32 1.4, %v2375
          %v2792 = vsub.f32 1.4, %v2378
          %v2793 = vmul.f32 %v2789, 2.5
          %v2794 = vmul.f32 %v2790, 2.5
          %v2795 = vmul.f32 %v2791, 2.5
          %v2796 = vmul.f32 %v2792, 2.5
          %v2797 = vmul.f32 %v2793, %v2545
          %v2798 = vmul.f32 %v2794, %v2546
          %v2799 = vmul.f32 %v2795, %v2547
          %v2800 = vmul.f32 %v2796, %v2548
          %v2801 = vadd.f32 %v2785, %v2797
          %v2802 = vadd.f32 %v2786, %v2798
          %v2803 = vadd.f32 %v2787, %v2799
          %v2804 = vadd.f32 %v2788, %v2800
          %v2805 = vsub.f32 %v2367, 1.0
          %v2806 = vsub.f32 %v2370, 1.0
          %v2807 = vsub.f32 %v2375, 1.0
          %v2808 = vsub.f32 %v2378, 1.0
          %v2809 = vmul.f32 %v2805, 2.5
          %v2810 = vmul.f32 %v2806, 2.5
          %v2811 = vmul.f32 %v2807, 2.5
          %v2812 = vmul.f32 %v2808, 2.5
          %v2813 = vmul.f32 %v2809, %v2545
          %v2814 = vmul.f32 %v2810, %v2546
          %v2815 = vmul.f32 %v2811, %v2547
          %v2816 = vmul.f32 %v2812, %v2548
          %v2817 = vsub.f32 1.8, %v2367
          %v2818 = vsub.f32 1.8, %v2370
          %v2819 = vsub.f32 1.8, %v2375
          %v2820 = vsub.f32 1.8, %v2378
          %v2821 = vmul.f32 %v2817, 2.5
          %v2822 = vmul.f32 %v2818, 2.5
          %v2823 = vmul.f32 %v2819, 2.5
          %v2824 = vmul.f32 %v2820, 2.5
          %v2825 = vmul.f32 %v2821, %v2561
          %v2826 = vmul.f32 %v2822, %v2562
          %v2827 = vmul.f32 %v2823, %v2563
          %v2828 = vmul.f32 %v2824, %v2564
          %v2829 = vadd.f32 %v2813, %v2825
          %v2830 = vadd.f32 %v2814, %v2826
          %v2831 = vadd.f32 %v2815, %v2827
          %v2832 = vadd.f32 %v2816, %v2828
          %v2833 = vsub.f32 %v2367, 1.4
          %v2834 = vsub.f32 %v2370, 1.4
          %v2835 = vsub.f32 %v2375, 1.4
          %v2836 = vsub.f32 %v2378, 1.4
          %v2837 = vmul.f32 %v2833, 2.5
          %v2838 = vmul.f32 %v2834, 2.5
          %v2839 = vmul.f32 %v2835, 2.5
          %v2840 = vmul.f32 %v2836, 2.5
          %v2841 = vmul.f32 %v2837, %v2561
          %v2842 = vmul.f32 %v2838, %v2562
          %v2843 = vmul.f32 %v2839, %v2563
          %v2844 = vmul.f32 %v2840, %v2564
          %v2845 = vsub.f32 2.2, %v2367
          %v2846 = vsub.f32 2.2, %v2370
          %v2847 = vsub.f32 2.2, %v2375
          %v2848 = vsub.f32 2.2, %v2378
          %v2849 = vmul.f32 %v2845, 2.5
          %v2850 = vmul.f32 %v2846, 2.5
          %v2851 = vmul.f32 %v2847, 2.5
          %v2852 = vmul.f32 %v2848, 2.5
          %v2853 = vmul.f32 %v2849, %v2577
          %v2854 = vmul.f32 %v2850, %v2578
          %v2855 = vmul.f32 %v2851, %v2579
          %v2856 = vmul.f32 %v2852, %v2580
          %v2857 = vadd.f32 %v2841, %v2853
          %v2858 = vadd.f32 %v2842, %v2854
          %v2859 = vadd.f32 %v2843, %v2855
          %v2860 = vadd.f32 %v2844, %v2856
          %v2861 = vmul.f32 %v2581, 1.25
          %v2862 = vmul.f32 %v2582, 1.25
          %v2863 = vmul.f32 %v2583, 1.25
          %v2864 = vmul.f32 %v2584, 1.25
          %v2865 = vmul.f32 %v2861, %v2605
          %v2866 = vmul.f32 %v2862, %v2606
          %v2867 = vmul.f32 %v2863, %v2607
          %v2868 = vmul.f32 %v2864, %v2608
          %v2869 = vmul.f32 %v2621, 1.25
          %v2870 = vmul.f32 %v2622, 1.25
          %v2871 = vmul.f32 %v2623, 1.25
          %v2872 = vmul.f32 %v2624, 1.25
          %v2873 = vmul.f32 %v2869, %v2633
          %v2874 = vmul.f32 %v2870, %v2634
          %v2875 = vmul.f32 %v2871, %v2635
          %v2876 = vmul.f32 %v2872, %v2636
          %v2877 = vadd.f32 %v2865, %v2873
          %v2878 = vadd.f32 %v2866, %v2874
          %v2879 = vadd.f32 %v2867, %v2875
          %v2880 = vadd.f32 %v2868, %v2876
          %v2881 = vmul.f32 %v2609, 1.25
          %v2882 = vmul.f32 %v2610, 1.25
          %v2883 = vmul.f32 %v2611, 1.25
          %v2884 = vmul.f32 %v2612, 1.25
          %v2885 = vmul.f32 %v2881, %v2633
          %v2886 = vmul.f32 %v2882, %v2634
          %v2887 = vmul.f32 %v2883, %v2635
          %v2888 = vmul.f32 %v2884, %v2636
          %v2889 = vmul.f32 %v2649, 1.25
          %v2890 = vmul.f32 %v2650, 1.25
          %v2891 = vmul.f32 %v2651, 1.25
          %v2892 = vmul.f32 %v2652, 1.25
          %v2893 = vmul.f32 %v2889, %v2661
          %v2894 = vmul.f32 %v2890, %v2662
          %v2895 = vmul.f32 %v2891, %v2663
          %v2896 = vmul.f32 %v2892, %v2664
          %v2897 = vadd.f32 %v2885, %v2893
          %v2898 = vadd.f32 %v2886, %v2894
          %v2899 = vadd.f32 %v2887, %v2895
          %v2900 = vadd.f32 %v2888, %v2896
          %v2901 = vmul.f32 %v2637, 1.25
          %v2902 = vmul.f32 %v2638, 1.25
          %v2903 = vmul.f32 %v2639, 1.25
          %v2904 = vmul.f32 %v2640, 1.25
          %v2905 = vmul.f32 %v2901, %v2661
          %v2906 = vmul.f32 %v2902, %v2662
          %v2907 = vmul.f32 %v2903, %v2663
          %v2908 = vmul.f32 %v2904, %v2664
          %v2909 = vmul.f32 %v2677, 1.25
          %v2910 = vmul.f32 %v2678, 1.25
          %v2911 = vmul.f32 %v2679, 1.25
          %v2912 = vmul.f32 %v2680, 1.25
          %v2913 = vmul.f32 %v2909, %v2689
          %v2914 = vmul.f32 %v2910, %v2690
          %v2915 = vmul.f32 %v2911, %v2691
          %v2916 = vmul.f32 %v2912, %v2692
          %v2917 = vadd.f32 %v2905, %v2913
          %v2918 = vadd.f32 %v2906, %v2914
          %v2919 = vadd.f32 %v2907, %v2915
          %v2920 = vadd.f32 %v2908, %v2916
          %v2921 = vmul.f32 %v2665, 1.25
          %v2922 = vmul.f32 %v2666, 1.25
          %v2923 = vmul.f32 %v2667, 1.25
          %v2924 = vmul.f32 %v2668, 1.25
          %v2925 = vmul.f32 %v2921, %v2689
          %v2926 = vmul.f32 %v2922, %v2690
          %v2927 = vmul.f32 %v2923, %v2691
          %v2928 = vmul.f32 %v2924, %v2692
          %v2929 = vmul.f32 %v2705, 1.25
          %v2930 = vmul.f32 %v2706, 1.25
          %v2931 = vmul.f32 %v2707, 1.25
          %v2932 = vmul.f32 %v2708, 1.25
          %v2933 = vmul.f32 %v2929, %v2717
          %v2934 = vmul.f32 %v2930, %v2718
          %v2935 = vmul.f32 %v2931, %v2719
          %v2936 = vmul.f32 %v2932, %v2720
          %v2937 = vadd.f32 %v2925, %v2933
          %v2938 = vadd.f32 %v2926, %v2934
          %v2939 = vadd.f32 %v2927, %v2935
          %v2940 = vadd.f32 %v2928, %v2936
          %v2941 = vmul.f32 %v2693, 1.25
          %v2942 = vmul.f32 %v2694, 1.25
          %v2943 = vmul.f32 %v2695, 1.25
          %v2944 = vmul.f32 %v2696, 1.25
          %v2945 = vmul.f32 %v2941, %v2717
          %v2946 = vmul.f32 %v2942, %v2718
          %v2947 = vmul.f32 %v2943, %v2719
          %v2948 = vmul.f32 %v2944, %v2720
          %v2949 = vmul.f32 %v2733, 1.25
          %v2950 = vmul.f32 %v2734, 1.25
          %v2951 = vmul.f32 %v2735, 1.25
          %v2952 = vmul.f32 %v2736, 1.25
          %v2953 = vmul.f32 %v2949, %v2745
          %v2954 = vmul.f32 %v2950, %v2746
          %v2955 = vmul.f32 %v2951, %v2747
          %v2956 = vmul.f32 %v2952, %v2748
          %v2957 = vadd.f32 %v2945, %v2953
          %v2958 = vadd.f32 %v2946, %v2954
          %v2959 = vadd.f32 %v2947, %v2955
          %v2960 = vadd.f32 %v2948, %v2956
          %v2961 = vmul.f32 %v2721, 1.25
          %v2962 = vmul.f32 %v2722, 1.25
          %v2963 = vmul.f32 %v2723, 1.25
          %v2964 = vmul.f32 %v2724, 1.25
          %v2965 = vmul.f32 %v2961, %v2745
          %v2966 = vmul.f32 %v2962, %v2746
          %v2967 = vmul.f32 %v2963, %v2747
          %v2968 = vmul.f32 %v2964, %v2748
          %v2969 = vmul.f32 %v2761, 1.25
          %v2970 = vmul.f32 %v2762, 1.25
          %v2971 = vmul.f32 %v2763, 1.25
          %v2972 = vmul.f32 %v2764, 1.25
          %v2973 = vmul.f32 %v2969, %v2773
          %v2974 = vmul.f32 %v2970, %v2774
          %v2975 = vmul.f32 %v2971, %v2775
          %v2976 = vmul.f32 %v2972, %v2776
          %v2977 = vadd.f32 %v2965, %v2973
          %v2978 = vadd.f32 %v2966, %v2974
          %v2979 = vadd.f32 %v2967, %v2975
          %v2980 = vadd.f32 %v2968, %v2976
          %v2981 = vmul.f32 %v2749, 1.25
          %v2982 = vmul.f32 %v2750, 1.25
          %v2983 = vmul.f32 %v2751, 1.25
          %v2984 = vmul.f32 %v2752, 1.25
          %v2985 = vmul.f32 %v2981, %v2773
          %v2986 = vmul.f32 %v2982, %v2774
          %v2987 = vmul.f32 %v2983, %v2775
          %v2988 = vmul.f32 %v2984, %v2776
          %v2989 = vmul.f32 %v2789, 1.25
          %v2990 = vmul.f32 %v2790, 1.25
          %v2991 = vmul.f32 %v2791, 1.25
          %v2992 = vmul.f32 %v2792, 1.25
          %v2993 = vmul.f32 %v2989, %v2801
          %v2994 = vmul.f32 %v2990, %v2802
          %v2995 = vmul.f32 %v2991, %v2803
          %v2996 = vmul.f32 %v2992, %v2804
          %v2997 = vadd.f32 %v2985, %v2993
          %v2998 = vadd.f32 %v2986, %v2994
          %v2999 = vadd.f32 %v2987, %v2995
          %v3000 = vadd.f32 %v2988, %v2996
          %v3001 = vmul.f32 %v2777, 1.25
          %v3002 = vmul.f32 %v2778, 1.25
          %v3003 = vmul.f32 %v2779, 1.25
          %v3004 = vmul.f32 %v2780, 1.25
          %v3005 = vmul.f32 %v3001, %v2801
          %v3006 = vmul.f32 %v3002, %v2802
          %v3007 = vmul.f32 %v3003, %v2803
          %v3008 = vmul.f32 %v3004, %v2804
          %v3009 = vmul.f32 %v2817, 1.25
          %v3010 = vmul.f32 %v2818, 1.25
          %v3011 = vmul.f32 %v2819, 1.25
          %v3012 = vmul.f32 %v2820, 1.25
          %v3013 = vmul.f32 %v3009, %v2829
          %v3014 = vmul.f32 %v3010, %v2830
          %v3015 = vmul.f32 %v3011, %v2831
          %v3016 = vmul.f32 %v3012, %v2832
          %v3017 = vadd.f32 %v3005, %v3013
          %v3018 = vadd.f32 %v3006, %v3014
          %v3019 = vadd.f32 %v3007, %v3015
          %v3020 = vadd.f32 %v3008, %v3016
          %v3021 = vmul.f32 %v2805, 1.25
          %v3022 = vmul.f32 %v2806, 1.25
          %v3023 = vmul.f32 %v2807, 1.25
          %v3024 = vmul.f32 %v2808, 1.25
          %v3025 = vmul.f32 %v3021, %v2829
          %v3026 = vmul.f32 %v3022, %v2830
          %v3027 = vmul.f32 %v3023, %v2831
          %v3028 = vmul.f32 %v3024, %v2832
          %v3029 = vmul.f32 %v2845, 1.25
          %v3030 = vmul.f32 %v2846, 1.25
          %v3031 = vmul.f32 %v2847, 1.25
          %v3032 = vmul.f32 %v2848, 1.25
          %v3033 = vmul.f32 %v3029, %v2857
          %v3034 = vmul.f32 %v3030, %v2858
          %v3035 = vmul.f32 %v3031, %v2859
          %v3036 = vmul.f32 %v3032, %v2860
          %v3037 = vadd.f32 %v3025, %v3033
          %v3038 = vadd.f32 %v3026, %v3034
          %v3039 = vadd.f32 %v3027, %v3035
          %v3040 = vadd.f32 %v3028, %v3036
          %v3041 = vmul.f32 %v2581, 0.8333333
          %v3042 = vmul.f32 %v2582, 0.8333333
          %v3043 = vmul.f32 %v2583, 0.8333333
          %v3044 = vmul.f32 %v2584, 0.8333333
          %v3045 = vmul.f32 %v3041, %v2877
          %v3046 = vmul.f32 %v3042, %v2878
          %v3047 = vmul.f32 %v3043, %v2879
          %v3048 = vmul.f32 %v3044, %v2880
          %v3049 = vmul.f32 %v2649, 0.8333333
          %v3050 = vmul.f32 %v2650, 0.8333333
          %v3051 = vmul.f32 %v2651, 0.8333333
          %v3052 = vmul.f32 %v2652, 0.8333333
          %v3053 = vmul.f32 %v3049, %v2897
          %v3054 = vmul.f32 %v3050, %v2898
          %v3055 = vmul.f32 %v3051, %v2899
          %v3056 = vmul.f32 %v3052, %v2900
          %v3057 = vadd.f32 %v3045, %v3053
          %v3058 = vadd.f32 %v3046, %v3054
          %v3059 = vadd.f32 %v3047, %v3055
          %v3060 = vadd.f32 %v3048, %v3056
          %v3061 = vmul.f32 %v2609, 0.8333333
          %v3062 = vmul.f32 %v2610, 0.8333333
          %v3063 = vmul.f32 %v2611, 0.8333333
          %v3064 = vmul.f32 %v2612, 0.8333333
          %v3065 = vmul.f32 %v3061, %v2897
          %v3066 = vmul.f32 %v3062, %v2898
          %v3067 = vmul.f32 %v3063, %v2899
          %v3068 = vmul.f32 %v3064, %v2900
          %v3069 = vmul.f32 %v2677, 0.8333333
          %v3070 = vmul.f32 %v2678, 0.8333333
          %v3071 = vmul.f32 %v2679, 0.8333333
          %v3072 = vmul.f32 %v2680, 0.8333333
          %v3073 = vmul.f32 %v3069, %v2917
          %v3074 = vmul.f32 %v3070, %v2918
          %v3075 = vmul.f32 %v3071, %v2919
          %v3076 = vmul.f32 %v3072, %v2920
          %v3077 = vadd.f32 %v3065, %v3073
          %v3078 = vadd.f32 %v3066, %v3074
          %v3079 = vadd.f32 %v3067, %v3075
          %v3080 = vadd.f32 %v3068, %v3076
          %v3081 = vmul.f32 %v2637, 0.8333333
          %v3082 = vmul.f32 %v2638, 0.8333333
          %v3083 = vmul.f32 %v2639, 0.8333333
          %v3084 = vmul.f32 %v2640, 0.8333333
          %v3085 = vmul.f32 %v3081, %v2917
          %v3086 = vmul.f32 %v3082, %v2918
          %v3087 = vmul.f32 %v3083, %v2919
          %v3088 = vmul.f32 %v3084, %v2920
          %v3089 = vmul.f32 %v2705, 0.8333333
          %v3090 = vmul.f32 %v2706, 0.8333333
          %v3091 = vmul.f32 %v2707, 0.8333333
          %v3092 = vmul.f32 %v2708, 0.8333333
          %v3093 = vmul.f32 %v3089, %v2937
          %v3094 = vmul.f32 %v3090, %v2938
          %v3095 = vmul.f32 %v3091, %v2939
          %v3096 = vmul.f32 %v3092, %v2940
          %v3097 = vadd.f32 %v3085, %v3093
          %v3098 = vadd.f32 %v3086, %v3094
          %v3099 = vadd.f32 %v3087, %v3095
          %v3100 = vadd.f32 %v3088, %v3096
          %v3101 = vmul.f32 %v2665, 0.8333333
          %v3102 = vmul.f32 %v2666, 0.8333333
          %v3103 = vmul.f32 %v2667, 0.8333333
          %v3104 = vmul.f32 %v2668, 0.8333333
          %v3105 = vmul.f32 %v3101, %v2937
          %v3106 = vmul.f32 %v3102, %v2938
          %v3107 = vmul.f32 %v3103, %v2939
          %v3108 = vmul.f32 %v3104, %v2940
          %v3109 = vmul.f32 %v2733, 0.8333333
          %v3110 = vmul.f32 %v2734, 0.8333333
          %v3111 = vmul.f32 %v2735, 0.8333333
          %v3112 = vmul.f32 %v2736, 0.8333333
          %v3113 = vmul.f32 %v3109, %v2957
          %v3114 = vmul.f32 %v3110, %v2958
          %v3115 = vmul.f32 %v3111, %v2959
          %v3116 = vmul.f32 %v3112, %v2960
          %v3117 = vadd.f32 %v3105, %v3113
          %v3118 = vadd.f32 %v3106, %v3114
          %v3119 = vadd.f32 %v3107, %v3115
          %v3120 = vadd.f32 %v3108, %v3116
          %v3121 = vmul.f32 %v2693, 0.8333333
          %v3122 = vmul.f32 %v2694, 0.8333333
          %v3123 = vmul.f32 %v2695, 0.8333333
          %v3124 = vmul.f32 %v2696, 0.8333333
          %v3125 = vmul.f32 %v3121, %v2957
          %v3126 = vmul.f32 %v3122, %v2958
          %v3127 = vmul.f32 %v3123, %v2959
          %v3128 = vmul.f32 %v3124, %v2960
          %v3129 = vmul.f32 %v2761, 0.8333333
          %v3130 = vmul.f32 %v2762, 0.8333333
          %v3131 = vmul.f32 %v2763, 0.8333333
          %v3132 = vmul.f32 %v2764, 0.8333333
          %v3133 = vmul.f32 %v3129, %v2977
          %v3134 = vmul.f32 %v3130, %v2978
          %v3135 = vmul.f32 %v3131, %v2979
          %v3136 = vmul.f32 %v3132, %v2980
          %v3137 = vadd.f32 %v3125, %v3133
          %v3138 = vadd.f32 %v3126, %v3134
          %v3139 = vadd.f32 %v3127, %v3135
          %v3140 = vadd.f32 %v3128, %v3136
          %v3141 = vmul.f32 %v2721, 0.8333333
          %v3142 = vmul.f32 %v2722, 0.8333333
          %v3143 = vmul.f32 %v2723, 0.8333333
          %v3144 = vmul.f32 %v2724, 0.8333333
          %v3145 = vmul.f32 %v3141, %v2977
          %v3146 = vmul.f32 %v3142, %v2978
          %v3147 = vmul.f32 %v3143, %v2979
          %v3148 = vmul.f32 %v3144, %v2980
          %v3149 = vmul.f32 %v2789, 0.8333333
          %v3150 = vmul.f32 %v2790, 0.8333333
          %v3151 = vmul.f32 %v2791, 0.8333333
          %v3152 = vmul.f32 %v2792, 0.8333333
          %v3153 = vmul.f32 %v3149, %v2997
          %v3154 = vmul.f32 %v3150, %v2998
          %v3155 = vmul.f32 %v3151, %v2999
          %v3156 = vmul.f32 %v3152, %v3000
          %v3157 = vadd.f32 %v3145, %v3153
          %v3158 = vadd.f32 %v3146, %v3154
          %v3159 = vadd.f32 %v3147, %v3155
          %v3160 = vadd.f32 %v3148, %v3156
          %v3161 = vmul.f32 %v2749, 0.8333333
          %v3162 = vmul.f32 %v2750, 0.8333333
          %v3163 = vmul.f32 %v2751, 0.8333333
          %v3164 = vmul.f32 %v2752, 0.8333333
          %v3165 = vmul.f32 %v3161, %v2997
          %v3166 = vmul.f32 %v3162, %v2998
          %v3167 = vmul.f32 %v3163, %v2999
          %v3168 = vmul.f32 %v3164, %v3000
          %v3169 = vmul.f32 %v2817, 0.8333333
          %v3170 = vmul.f32 %v2818, 0.8333333
          %v3171 = vmul.f32 %v2819, 0.8333333
          %v3172 = vmul.f32 %v2820, 0.8333333
          %v3173 = vmul.f32 %v3169, %v3017
          %v3174 = vmul.f32 %v3170, %v3018
          %v3175 = vmul.f32 %v3171, %v3019
          %v3176 = vmul.f32 %v3172, %v3020
          %v3177 = vadd.f32 %v3165, %v3173
          %v3178 = vadd.f32 %v3166, %v3174
          %v3179 = vadd.f32 %v3167, %v3175
          %v3180 = vadd.f32 %v3168, %v3176
          %v3181 = vmul.f32 %v2777, 0.8333333
          %v3182 = vmul.f32 %v2778, 0.8333333
          %v3183 = vmul.f32 %v2779, 0.8333333
          %v3184 = vmul.f32 %v2780, 0.8333333
          %v3185 = vmul.f32 %v3181, %v3017
          %v3186 = vmul.f32 %v3182, %v3018
          %v3187 = vmul.f32 %v3183, %v3019
          %v3188 = vmul.f32 %v3184, %v3020
          %v3189 = vmul.f32 %v2845, 0.8333333
          %v3190 = vmul.f32 %v2846, 0.8333333
          %v3191 = vmul.f32 %v2847, 0.8333333
          %v3192 = vmul.f32 %v2848, 0.8333333
          %v3193 = vmul.f32 %v3189, %v3037
          %v3194 = vmul.f32 %v3190, %v3038
          %v3195 = vmul.f32 %v3191, %v3039
          %v3196 = vmul.f32 %v3192, %v3040
          %v3197 = vadd.f32 %v3185, %v3193
          %v3198 = vadd.f32 %v3186, %v3194
          %v3199 = vadd.f32 %v3187, %v3195
          %v3200 = vadd.f32 %v3188, %v3196
          %3205 = vrot.lane.b32.xlu0 %v3057, 32
          %v3206 = vpop.permute.xlu0 %3205
          %3207 = vrot.lane.b32.xlu0 %v3058, 32
          %v3208 = vpop.permute.xlu0 %3207
          %3209 = vrot.lane.b32.xlu0 %v3059, 32
          %v3210 = vpop.permute.xlu0 %3209
          %3211 = vrot.lane.b32.xlu0 %v3060, 32
          %v3212 = vpop.permute.xlu0 %3211
          %3221 = vrot.lane.b32.xlu0 %v3077, 64
          %v3222 = vpop.permute.xlu0 %3221
          %3223 = vrot.lane.b32.xlu0 %v3078, 64
          %v3224 = vpop.permute.xlu0 %3223
          %3225 = vrot.lane.b32.xlu0 %v3079, 64
          %v3226 = vpop.permute.xlu0 %3225
          %3227 = vrot.lane.b32.xlu0 %v3080, 64
          %v3228 = vpop.permute.xlu0 %3227
          %3237 = vrot.lane.b32.xlu0 %v3097, 96
          %v3238 = vpop.permute.xlu0 %3237
          %3239 = vrot.lane.b32.xlu0 %v3098, 96
          %v3240 = vpop.permute.xlu0 %3239
          %3241 = vrot.lane.b32.xlu0 %v3099, 96
          %v3242 = vpop.permute.xlu0 %3241
          %3243 = vrot.lane.b32.xlu0 %v3100, 96
          %v3244 = vpop.permute.xlu0 %3243
          %3253 = vrot.lane.b32.xlu0 %v3137, 32
          %v3254 = vpop.permute.xlu0 %3253
          %3255 = vrot.lane.b32.xlu0 %v3138, 32
          %v3256 = vpop.permute.xlu0 %3255
          %3257 = vrot.lane.b32.xlu0 %v3139, 32
          %v3258 = vpop.permute.xlu0 %3257
          %3259 = vrot.lane.b32.xlu0 %v3140, 32
          %v3260 = vpop.permute.xlu0 %3259
          %3269 = vrot.lane.b32.xlu0 %v3157, 64
          %v3270 = vpop.permute.xlu0 %3269
          %3271 = vrot.lane.b32.xlu0 %v3158, 64
          %v3272 = vpop.permute.xlu0 %3271
          %3273 = vrot.lane.b32.xlu0 %v3159, 64
          %v3274 = vpop.permute.xlu0 %3273
          %3275 = vrot.lane.b32.xlu0 %v3160, 64
          %v3276 = vpop.permute.xlu0 %3275
          %3285 = vrot.lane.b32.xlu0 %v3177, 96
          %v3286 = vpop.permute.xlu0 %3285
          %3287 = vrot.lane.b32.xlu0 %v3178, 96
          %v3288 = vpop.permute.xlu0 %3287
          %3289 = vrot.lane.b32.xlu0 %v3179, 96
          %v3290 = vpop.permute.xlu0 %3289
          %3291 = vrot.lane.b32.xlu0 %v3180, 96
          %v3292 = vpop.permute.xlu0 %3291
          %v3297 = vsel %vm2220, %v2401, %v3206
          %v3298 = vsel %vm2220, %v2402, %v3208
          %v3299 = vsel %vm2220, %v2403, %v3210
          %v3300 = vsel %vm2220, %v2404, %v3212
          %v3301 = vsel %vm2230, %v3297, %v3222
          %v3302 = vsel %vm2230, %v3298, %v3224
          %v3303 = vsel %vm2230, %v3299, %v3226
          %v3304 = vsel %vm2230, %v3300, %v3228
          %v3305 = vsel %vm2240, %v3301, %v3238
          %v3306 = vsel %vm2240, %v3302, %v3240
          %v3307 = vsel %vm2240, %v3303, %v3242
          %v3308 = vsel %vm2240, %v3304, %v3244
          %v3309 = vsel %vm2220, %v3117, %v3254
          %v3310 = vsel %vm2220, %v3118, %v3256
          %v3311 = vsel %vm2220, %v3119, %v3258
          %v3312 = vsel %vm2220, %v3120, %v3260
          %v3313 = vsel %vm2230, %v3309, %v3270
          %v3314 = vsel %vm2230, %v3310, %v3272
          %v3315 = vsel %vm2230, %v3311, %v3274
          %v3316 = vsel %vm2230, %v3312, %v3276
          %v3317 = vsel %vm2240, %v3313, %v3286
          %v3318 = vsel %vm2240, %v3314, %v3288
          %v3319 = vsel %vm2240, %v3315, %v3290
          %v3320 = vsel %vm2240, %v3316, %v3292
          %v3321 = vpack.c.bf16 %v3306, %v3305
          %v3322 = vpack.c.bf16 %v3318, %v3317
          %v3323 = vpack.c.bf16 %v3198, %v3197
          %v3324 = vpack.c.bf16 %v3308, %v3307
          %v3325 = vpack.c.bf16 %v3320, %v3319
          %v3326 = vpack.c.bf16 %v3200, %v3199
          %v3327 = vld [vmem:[%s7] sm:$0xf]
          %v3328 = vld [vmem:[%s7 + $0x4] sm:$0xf]
          %v3329 = vld [vmem:[%s7 + $0x8] sm:$0xf]
          %v3330 = vld [vmem:[%s7 + $0xc] sm:$0xf]
          %v3331 = vld [vmem:[%s7 + $0x10] sm:$0xf]
          %v3332 = vld [vmem:[%s7 + $0x14] sm:$0xf]
          %v3333 = vld [vmem:[%s7 + $0x18] sm:$0xf]
          %v3334 = vld [vmem:[%s7 + $0x1c] sm:$0xf]
          %v3335 = vld [vmem:[%s7 + $0x20] sm:$0xf]
          %v3336 = vld [vmem:[%s7 + $0x24] sm:$0xf]
          %v3337 = vld [vmem:[%s7 + $0x28] sm:$0xf]
          %v3338 = vld [vmem:[%s7 + $0x2c] sm:$0xf]
          %v3339 = vld [vmem:[%s7 + $0x30] sm:$0xf]
          %v3340 = vld [vmem:[%s7 + $0x34] sm:$0xf]
          %v3341 = vld [vmem:[%s7 + $0x38] sm:$0xf]
          %v3342 = vld [vmem:[%s7 + $0x3c] sm:$0xf]
          %v3343 = vld [vmem:[%s7 + $0x40] sm:$0xf]
          %v3344 = vld [vmem:[%s7 + $0x44] sm:$0xf]
          %v3345 = vld [vmem:[%s7 + $0x48] sm:$0xf]
          %v3346 = vld [vmem:[%s7 + $0x4c] sm:$0xf]
          %v3347 = vld [vmem:[%s7 + $0x50] sm:$0xf]
          %v3348 = vld [vmem:[%s7 + $0x54] sm:$0xf]
          %v3349 = vld [vmem:[%s7 + $0x58] sm:$0xf]
          %v3350 = vld [vmem:[%s7 + $0x5c] sm:$0xf]
          %v3351 = vld [vmem:[%s7 + $0x60] sm:$0xf]
          %v3352 = vld [vmem:[%s7 + $0x64] sm:$0xf]
          %v3353 = vld [vmem:[%s7 + $0x68] sm:$0xf]
          %v3354 = vld [vmem:[%s7 + $0x6c] sm:$0xf]
          %v3355 = vld [vmem:[%s7 + $0x70] sm:$0xf]
          %v3356 = vld [vmem:[%s7 + $0x74] sm:$0xf]
          %v3357 = vld [vmem:[%s7 + $0x78] sm:$0xf]
          %v3358 = vld [vmem:[%s7 + $0x7c] sm:$0xf]
          %v3359 = vld [vmem:[%s7 + $0x80] sm:$0xf]
          %v3360 = vld [vmem:[%s7 + $0x84] sm:$0xf]
          %v3361 = vld [vmem:[%s7 + $0x88] sm:$0xf]
          %v3362 = vld [vmem:[%s7 + $0x8c] sm:$0xf]
          %v3399 = vunpack.c.l.b16 %v3327
          %v3400 = vunpack.c.l.b16 %v3328
          %v3401 = vunpack.c.l.b16 %v3329
          %v3402 = vunpack.c.l.b16 %v3330
          %v3403 = vunpack.c.l.b16 %v3331
          %v3404 = vunpack.c.l.b16 %v3332
          %v3405 = vunpack.c.l.b16 %v3333
          %v3406 = vunpack.c.l.b16 %v3334
          %v3407 = vunpack.c.l.b16 %v3335
          %v3408 = vunpack.c.l.b16 %v3336
          %v3409 = vunpack.c.l.b16 %v3337
          %v3410 = vunpack.c.l.b16 %v3338
          %v3411 = vunpack.c.l.b16 %v3339
          %v3412 = vunpack.c.l.b16 %v3340
          %v3413 = vunpack.c.l.b16 %v3341
          %v3414 = vunpack.c.l.b16 %v3342
          %v3415 = vunpack.c.l.b16 %v3343
          %v3416 = vunpack.c.l.b16 %v3344
          %v3417 = vunpack.c.l.b16 %v3345
          %v3418 = vunpack.c.l.b16 %v3346
          %v3419 = vunpack.c.l.b16 %v3347
          %v3420 = vunpack.c.l.b16 %v3348
          %v3421 = vunpack.c.l.b16 %v3349
          %v3422 = vunpack.c.l.b16 %v3350
          %v3423 = vunpack.c.l.b16 %v3351
          %v3424 = vunpack.c.l.b16 %v3352
          %v3425 = vunpack.c.l.b16 %v3353
          %v3426 = vunpack.c.l.b16 %v3354
          %v3427 = vunpack.c.l.b16 %v3355
          %v3428 = vunpack.c.l.b16 %v3356
          %v3429 = vunpack.c.l.b16 %v3357
          %v3430 = vunpack.c.l.b16 %v3358
          %v3431 = vunpack.c.l.b16 %v3359
          %v3432 = vunpack.c.l.b16 %v3360
          %v3433 = vunpack.c.l.b16 %v3361
          %v3434 = vunpack.c.l.b16 %v3362
          %v3435 = vpack.c.b16 %v3400, %v3399
          %v3436 = vpack.c.b16 %v3402, %v3401
          %v3437 = vpack.c.b16 %v3404, %v3403
          %v3438 = vpack.c.b16 %v3406, %v3405
          %v3439 = vpack.c.b16 %v3408, %v3407
          %v3440 = vpack.c.b16 %v3410, %v3409
          %v3441 = vpack.c.b16 %v3412, %v3411
          %v3442 = vpack.c.b16 %v3414, %v3413
          %v3443 = vpack.c.b16 %v3416, %v3415
          %v3444 = vpack.c.b16 %v3418, %v3417
          %v3445 = vpack.c.b16 %v3420, %v3419
          %v3446 = vpack.c.b16 %v3422, %v3421
          %v3447 = vpack.c.b16 %v3424, %v3423
          %v3448 = vpack.c.b16 %v3426, %v3425
          %v3449 = vpack.c.b16 %v3428, %v3427
          %v3450 = vpack.c.b16 %v3430, %v3429
          %v3451 = vpack.c.b16 %v3432, %v3431
          %v3452 = vpack.c.b16 %v3434, %v3433
          %v3472 = vsel %vm2220, %v3323, 0
          %v3475 = vsel %vm2220, %v3326, 0
          %3477 = vmatprep.subr.bf16.mxu0 0
          %3478 = vmatpush1.bf16.msra.mxu0 %v3442
          %3479 = vmatprep.subr.bf16.mxu0 0
          %3480 = vmatpush1.bf16.msra.mxu0 %v3441
          %3481 = vmatprep.subr.bf16.mxu0 0
          %3482 = vmatpush1.bf16.msra.mxu0 %v3440
          %3483 = vmatprep.subr.bf16.mxu0 0
          %3484 = vmatpush1.bf16.msra.mxu0 %v3439
          %3485 = vmatprep.subr.bf16.mxu0 0
          %3486 = vmatpush1.bf16.msra.mxu0 %v3438
          %3487 = vmatprep.subr.bf16.mxu0 0
          %3488 = vmatpush1.bf16.msra.mxu0 %v3437
          %3489 = vmatprep.subr.bf16.mxu0 0
          %3490 = vmatpush1.bf16.msra.mxu0 %v3436
          %3491 = vmatprep.subr.bf16.mxu0 0
          %3492 = vmatpush1.bf16.msra.mxu0 %v3435
          %3493 = vmatprep.subr.bf16.mxu0 0
          %3494 = vmatpush2.bf16.msra.mxu0 %v3450
          %3495 = vmatprep.subr.bf16.mxu0 0
          %3496 = vmatpush2.bf16.msra.mxu0 %v3449
          %3497 = vmatprep.subr.bf16.mxu0 0
          %3498 = vmatpush2.bf16.msra.mxu0 %v3448
          %3499 = vmatprep.subr.bf16.mxu0 0
          %3500 = vmatpush2.bf16.msra.mxu0 %v3447
          %3501 = vmatprep.subr.bf16.mxu0 0
          %3502 = vmatpush2.bf16.msra.mxu0 %v3446
          %3503 = vmatprep.subr.bf16.mxu0 0
          %3504 = vmatpush2.bf16.msra.mxu0 %v3445
          %3505 = vmatprep.subr.bf16.mxu0 0
          %3506 = vmatpush2.bf16.msra.mxu0 %v3444
          %3507 = vmatprep.subr.bf16.mxu0 0
          %3508 = vmatpush2.bf16.msra.mxu0 %v3443
          %3509 = vmatprep.mubr.bf16.mxu0 %v3322
          %3510 = vmatmul.mubr.bf16.gmra.mxu0 %v3321
          %v3511 = vpop.f32.mrf.mxu0
          %v3512 = vadd.f32 %v1279, %v3511
          %v3513 = vpop.f32.mrf.mxu0
          %v3514 = vpop.f32.mrf.mxu0
          %v3515 = vadd.f32 %v1280, %v3514
          %v3516 = vpop.f32.mrf.mxu0
          %3517 = vmatprep.mubr.bf16.mxu0 %v3325
          %3518 = vmatmul.mubr.bf16.gmra.mxu0 %v3324
          %v3519 = vpop.f32.mrf.mxu0
          %v3520 = vadd.f32 %v1281, %v3519
          %v3521 = vpop.f32.mrf.mxu0
          %v3522 = vpop.f32.mrf.mxu0
          %v3523 = vadd.f32 %v1282, %v3522
          %v3524 = vpop.f32.mrf.mxu0
          %3525 = vdwg.mxu0
          %3526 = vmatprep.subr.bf16.mxu0 0
          %3527 = vmatpush1.bf16.msra.mxu0 0
          %3528 = vmatprep.subr.bf16.mxu0 0
          %3529 = vmatpush1.bf16.msra.mxu0 0
          %3530 = vmatprep.subr.bf16.mxu0 0
          %3531 = vmatpush1.bf16.msra.mxu0 0
          %3532 = vmatprep.subr.bf16.mxu0 0
          %3533 = vmatpush1.bf16.msra.mxu0 0
          %3534 = vmatprep.subr.bf16.mxu0 0
          %3535 = vmatpush1.bf16.msra.mxu0 0
          %3536 = vmatprep.subr.bf16.mxu0 0
          %3537 = vmatpush1.bf16.msra.mxu0 0
          %3538 = vmatprep.subr.bf16.mxu0 0
          %3539 = vmatpush1.bf16.msra.mxu0 %v3452
          %3540 = vmatprep.subr.bf16.mxu0 0
          %3541 = vmatpush1.bf16.msra.mxu0 %v3451
          %3542 = vmatprep.subr.bf16.mxu0 0
          %3543 = vmatpush2.bf16.msra.mxu0 0
          %3544 = vmatprep.subr.bf16.mxu0 0
          %3545 = vmatpush2.bf16.msra.mxu0 0
          %3546 = vmatprep.subr.bf16.mxu0 0
          %3547 = vmatpush2.bf16.msra.mxu0 0
          %3548 = vmatprep.subr.bf16.mxu0 0
          %3549 = vmatpush2.bf16.msra.mxu0 0
          %3550 = vmatprep.subr.bf16.mxu0 0
          %3551 = vmatpush2.bf16.msra.mxu0 0
          %3552 = vmatprep.subr.bf16.mxu0 0
          %3553 = vmatpush2.bf16.msra.mxu0 0
          %3554 = vmatprep.subr.bf16.mxu0 0
          %3555 = vmatpush2.bf16.msra.mxu0 0
          %3556 = vmatprep.subr.bf16.mxu0 0
          %3557 = vmatpush2.bf16.msra.mxu0 0
          %3558 = vmatprep.mubr.bf16.mxu0 0
          %3559 = vmatmul.mubr.bf16.gmra.mxu0 %v3472
          %v3560 = vpop.f32.mrf.mxu0
          %v3561 = vadd.f32 %v3512, %v3560
          %v3562 = vpop.f32.mrf.mxu0
          %v3563 = vpop.f32.mrf.mxu0
          %v3564 = vadd.f32 %v3515, %v3563
          %v3565 = vpop.f32.mrf.mxu0
          %3566 = vmatprep.mubr.bf16.mxu0 0
          %3567 = vmatmul.mubr.bf16.gmra.mxu0 %v3475
          %v3568 = vpop.f32.mrf.mxu0
          %v3569 = vadd.f32 %v3520, %v3568
          %v3570 = vpop.f32.mrf.mxu0
          %v3571 = vpop.f32.mrf.mxu0
          %v3572 = vadd.f32 %v3523, %v3571
          %v3573 = vpop.f32.mrf.mxu0
          %3574 = vdwg.mxu0
          %3575 = vst.msk [vmem:[%s430] sm:$0xff] %vm2215, %v3561
          %3576 = vst.msk [vmem:[%s430 + $0x8] sm:$0xff] %vm2215, %v3564
          %3577 = vst.msk [vmem:[%s430 + $0x10] sm:$0xff] %vm2215, %v3569
          %3578 = vst.msk [vmem:[%s430 + $0x18] sm:$0xff] %vm2215, %v3572
        $region72: #{tpu_custom_call.1} parent=63 // pred_fallthru
          _
      $region64: #{tpu_custom_call.1} parent=51 // pred_fallthru
        _
      %s3579 = smul.u32 4, %s24
      %p3580 = scmp.lt.s32.totalorder %s3579, 3
      %s3581 = scalar_select %p3580, %s3579, 3
      %s3582 = smul.addr %s3581, 8
      %s3583 = scalar_lea.vmem %s8, %s3582
      // Predicated region
      $region73: #{tpu_custom_call.1} parent=51 // pred_check
        %p3584 = pneg %p256
      $region74: #{tpu_custom_call.1} parent=51 // pred_check_branch
        %3586 = sbr.rel (%p3584) target = $region76
      $region75: #{tpu_custom_call.1} parent=51 // pred_region
        %s3587 = smul.u32 4, %s24
      $region76: #{tpu_custom_call.1} parent=51 // pred_fallthru
        _
      // Predicated region
      $region77: #{tpu_custom_call.1} parent=51 // pred_check
        %p3588 = pneg %p256
      $region78: #{tpu_custom_call.1} parent=51 // pred_check_branch
        %3590 = sbr.rel (%p3588) target = $region80
      $region79: #{tpu_custom_call.1} parent=51 // pred_region
        %s3591 = smul.u32 4, %s24
        %p3592 = scmp.lt.s32.totalorder %s3591, 3
        %s3593 = scalar_select %p3592, %s3591, 3
        %s3594 = smul.addr %s3593, 8
        %s3595 = scalar_lea.vmem %s8, %s3594
      $region80: #{tpu_custom_call.1} parent=51 // pred_fallthru
        _
    $region52: #{tpu_custom_call.1} parent=5 // pred_fallthru
      _
    %p3596 = scmp.le.s32.totalorder 2, %s14
    // Predicated region
    $region81: #{tpu_custom_call.1} parent=5 // pred_check
      %p3597 = pneg %p3596
    $region82: #{tpu_custom_call.1} parent=5 // pred_check_branch
      %3599 = sbr.rel (%p3597) target = $region84
    $region83: #{tpu_custom_call.1} parent=5 // pred_region
      %s3600 = ssub.s32 %s14, 2
    $region84: #{tpu_custom_call.1} parent=5 // pred_fallthru
      _
  $region6: #{tpu_custom_call.1} parent=0 // loop_footer
    %s18 = sadd.s32 1, %s14
  $region7: #{tpu_custom_call.1} parent=0 // loop_footer_branch
    %13 = sbr.rel target = $region3
  $region8: #{tpu_custom_call.1} parent=0 // loop_exit
    _

</llo_original>
